<compile_context>
chip_gen: v7x
topology: tpu7x:2x2x1
jax: 0.10.0
libtpu: 0.0.40
codegen_flags: <defaults>
</compile_context>

<pallas_src>
import math
import functools

import jax
import jax.numpy as jnp
from jax import lax
from jax.experimental import pallas as pl
from jax.experimental.pallas import tpu as pltpu

NEG_INF = -1e30          # finite stand-in for -inf mask (identical after softmax)
LN_EPS = 1e-5            # torch nn.LayerNorm default
VMEM_LIMIT = 32 * 1024 * 1024
MXU_DTYPE = jnp.float32  # set to jnp.bfloat16 to halve HBM traffic / 2x MXU rate
                         # (accumulation stays f32 via preferred_element_type)


# ---------------------------------------------------------------------------
# tiling helpers (always return divisors, respecting the (8, 128) constraint)
# ---------------------------------------------------------------------------
def _tile_rows(m, pref=256):
    if m <= pref:
        return m
    t = pref - (pref % 8)
    while t >= 8:
        if m % t == 0:
            return t
        t -= 8
    return m


def _tile_cols(n, pref=512):
    if n <= pref:
        return n
    t = pref - (pref % 128)
    while t >= 128:
        if n % t == 0:
            return t
        t -= 128
    return n


# ---------------------------------------------------------------------------
# Kernel 1: tiled matmul (+bias, optional ReLU).  grid = (rows, cols), parallel.
# ---------------------------------------------------------------------------
def _matmul_kernel(x_ref, w_ref, b_ref, o_ref, *, relu):
    y = jnp.dot(x_ref[...].astype(MXU_DTYPE), w_ref[...].astype(MXU_DTYPE),
                preferred_element_type=jnp.float32) + b_ref[...]
    if relu:
        y = jnp.maximum(y, 0.0)
    o_ref[...] = y.astype(o_ref.dtype)


def matmul(x, wt, b=None, relu=False):
    """y = x @ wt (+ b).  x: (M, K), wt already (K, Nout)."""
    M, K = x.shape
    Nout = wt.shape[1]
    tm = _tile_rows(M)
    tn = _tile_cols(Nout)
    b2 = (jnp.zeros((Nout,), jnp.float32) if b is None else b).reshape(1, Nout)
    return pl.pallas_call(
        functools.partial(_matmul_kernel, relu=relu),
        out_shape=jax.ShapeDtypeStruct((M, Nout), jnp.float32),
        grid=(M // tm, Nout // tn),
        in_specs=[pl.BlockSpec((tm, K), lambda i, j: (i, 0)),
                  pl.BlockSpec((K, tn), lambda i, j: (0, j)),
                  pl.BlockSpec((1, tn), lambda i, j: (0, j))],
        out_specs=pl.BlockSpec((tm, tn), lambda i, j: (i, j)),
        compiler_params=pltpu.CompilerParams(
            dimension_semantics=("parallel", "parallel"),
            vmem_limit_bytes=VMEM_LIMIT),
    )(x, wt, b2)


# ---------------------------------------------------------------------------
# Kernel 2: output projection + residual add + LayerNorm (fused epilogue).
# ---------------------------------------------------------------------------
def _proj_res_ln_kernel(x_ref, w_ref, b_ref, r_ref, g_ref, bln_ref, o_ref, *, eps):
    y = jnp.dot(x_ref[...].astype(MXU_DTYPE), w_ref[...].astype(MXU_DTYPE),
                preferred_element_type=jnp.float32) + b_ref[...]
    z = y + r_ref[...]
    mu = jnp.mean(z, axis=-1, keepdims=True)
    var = jnp.mean((z - mu) ** 2, axis=-1, keepdims=True)
    o_ref[...] = ((z - mu) * lax.rsqrt(var + eps) * g_ref[...] + bln_ref[...]).astype(o_ref.dtype)


def proj_residual_layernorm(x, wt, b, resid, gamma, beta):
    """LayerNorm(resid + (x @ wt + b)) — post-norm residual block."""
    M, K = x.shape
    D = wt.shape[1]
    tm = _tile_rows(M)
    return pl.pallas_call(
        functools.partial(_proj_res_ln_kernel, eps=LN_EPS),
        out_shape=jax.ShapeDtypeStruct((M, D), jnp.float32),
        grid=(M // tm,),
        in_specs=[pl.BlockSpec((tm, K), lambda i: (i, 0)),
                  pl.BlockSpec((K, D), lambda i: (0, 0)),
                  pl.BlockSpec((1, D), lambda i: (0, 0)),
                  pl.BlockSpec((tm, D), lambda i: (i, 0)),
                  pl.BlockSpec((1, D), lambda i: (0, 0)),
                  pl.BlockSpec((1, D), lambda i: (0, 0))],
        out_specs=pl.BlockSpec((tm, D), lambda i: (i, 0)),
        compiler_params=pltpu.CompilerParams(
            dimension_semantics=("parallel",),
            vmem_limit_bytes=VMEM_LIMIT),
    )(x, wt, b.reshape(1, D), resid, gamma.reshape(1, D), beta.reshape(1, D))


# ---------------------------------------------------------------------------
# Kernel 3: fused FFN  (w1 + ReLU + w2) + residual + LayerNorm.
# The (tm, F) hidden activation never leaves VMEM.
# ---------------------------------------------------------------------------
def _ffn_res_ln_kernel(x_ref, w1_ref, b1_ref, w2_ref, b2_ref, g_ref, bln_ref,
                       o_ref, *, eps):
    x = x_ref[...]
    h = jnp.dot(x.astype(MXU_DTYPE), w1_ref[...].astype(MXU_DTYPE),
                preferred_element_type=jnp.float32) + b1_ref[...]
    h = jnp.maximum(h, 0.0)
    y = jnp.dot(h.astype(MXU_DTYPE), w2_ref[...].astype(MXU_DTYPE),
                preferred_element_type=jnp.float32) + b2_ref[...]
    z = y + x                      # residual = FFN input (post-norm layer)
    mu = jnp.mean(z, axis=-1, keepdims=True)
    var = jnp.mean((z - mu) ** 2, axis=-1, keepdims=True)
    o_ref[...] = ((z - mu) * lax.rsqrt(var + eps) * g_ref[...] + bln_ref[...]).astype(o_ref.dtype)


def ffn_residual_layernorm(x, w1t, b1, w2t, b2, gamma, beta):
    M, D = x.shape
    F = w1t.shape[1]
    tm = _tile_rows(M)
    return pl.pallas_call(
        functools.partial(_ffn_res_ln_kernel, eps=LN_EPS),
        out_shape=jax.ShapeDtypeStruct((M, D), jnp.float32),
        grid=(M // tm,),
        in_specs=[pl.BlockSpec((tm, D), lambda i: (i, 0)),
                  pl.BlockSpec((D, F), lambda i: (0, 0)),
                  pl.BlockSpec((1, F), lambda i: (0, 0)),
                  pl.BlockSpec((F, D), lambda i: (0, 0)),
                  pl.BlockSpec((1, D), lambda i: (0, 0)),
                  pl.BlockSpec((1, D), lambda i: (0, 0)),
                  pl.BlockSpec((1, D), lambda i: (0, 0))],
        out_specs=pl.BlockSpec((tm, D), lambda i: (i, 0)),
        compiler_params=pltpu.CompilerParams(
            dimension_semantics=("parallel",),
            vmem_limit_bytes=VMEM_LIMIT),
    )(x, w1t, b1.reshape(1, F), w2t, b2.reshape(1, D),
      gamma.reshape(1, D), beta.reshape(1, D))


# ---------------------------------------------------------------------------
# Kernel 4: multi-head attention, all heads per grid step, in-kernel masking
# driven by scalar-prefetched key lengths (no (N,Tq,Tk) bias in HBM).
# ---------------------------------------------------------------------------
def _mha_kernel(klen_ref, q_ref, k_ref, v_ref, o_ref, *, scale, causal):
    b = pl.program_id(0)
    q = q_ref[...]                                        # (H, Tq, dh)
    k = k_ref[...]                                        # (H, Tk, dh)
    v = v_ref[...]                                        # (H, Tk, dh)
    # scores: contract head_dim, batch over heads (no explicit transpose of K)
    s = lax.dot_general(q.astype(MXU_DTYPE), k.astype(MXU_DTYPE),
                        (((2,), (2,)), ((0,), (0,))),
                        preferred_element_type=jnp.float32) * scale   # (H, Tq, Tk)
    kpos = lax.broadcasted_iota(jnp.int32, s.shape, 2)
    mask = kpos >= klen_ref[b]                            # key-padding mask
    if causal:
        qpos = lax.broadcasted_iota(jnp.int32, s.shape, 1)
        mask = jnp.logical_or(mask, kpos > qpos)          # causal sub-mask
    s = jnp.where(mask, NEG_INF, s)
    m = jnp.max(s, axis=-1, keepdims=True)
    p = jnp.exp(s - m)
    denom = jnp.sum(p, axis=-1, keepdims=True)
    p = p * pl.reciprocal(denom, approx=True)             # EUP, off the VALU path
    ctx = lax.dot_general(p.astype(MXU_DTYPE), v.astype(MXU_DTYPE),
                          (((2,), (1,)), ((0,), (0,))),
                          preferred_element_type=jnp.float32)         # (H, Tq, dh)
    o_ref[...] = ctx.astype(o_ref.dtype)


def mha_attention(q, k, v, klen, *, causal):
    """q: (N,H,Tq,dh), k/v: (N,H,Tk,dh), klen: (N,) int32 valid key lengths."""
    N, H, Tq, dh = q.shape
    Tk = k.shape[2]
    scale = 1.0 / math.sqrt(dh)
    grid_spec = pltpu.PrefetchScalarGridSpec(
        num_scalar_prefetch=1,
        grid=(N,),
        in_specs=[pl.BlockSpec((None, H, Tq, dh), lambda b, klen: (b, 0, 0, 0)),
                  pl.BlockSpec((None, H, Tk, dh), lambda b, klen: (b, 0, 0, 0)),
                  pl.BlockSpec((None, H, Tk, dh), lambda b, klen: (b, 0, 0, 0))],
        out_specs=pl.BlockSpec((None, H, Tq, dh), lambda b, klen: (b, 0, 0, 0)),
    )
    return pl.pallas_call(
        functools.partial(_mha_kernel, scale=scale, causal=causal),
        out_shape=jax.ShapeDtypeStruct((N, H, Tq, dh), jnp.float32),
        grid_spec=grid_spec,
        compiler_params=pltpu.CompilerParams(
            dimension_semantics=("parallel",),
            vmem_limit_bytes=VMEM_LIMIT),
    )(klen, q, k, v)


# ---------------------------------------------------------------------------
# model glue (batch-major)
# ---------------------------------------------------------------------------
def sin_pos_enc(T, D, base=0):
    """Absolute sinusoidal positional encoding ('xfmr_abs')."""
    pos = jnp.arange(base, base + T, dtype=jnp.float32)[:, None]
    div = jnp.exp(jnp.arange(0, D, 2, dtype=jnp.float32) * (-math.log(10000.0) / D))
    ang = pos * div[None, :]
    pe = jnp.zeros((T, D), jnp.float32)
    pe = pe.at[:, 0::2].set(jnp.sin(ang))
    pe = pe.at[:, 1::2].set(jnp.cos(ang))
    return pe


def decoder_forward(params, enc_out, enc_len, tgt_pad, tgt_len, *, nhead):
    """TorchTransformerDecoder.forward (eval). enc_out: (N,S,D), tgt_pad: (N,To).
    Returns logits (N, To, V)."""
    N, S, D = enc_out.shape
    To = tgt_pad.shape[1]
    dh = D // nhead

    memory2d = enc_out.astype(jnp.float32).reshape(N * S, D)

    # embedding + absolute positional encoding (scale_embed=False, offset=0)
    emb = params["embed"][tgt_pad] + sin_pos_enc(To, D)[None, :, :]
    x2d = emb.astype(jnp.float32).reshape(N * To, D)

    t_len = (jnp.full((N,), To, jnp.int32) if tgt_len is None
             else tgt_len.astype(jnp.int32))
    e_len = (jnp.full((N,), S, jnp.int32) if enc_len is None
             else enc_len.astype(jnp.int32))

    # post-norm decoder layers (pre_norm=False, final norm=None)
    for lp in params["layers"]:
        # ---- self-attention (fused QKV projection) ----
        qkv = matmul(x2d, lp["self"]["w_qkv"], lp["self"]["b_qkv"])       # (N*To, 3D)
        qkv = qkv.reshape(N, To, 3, nhead, dh).transpose(2, 0, 3, 1, 4)   # (3,N,H,To,dh)
        ctx = mha_attention(qkv[0], qkv[1], qkv[2], t_len, causal=True)   # (N,H,To,dh)
        ctx2d = ctx.transpose(0, 2, 1, 3).reshape(N * To, D)
        x2d = proj_residual_layernorm(ctx2d, lp["self"]["w_o"], lp["self"]["b_o"],
                                      x2d, lp["ln1_g"], lp["ln1_b"])

        # ---- cross-attention (fused KV projection of memory) ----
        q = matmul(x2d, lp["cross"]["w_q"], lp["cross"]["b_q"])           # (N*To, D)
        q = q.reshape(N, To, nhead, dh).transpose(0, 2, 1, 3)             # (N,H,To,dh)
        kv = matmul(memory2d, lp["cross"]["w_kv"], lp["cross"]["b_kv"])   # (N*S, 2D)
        kv = kv.reshape(N, S, 2, nhead, dh).transpose(2, 0, 3, 1, 4)      # (2,N,H,S,dh)
        ctx = mha_attention(q, kv[0], kv[1], e_len, causal=False)
        ctx2d = ctx.transpose(0, 2, 1, 3).reshape(N * To, D)
        x2d = proj_residual_layernorm(ctx2d, lp["cross"]["w_o"], lp["cross"]["b_o"],
                                      x2d, lp["ln2_g"], lp["ln2_b"])

        # ---- FFN + residual + LN3 (one fused kernel) ----
        x2d = ffn_residual_layernorm(x2d, lp["w1"], lp["b1"], lp["w2"], lp["b2"],
                                     lp["ln3_g"], lp["ln3_b"])
    # TODO(synk): dropout layers are identity in eval mode and therefore omitted.

    logits = matmul(x2d, params["out_wT"], None)                          # bias=False
    V = params["out_wT"].shape[1]
    return logits.reshape(N, To, V)


# ---------------------------------------------------------------------------
# parameters: stored pre-transposed as (K, Nout); QKV / KV fused.
# (To load a torch checkpoint: w_qkv = in_proj_weight.T, w_o = out_proj.weight.T,
#  w1 = linear1.weight.T, etc.)
# ---------------------------------------------------------------------------
def init_params(key, vocab, D, H, F, L):
    def nrm(k, shape, scale=0.05):
        return scale * jax.random.normal(k, shape, jnp.float32)

    keys = jax.random.split(key, 2 + L)
    params = {"embed": nrm(keys[0], (vocab, D), 0.1),
              "out_wT": nrm(keys[1], (D, vocab)),
              "layers": []}

    def self_attn_params(ks):
        return {"w_qkv": nrm(ks[0], (D, 3 * D)), "b_qkv": nrm(ks[1], (3 * D,)),
                "w_o": nrm(ks[2], (D, D)), "b_o": nrm(ks[3], (D,))}

    def cross_attn_params(ks):
        return {"w_q": nrm(ks[0], (D, D)), "b_q": nrm(ks[1], (D,)),
                "w_kv": nrm(ks[2], (D, 2 * D)), "b_kv": nrm(ks[3], (2 * D,)),
                "w_o": nrm(ks[4], (D, D)), "b_o": nrm(ks[5], (D,))}

    for l in range(L):
        lk = jax.random.split(keys[2 + l], 14)
        params["layers"].append({
            "self": self_attn_params(lk[0:4]),
            "cross": cross_attn_params(lk[4:10]),
            "w1": nrm(lk[10], (D, F)), "b1": nrm(lk[11], (F,)),
            "w2": nrm(lk[12], (F, D)), "b2": nrm(lk[13], (D,)),
            "ln1_g": jnp.ones((D,), jnp.float32), "ln1_b": jnp.zeros((D,), jnp.float32),
            "ln2_g": jnp.ones((D,), jnp.float32), "ln2_b": jnp.zeros((D,), jnp.float32),
            "ln3_g": jnp.ones((D,), jnp.float32), "ln3_b": jnp.zeros((D,), jnp.float32),
        })
    return params


if __name__ == "__main__":
    # small config: vocab=64, att_dim=32, nhead=4, ffn=64, num_layers=2
    V, D, H, F, L = 64, 32, 4, 64, 2
    N, S, To = 2, 12, 8

    key = jax.random.PRNGKey(0)
    kp, ke, kt = jax.random.split(key, 3)
    params = init_params(kp, V, D, H, F, L)

    enc_out = jax.random.normal(ke, (N, S, D), jnp.float32)          # N x S x D
    enc_len = jnp.array([S, 9], jnp.int32)                           # N
    tgt_pad = jax.random.randint(kt, (N, To), 0, V, jnp.int32)       # N x To
    tgt_len = jnp.array([To, 6], jnp.int32)                          # N

    fwd = jax.jit(functools.partial(decoder_forward, nhead=H))
    out = fwd(params, enc_out, enc_len, tgt_pad, tgt_len)
    out = jax.block_until_ready(out)
    assert out.shape == (N, To, V) and out.dtype == jnp.float32
    assert bool(jnp.all(jnp.isfinite(out)))
    print("KERNEL_OK")
</pallas_src>

<mosaic_0001>
module attributes {stable_mosaic.version = 11 : i64} {
  func.func @_matmul_kernel(%arg0: i32, %arg1: i32, %arg2: memref<16x32xf32, #tpu.memory_space<vmem>>, %arg3: memref<32x96xf32, #tpu.memory_space<vmem>>, %arg4: memref<1x96xf32, #tpu.memory_space<vmem>>, %arg5: memref<16x96xf32, #tpu.memory_space<vmem>>) attributes {dimension_semantics = [#tpu.dimension_semantics<parallel>, #tpu.dimension_semantics<parallel>], iteration_bounds = array<i64: 1, 1>, scalar_prefetch = 0 : i64, scratch_operands = 0 : i64, tpu.core_type = #tpu.core_type<tc>, window_params = [{transform_indices = @transform_0, window_bounds = array<i64: 16, 32>}, {transform_indices = @transform_1, window_bounds = array<i64: 32, 96>}, {transform_indices = @transform_2, window_bounds = array<i64: 1, 96>}, {transform_indices = @transform_3, window_bounds = array<i64: 16, 96>}]} {
    %c0 = arith.constant 0 : index
    %c0_0 = arith.constant 0 : index
    %0 = vector.load %arg2[%c0, %c0_0] : memref<16x32xf32, #tpu.memory_space<vmem>>, vector<16x32xf32>
    %c0_1 = arith.constant 0 : index
    %c0_2 = arith.constant 0 : index
    %1 = vector.load %arg3[%c0_1, %c0_2] : memref<32x96xf32, #tpu.memory_space<vmem>>, vector<32x96xf32>
    %cst = arith.constant dense<0.000000e+00> : vector<16x96xf32>
    %2 = tpu.matmul %0, %1, %cst {dimension_numbers = #tpu.dot_dimension_numbers<[1], [0], [0], [1], [0, 0, 1, 1], [], []>} : vector<16x32xf32>, vector<32x96xf32>, vector<16x96xf32> -> vector<16x96xf32>
    %c0_3 = arith.constant 0 : index
    %c0_4 = arith.constant 0 : index
    %3 = vector.load %arg4[%c0_3, %c0_4] : memref<1x96xf32, #tpu.memory_space<vmem>>, vector<1x96xf32>
    %4 = vector.broadcast %3 : vector<1x96xf32> to vector<16x96xf32>
    %5 = arith.addf %2, %4 : vector<16x96xf32>
    %c0_5 = arith.constant 0 : index
    %c0_6 = arith.constant 0 : index
    %6 = vector.load %arg5[%c0_5, %c0_6] : memref<16x96xf32, #tpu.memory_space<vmem>>, vector<16x96xf32>
    tpu.vector_store %arg5[%c0_5, %c0_6], %5 {strides = array<i32>} : memref<16x96xf32, #tpu.memory_space<vmem>>, vector<16x96xf32>,
    return
  }
  func.func @transform_0(%arg0: i32, %arg1: i32) -> (i32, i32) {
    %c0_i32 = arith.constant 0 : i32
    %c0_i32_0 = arith.constant 0 : i32
    return %arg0, %c0_i32 : i32, i32
  }
  func.func @transform_1(%arg0: i32, %arg1: i32) -> (i32, i32) {
    %c0_i32 = arith.constant 0 : i32
    %c0_i32_0 = arith.constant 0 : i32
    return %c0_i32, %arg1 : i32, i32
  }
  func.func @transform_2(%arg0: i32, %arg1: i32) -> (i32, i32) {
    %c0_i32 = arith.constant 0 : i32
    %c0_i32_0 = arith.constant 0 : i32
    return %c0_i32, %arg1 : i32, i32
  }
  func.func @transform_3(%arg0: i32, %arg1: i32) -> (i32, i32) {
    %c0_i32 = arith.constant 0 : i32
    return %arg0, %arg1 : i32, i32
  }
}

module attributes {stable_mosaic.version = 11 : i64} {
  func.func @_mha_kernel(%arg0: i32, %arg1: memref<2xi32, #tpu.memory_space<smem>>, %arg2: memref<1x4x8x8xf32, #tpu.memory_space<vmem>>, %arg3: memref<1x4x8x8xf32, #tpu.memory_space<vmem>>, %arg4: memref<1x4x8x8xf32, #tpu.memory_space<vmem>>, %arg5: memref<1x4x8x8xf32, #tpu.memory_space<vmem>>) attributes {dimension_semantics = [#tpu.dimension_semantics<parallel>], iteration_bounds = array<i64: 2>, scalar_prefetch = 1 : i64, scratch_operands = 0 : i64, tpu.core_type = #tpu.core_type<tc>, window_params = [{transform_indices = @transform_0, window_bounds = array<i64: 1, 4, 8, 8>}, {transform_indices = @transform_1, window_bounds = array<i64: 1, 4, 8, 8>}, {transform_indices = @transform_2, window_bounds = array<i64: 1, 4, 8, 8>}, {transform_indices = @transform_3, window_bounds = array<i64: 1, 4, 8, 8>}]} {
    %c0 = arith.constant 0 : index
    %c0_0 = arith.constant 0 : index
    %c0_1 = arith.constant 0 : index
    %c0_2 = arith.constant 0 : index
    %0 = vector.load %arg2[%c0, %c0_0, %c0_1, %c0_2] : memref<1x4x8x8xf32, #tpu.memory_space<vmem>>, vector<1x4x8x8xf32>
    %1 = vector.shape_cast %0 : vector<1x4x8x8xf32> to vector<4x8x8xf32>
    %c0_3 = arith.constant 0 : index
    %c0_4 = arith.constant 0 : index
    %c0_5 = arith.constant 0 : index
    %c0_6 = arith.constant 0 : index
    %2 = vector.load %arg3[%c0_3, %c0_4, %c0_5, %c0_6] : memref<1x4x8x8xf32, #tpu.memory_space<vmem>>, vector<1x4x8x8xf32>
    %3 = vector.shape_cast %2 : vector<1x4x8x8xf32> to vector<4x8x8xf32>
    %c0_7 = arith.constant 0 : index
    %c0_8 = arith.constant 0 : index
    %c0_9 = arith.constant 0 : index
    %c0_10 = arith.constant 0 : index
    %4 = vector.load %arg4[%c0_7, %c0_8, %c0_9, %c0_10] : memref<1x4x8x8xf32, #tpu.memory_space<vmem>>, vector<1x4x8x8xf32>
    %5 = vector.shape_cast %4 : vector<1x4x8x8xf32> to vector<4x8x8xf32>
    %cst = arith.constant dense<0.000000e+00> : vector<4x8x8xf32>
    %6 = tpu.matmul %1, %3, %cst {dimension_numbers = #tpu.dot_dimension_numbers<[2], [2], [1], [1], [0, 0, 0, 1, 1, 1], [0], [0]>} : vector<4x8x8xf32>, vector<4x8x8xf32>, vector<4x8x8xf32> -> vector<4x8x8xf32>
    %cst_11 = arith.constant 0.353553385 : f32
    %7 = vector.broadcast %cst_11 : f32 to vector<4x8x8xf32>
    %8 = arith.mulf %6, %7 : vector<4x8x8xf32>
    %9 = tpu.iota {dimensions = array<i32: 2>} : vector<4x8x8xi32>
    %10 = arith.index_cast %arg0 : i32 to index
    %11 = memref.load %arg1[%10] : memref<2xi32, #tpu.memory_space<smem>>
    %12 = vector.broadcast %11 : i32 to vector<4x8x8xi32>
    %13 = arith.cmpi sge, %9, %12 : vector<4x8x8xi32>
    %14 = tpu.iota {dimensions = array<i32: 1>} : vector<4x8x8xi32>
    %15 = arith.cmpi sgt, %9, %14 : vector<4x8x8xi32>
    %16 = arith.ori %13, %15 : vector<4x8x8xi1>
    %cst_12 = arith.constant -1.000000e+30 : f32
    %17 = vector.broadcast %cst_12 : f32 to vector<4x8x8xf32>
    %18 = arith.select %16, %17, %8 : vector<4x8x8xi1>, vector<4x8x8xf32>
    %cst_13 = arith.constant dense<0xFF800000> : vector<4x8xf32>
    %19 = vector.multi_reduction <maximumf>, %18, %cst_13 [2] : vector<4x8x8xf32> to vector<4x8xf32>
    %20 = vector.shape_cast %19 : vector<4x8xf32> to vector<4x8x1xf32>
    %21 = vector.broadcast %20 : vector<4x8x1xf32> to vector<4x8x8xf32>
    %22 = arith.subf %18, %21 : vector<4x8x8xf32>
    %23 = math.exp %22 : vector<4x8x8xf32>
    %cst_14 = arith.constant dense<0.000000e+00> : vector<4x8xf32>
    %24 = vector.multi_reduction <add>, %23, %cst_14 [2] : vector<4x8x8xf32> to vector<4x8xf32>
    %25 = vector.shape_cast %24 : vector<4x8xf32> to vector<4x8x1xf32>
    %26 = tpu.reciprocal %25 {approx = true} : vector<4x8x1xf32> -> vector<4x8x1xf32>
    %27 = vector.broadcast %26 : vector<4x8x1xf32> to vector<4x8x8xf32>
    %28 = arith.mulf %23, %27 : vector<4x8x8xf32>
    %cst_15 = arith.constant dense<0.000000e+00> : vector<4x8x8xf32>
    %29 = tpu.matmul %28, %5, %cst_15 {dimension_numbers = #tpu.dot_dimension_numbers<[2], [1], [1], [2], [0, 0, 0, 1, 1, 2], [0], [0]>} : vector<4x8x8xf32>, vector<4x8x8xf32>, vector<4x8x8xf32> -> vector<4x8x8xf32>
    %c0_16 = arith.constant 0 : index
    %c0_17 = arith.constant 0 : index
    %c0_18 = arith.constant 0 : index
    %c0_19 = arith.constant 0 : index
    %30 = vector.load %arg5[%c0_16, %c0_17, %c0_18, %c0_19] : memref<1x4x8x8xf32, #tpu.memory_space<vmem>>, vector<1x4x8x8xf32>
    %31 = vector.shape_cast %30 : vector<1x4x8x8xf32> to vector<4x8x8xf32>
    %32 = vector.shape_cast %29 : vector<4x8x8xf32> to vector<1x4x8x8xf32>
    tpu.vector_store %arg5[%c0_16, %c0_17, %c0_18, %c0_19], %32 {strides = array<i32>} : memref<1x4x8x8xf32, #tpu.memory_space<vmem>>, vector<1x4x8x8xf32>,
    return
  }
  func.func @transform_0(%arg0: i32, %arg1: memref<2xi32, #tpu.memory_space<smem>>) -> (i32, i32, i32, i32) {
    %c0_i32 = arith.constant 0 : i32
    %c0_i32_0 = arith.constant 0 : i32
    %c0_i32_1 = arith.constant 0 : i32
    %c0_i32_2 = arith.constant 0 : i32
    return %arg0, %c0_i32, %c0_i32_0, %c0_i32_1 : i32, i32, i32, i32
  }
  func.func @transform_1(%arg0: i32, %arg1: memref<2xi32, #tpu.memory_space<smem>>) -> (i32, i32, i32, i32) {
    %c0_i32 = arith.constant 0 : i32
    %c0_i32_0 = arith.constant 0 : i32
    %c0_i32_1 = arith.constant 0 : i32
    %c0_i32_2 = arith.constant 0 : i32
    return %arg0, %c0_i32, %c0_i32_0, %c0_i32_1 : i32, i32, i32, i32
  }
  func.func @transform_2(%arg0: i32, %arg1: memref<2xi32, #tpu.memory_space<smem>>) -> (i32, i32, i32, i32) {
    %c0_i32 = arith.constant 0 : i32
    %c0_i32_0 = arith.constant 0 : i32
    %c0_i32_1 = arith.constant 0 : i32
    %c0_i32_2 = arith.constant 0 : i32
    return %arg0, %c0_i32, %c0_i32_0, %c0_i32_1 : i32, i32, i32, i32
  }
  func.func @transform_3(%arg0: i32, %arg1: memref<2xi32, #tpu.memory_space<smem>>) -> (i32, i32, i32, i32) {
    %c0_i32 = arith.constant 0 : i32
    %c0_i32_0 = arith.constant 0 : i32
    %c0_i32_1 = arith.constant 0 : i32
    %c0_i32_2 = arith.constant 0 : i32
    return %arg0, %c0_i32, %c0_i32_0, %c0_i32_1 : i32, i32, i32, i32
  }
}

module attributes {stable_mosaic.version = 11 : i64} {
  func.func @_proj_res_ln_kernel(%arg0: i32, %arg1: memref<16x32xf32, #tpu.memory_space<vmem>>, %arg2: memref<32x32xf32, #tpu.memory_space<vmem>>, %arg3: memref<1x32xf32, #tpu.memory_space<vmem>>, %arg4: memref<16x32xf32, #tpu.memory_space<vmem>>, %arg5: memref<1x32xf32, #tpu.memory_space<vmem>>, %arg6: memref<1x32xf32, #tpu.memory_space<vmem>>, %arg7: memref<16x32xf32, #tpu.memory_space<vmem>>) attributes {dimension_semantics = [#tpu.dimension_semantics<parallel>], iteration_bounds = array<i64: 1>, scalar_prefetch = 0 : i64, scratch_operands = 0 : i64, tpu.core_type = #tpu.core_type<tc>, window_params = [{transform_indices = @transform_0, window_bounds = array<i64: 16, 32>}, {pipeline_mode = #tpu.pipeline_mode<synchronous>, transform_indices = @transform_1, window_bounds = array<i64: 32, 32>}, {pipeline_mode = #tpu.pipeline_mode<synchronous>, transform_indices = @transform_2, window_bounds = array<i64: 1, 32>}, {transform_indices = @transform_3, window_bounds = array<i64: 16, 32>}, {pipeline_mode = #tpu.pipeline_mode<synchronous>, transform_indices = @transform_4, window_bounds = array<i64: 1, 32>}, {pipeline_mode = #tpu.pipeline_mode<synchronous>, transform_indices = @transform_5, window_bounds = array<i64: 1, 32>}, {transform_indices = @transform_6, window_bounds = array<i64: 16, 32>}]} {
    %c0 = arith.constant 0 : index
    %c0_0 = arith.constant 0 : index
    %0 = vector.load %arg1[%c0, %c0_0] : memref<16x32xf32, #tpu.memory_space<vmem>>, vector<16x32xf32>
    %c0_1 = arith.constant 0 : index
    %c0_2 = arith.constant 0 : index
    %1 = vector.load %arg2[%c0_1, %c0_2] : memref<32x32xf32, #tpu.memory_space<vmem>>, vector<32x32xf32>
    %cst = arith.constant dense<0.000000e+00> : vector<16x32xf32>
    %2 = tpu.matmul %0, %1, %cst {dimension_numbers = #tpu.dot_dimension_numbers<[1], [0], [0], [1], [0, 0, 1, 1], [], []>} : vector<16x32xf32>, vector<32x32xf32>, vector<16x32xf32> -> vector<16x32xf32>
    %c0_3 = arith.constant 0 : index
    %c0_4 = arith.constant 0 : index
    %3 = vector.load %arg3[%c0_3, %c0_4] : memref<1x32xf32, #tpu.memory_space<vmem>>, vector<1x32xf32>
    %4 = vector.broadcast %3 : vector<1x32xf32> to vector<16x32xf32>
    %5 = arith.addf %2, %4 : vector<16x32xf32>
    %c0_5 = arith.constant 0 : index
    %c0_6 = arith.constant 0 : index
    %6 = vector.load %arg4[%c0_5, %c0_6] : memref<16x32xf32, #tpu.memory_space<vmem>>, vector<16x32xf32>
    %7 = arith.addf %5, %6 : vector<16x32xf32>
    %cst_7 = arith.constant dense<0.000000e+00> : vector<16xf32>
    %8 = vector.multi_reduction <add>, %7, %cst_7 [1] : vector<16x32xf32> to vector<16xf32>
    %9 = vector.shape_cast %8 : vector<16xf32> to vector<16x1xf32>
    %cst_8 = arith.constant 3.200000e+01 : f32
    %10 = vector.broadcast %cst_8 : f32 to vector<16x1xf32>
    %11 = arith.divf %9, %10 : vector<16x1xf32>
    %12 = vector.broadcast %11 : vector<16x1xf32> to vector<16x32xf32>
    %13 = arith.subf %7, %12 : vector<16x32xf32>
    %14 = arith.mulf %13, %13 : vector<16x32xf32>
    %cst_9 = arith.constant dense<0.000000e+00> : vector<16xf32>
    %15 = vector.multi_reduction <add>, %14, %cst_9 [1] : vector<16x32xf32> to vector<16xf32>
    %16 = vector.shape_cast %15 : vector<16xf32> to vector<16x1xf32>
    %cst_10 = arith.constant 3.200000e+01 : f32
    %17 = vector.broadcast %cst_10 : f32 to vector<16x1xf32>
    %18 = arith.divf %16, %17 : vector<16x1xf32>
    %19 = vector.broadcast %11 : vector<16x1xf32> to vector<16x32xf32>
    %20 = arith.subf %7, %19 : vector<16x32xf32>
    %cst_11 = arith.constant 9.99999974E-6 : f32
    %21 = vector.broadcast %cst_11 : f32 to vector<16x1xf32>
    %22 = arith.addf %18, %21 : vector<16x1xf32>
    %23 = math.rsqrt %22 : vector<16x1xf32>
    %24 = vector.broadcast %23 : vector<16x1xf32> to vector<16x32xf32>
    %25 = arith.mulf %20, %24 : vector<16x32xf32>
    %c0_12 = arith.constant 0 : index
    %c0_13 = arith.constant 0 : index
    %26 = vector.load %arg5[%c0_12, %c0_13] : memref<1x32xf32, #tpu.memory_space<vmem>>, vector<1x32xf32>
    %27 = vector.broadcast %26 : vector<1x32xf32> to vector<16x32xf32>
    %28 = arith.mulf %25, %27 : vector<16x32xf32>
    %c0_14 = arith.constant 0 : index
    %c0_15 = arith.constant 0 : index
    %29 = vector.load %arg6[%c0_14, %c0_15] : memref<1x32xf32, #tpu.memory_space<vmem>>, vector<1x32xf32>
    %30 = vector.broadcast %29 : vector<1x32xf32> to vector<16x32xf32>
    %31 = arith.addf %28, %30 : vector<16x32xf32>
    %c0_16 = arith.constant 0 : index
    %c0_17 = arith.constant 0 : index
    %32 = vector.load %arg7[%c0_16, %c0_17] : memref<16x32xf32, #tpu.memory_space<vmem>>, vector<16x32xf32>
    tpu.vector_store %arg7[%c0_16, %c0_17], %31 {strides = array<i32>} : memref<16x32xf32, #tpu.memory_space<vmem>>, vector<16x32xf32>,
    return
  }
  func.func @transform_0(%arg0: i32) -> (i32, i32) {
    %c0_i32 = arith.constant 0 : i32
    %c0_i32_0 = arith.constant 0 : i32
    return %arg0, %c0_i32 : i32, i32
  }
  func.func @transform_1(%arg0: i32) -> (i32, i32) {
    %c0_i32 = arith.constant 0 : i32
    %c0_i32_0 = arith.constant 0 : i32
    %c0_i32_1 = arith.constant 0 : i32
    return %c0_i32, %c0_i32_0 : i32, i32
  }
  func.func @transform_2(%arg0: i32) -> (i32, i32) {
    %c0_i32 = arith.constant 0 : i32
    %c0_i32_0 = arith.constant 0 : i32
    %c0_i32_1 = arith.constant 0 : i32
    return %c0_i32, %c0_i32_0 : i32, i32
  }
  func.func @transform_3(%arg0: i32) -> (i32, i32) {
    %c0_i32 = arith.constant 0 : i32
    %c0_i32_0 = arith.constant 0 : i32
    return %arg0, %c0_i32 : i32, i32
  }
  func.func @transform_4(%arg0: i32) -> (i32, i32) {
    %c0_i32 = arith.constant 0 : i32
    %c0_i32_0 = arith.constant 0 : i32
    %c0_i32_1 = arith.constant 0 : i32
    return %c0_i32, %c0_i32_0 : i32, i32
  }
  func.func @transform_5(%arg0: i32) -> (i32, i32) {
    %c0_i32 = arith.constant 0 : i32
    %c0_i32_0 = arith.constant 0 : i32
    %c0_i32_1 = arith.constant 0 : i32
    return %c0_i32, %c0_i32_0 : i32, i32
  }
  func.func @transform_6(%arg0: i32) -> (i32, i32) {
    %c0_i32 = arith.constant 0 : i32
    %c0_i32_0 = arith.constant 0 : i32
    return %arg0, %c0_i32 : i32, i32
  }
}

module attributes {stable_mosaic.version = 11 : i64} {
  func.func @_matmul_kernel(%arg0: i32, %arg1: i32, %arg2: memref<16x32xf32, #tpu.memory_space<vmem>>, %arg3: memref<32x32xf32, #tpu.memory_space<vmem>>, %arg4: memref<1x32xf32, #tpu.memory_space<vmem>>, %arg5: memref<16x32xf32, #tpu.memory_space<vmem>>) attributes {dimension_semantics = [#tpu.dimension_semantics<parallel>, #tpu.dimension_semantics<parallel>], iteration_bounds = array<i64: 1, 1>, scalar_prefetch = 0 : i64, scratch_operands = 0 : i64, tpu.core_type = #tpu.core_type<tc>, window_params = [{transform_indices = @transform_0, window_bounds = array<i64: 16, 32>}, {transform_indices = @transform_1, window_bounds = array<i64: 32, 32>}, {transform_indices = @transform_2, window_bounds = array<i64: 1, 32>}, {transform_indices = @transform_3, window_bounds = array<i64: 16, 32>}]} {
    %c0 = arith.constant 0 : index
    %c0_0 = arith.constant 0 : index
    %0 = vector.load %arg2[%c0, %c0_0] : memref<16x32xf32, #tpu.memory_space<vmem>>, vector<16x32xf32>
    %c0_1 = arith.constant 0 : index
    %c0_2 = arith.constant 0 : index
    %1 = vector.load %arg3[%c0_1, %c0_2] : memref<32x32xf32, #tpu.memory_space<vmem>>, vector<32x32xf32>
    %cst = arith.constant dense<0.000000e+00> : vector<16x32xf32>
    %2 = tpu.matmul %0, %1, %cst {dimension_numbers = #tpu.dot_dimension_numbers<[1], [0], [0], [1], [0, 0, 1, 1], [], []>} : vector<16x32xf32>, vector<32x32xf32>, vector<16x32xf32> -> vector<16x32xf32>
    %c0_3 = arith.constant 0 : index
    %c0_4 = arith.constant 0 : index
    %3 = vector.load %arg4[%c0_3, %c0_4] : memref<1x32xf32, #tpu.memory_space<vmem>>, vector<1x32xf32>
    %4 = vector.broadcast %3 : vector<1x32xf32> to vector<16x32xf32>
    %5 = arith.addf %2, %4 : vector<16x32xf32>
    %c0_5 = arith.constant 0 : index
    %c0_6 = arith.constant 0 : index
    %6 = vector.load %arg5[%c0_5, %c0_6] : memref<16x32xf32, #tpu.memory_space<vmem>>, vector<16x32xf32>
    tpu.vector_store %arg5[%c0_5, %c0_6], %5 {strides = array<i32>} : memref<16x32xf32, #tpu.memory_space<vmem>>, vector<16x32xf32>,
    return
  }
  func.func @transform_0(%arg0: i32, %arg1: i32) -> (i32, i32) {
    %c0_i32 = arith.constant 0 : i32
    %c0_i32_0 = arith.constant 0 : i32
    return %arg0, %c0_i32 : i32, i32
  }
  func.func @transform_1(%arg0: i32, %arg1: i32) -> (i32, i32) {
    %c0_i32 = arith.constant 0 : i32
    %c0_i32_0 = arith.constant 0 : i32
    return %c0_i32, %arg1 : i32, i32
  }
  func.func @transform_2(%arg0: i32, %arg1: i32) -> (i32, i32) {
    %c0_i32 = arith.constant 0 : i32
    %c0_i32_0 = arith.constant 0 : i32
    return %c0_i32, %arg1 : i32, i32
  }
  func.func @transform_3(%arg0: i32, %arg1: i32) -> (i32, i32) {
    %c0_i32 = arith.constant 0 : i32
    return %arg0, %arg1 : i32, i32
  }
}

module attributes {stable_mosaic.version = 11 : i64} {
  func.func @_matmul_kernel(%arg0: i32, %arg1: i32, %arg2: memref<24x32xf32, #tpu.memory_space<vmem>>, %arg3: memref<32x64xf32, #tpu.memory_space<vmem>>, %arg4: memref<1x64xf32, #tpu.memory_space<vmem>>, %arg5: memref<24x64xf32, #tpu.memory_space<vmem>>) attributes {dimension_semantics = [#tpu.dimension_semantics<parallel>, #tpu.dimension_semantics<parallel>], iteration_bounds = array<i64: 1, 1>, scalar_prefetch = 0 : i64, scratch_operands = 0 : i64, tpu.core_type = #tpu.core_type<tc>, window_params = [{transform_indices = @transform_0, window_bounds = array<i64: 24, 32>}, {transform_indices = @transform_1, window_bounds = array<i64: 32, 64>}, {transform_indices = @transform_2, window_bounds = array<i64: 1, 64>}, {transform_indices = @transform_3, window_bounds = array<i64: 24, 64>}]} {
    %c0 = arith.constant 0 : index
    %c0_0 = arith.constant 0 : index
    %0 = vector.load %arg2[%c0, %c0_0] : memref<24x32xf32, #tpu.memory_space<vmem>>, vector<24x32xf32>
    %c0_1 = arith.constant 0 : index
    %c0_2 = arith.constant 0 : index
    %1 = vector.load %arg3[%c0_1, %c0_2] : memref<32x64xf32, #tpu.memory_space<vmem>>, vector<32x64xf32>
    %cst = arith.constant dense<0.000000e+00> : vector<24x64xf32>
    %2 = tpu.matmul %0, %1, %cst {dimension_numbers = #tpu.dot_dimension_numbers<[1], [0], [0], [1], [0, 0, 1, 1], [], []>} : vector<24x32xf32>, vector<32x64xf32>, vector<24x64xf32> -> vector<24x64xf32>
    %c0_3 = arith.constant 0 : index
    %c0_4 = arith.constant 0 : index
    %3 = vector.load %arg4[%c0_3, %c0_4] : memref<1x64xf32, #tpu.memory_space<vmem>>, vector<1x64xf32>
    %4 = vector.broadcast %3 : vector<1x64xf32> to vector<24x64xf32>
    %5 = arith.addf %2, %4 : vector<24x64xf32>
    %c0_5 = arith.constant 0 : index
    %c0_6 = arith.constant 0 : index
    %6 = vector.load %arg5[%c0_5, %c0_6] : memref<24x64xf32, #tpu.memory_space<vmem>>, vector<24x64xf32>
    tpu.vector_store %arg5[%c0_5, %c0_6], %5 {strides = array<i32>} : memref<24x64xf32, #tpu.memory_space<vmem>>, vector<24x64xf32>,
    return
  }
  func.func @transform_0(%arg0: i32, %arg1: i32) -> (i32, i32) {
    %c0_i32 = arith.constant 0 : i32
    %c0_i32_0 = arith.constant 0 : i32
    return %arg0, %c0_i32 : i32, i32
  }
  func.func @transform_1(%arg0: i32, %arg1: i32) -> (i32, i32) {
    %c0_i32 = arith.constant 0 : i32
    %c0_i32_0 = arith.constant 0 : i32
    return %c0_i32, %arg1 : i32, i32
  }
  func.func @transform_2(%arg0: i32, %arg1: i32) -> (i32, i32) {
    %c0_i32 = arith.constant 0 : i32
    %c0_i32_0 = arith.constant 0 : i32
    return %c0_i32, %arg1 : i32, i32
  }
  func.func @transform_3(%arg0: i32, %arg1: i32) -> (i32, i32) {
    %c0_i32 = arith.constant 0 : i32
    return %arg0, %arg1 : i32, i32
  }
}

module attributes {stable_mosaic.version = 11 : i64} {
  func.func @_ffn_res_ln_kernel(%arg0: i32, %arg1: memref<16x32xf32, #tpu.memory_space<vmem>>, %arg2: memref<32x64xf32, #tpu.memory_space<vmem>>, %arg3: memref<1x64xf32, #tpu.memory_space<vmem>>, %arg4: memref<64x32xf32, #tpu.memory_space<vmem>>, %arg5: memref<1x32xf32, #tpu.memory_space<vmem>>, %arg6: memref<1x32xf32, #tpu.memory_space<vmem>>, %arg7: memref<1x32xf32, #tpu.memory_space<vmem>>, %arg8: memref<16x32xf32, #tpu.memory_space<vmem>>) attributes {dimension_semantics = [#tpu.dimension_semantics<parallel>], iteration_bounds = array<i64: 1>, scalar_prefetch = 0 : i64, scratch_operands = 0 : i64, tpu.core_type = #tpu.core_type<tc>, window_params = [{transform_indices = @transform_0, window_bounds = array<i64: 16, 32>}, {pipeline_mode = #tpu.pipeline_mode<synchronous>, transform_indices = @transform_1, window_bounds = array<i64: 32, 64>}, {pipeline_mode = #tpu.pipeline_mode<synchronous>, transform_indices = @transform_2, window_bounds = array<i64: 1, 64>}, {pipeline_mode = #tpu.pipeline_mode<synchronous>, transform_indices = @transform_3, window_bounds = array<i64: 64, 32>}, {pipeline_mode = #tpu.pipeline_mode<synchronous>, transform_indices = @transform_4, window_bounds = array<i64: 1, 32>}, {pipeline_mode = #tpu.pipeline_mode<synchronous>, transform_indices = @transform_5, window_bounds = array<i64: 1, 32>}, {pipeline_mode = #tpu.pipeline_mode<synchronous>, transform_indices = @transform_6, window_bounds = array<i64: 1, 32>}, {transform_indices = @transform_7, window_bounds = array<i64: 16, 32>}]} {
    %c0 = arith.constant 0 : index
    %c0_0 = arith.constant 0 : index
    %0 = vector.load %arg1[%c0, %c0_0] : memref<16x32xf32, #tpu.memory_space<vmem>>, vector<16x32xf32>
    %c0_1 = arith.constant 0 : index
    %c0_2 = arith.constant 0 : index
    %1 = vector.load %arg2[%c0_1, %c0_2] : memref<32x64xf32, #tpu.memory_space<vmem>>, vector<32x64xf32>
    %cst = arith.constant dense<0.000000e+00> : vector<16x64xf32>
    %2 = tpu.matmul %0, %1, %cst {dimension_numbers = #tpu.dot_dimension_numbers<[1], [0], [0], [1], [0, 0, 1, 1], [], []>} : vector<16x32xf32>, vector<32x64xf32>, vector<16x64xf32> -> vector<16x64xf32>
    %c0_3 = arith.constant 0 : index
    %c0_4 = arith.constant 0 : index
    %3 = vector.load %arg3[%c0_3, %c0_4] : memref<1x64xf32, #tpu.memory_space<vmem>>, vector<1x64xf32>
    %4 = vector.broadcast %3 : vector<1x64xf32> to vector<16x64xf32>
    %5 = arith.addf %2, %4 : vector<16x64xf32>
    %cst_5 = arith.constant 0.000000e+00 : f32
    %6 = vector.broadcast %cst_5 : f32 to vector<16x64xf32>
    %7 = arith.maximumf %5, %6 : vector<16x64xf32>
    %c0_6 = arith.constant 0 : index
    %c0_7 = arith.constant 0 : index
    %8 = vector.load %arg4[%c0_6, %c0_7] : memref<64x32xf32, #tpu.memory_space<vmem>>, vector<64x32xf32>
    %cst_8 = arith.constant dense<0.000000e+00> : vector<16x32xf32>
    %9 = tpu.matmul %7, %8, %cst_8 {dimension_numbers = #tpu.dot_dimension_numbers<[1], [0], [0], [1], [0, 0, 1, 1], [], []>} : vector<16x64xf32>, vector<64x32xf32>, vector<16x32xf32> -> vector<16x32xf32>
    %c0_9 = arith.constant 0 : index
    %c0_10 = arith.constant 0 : index
    %10 = vector.load %arg5[%c0_9, %c0_10] : memref<1x32xf32, #tpu.memory_space<vmem>>, vector<1x32xf32>
    %11 = vector.broadcast %10 : vector<1x32xf32> to vector<16x32xf32>
    %12 = arith.addf %9, %11 : vector<16x32xf32>
    %13 = arith.addf %12, %0 : vector<16x32xf32>
    %cst_11 = arith.constant dense<0.000000e+00> : vector<16xf32>
    %14 = vector.multi_reduction <add>, %13, %cst_11 [1] : vector<16x32xf32> to vector<16xf32>
    %15 = vector.shape_cast %14 : vector<16xf32> to vector<16x1xf32>
    %cst_12 = arith.constant 3.200000e+01 : f32
    %16 = vector.broadcast %cst_12 : f32 to vector<16x1xf32>
    %17 = arith.divf %15, %16 : vector<16x1xf32>
    %18 = vector.broadcast %17 : vector<16x1xf32> to vector<16x32xf32>
    %19 = arith.subf %13, %18 : vector<16x32xf32>
    %20 = arith.mulf %19, %19 : vector<16x32xf32>
    %cst_13 = arith.constant dense<0.000000e+00> : vector<16xf32>
    %21 = vector.multi_reduction <add>, %20, %cst_13 [1] : vector<16x32xf32> to vector<16xf32>
    %22 = vector.shape_cast %21 : vector<16xf32> to vector<16x1xf32>
    %cst_14 = arith.constant 3.200000e+01 : f32
    %23 = vector.broadcast %cst_14 : f32 to vector<16x1xf32>
    %24 = arith.divf %22, %23 : vector<16x1xf32>
    %25 = vector.broadcast %17 : vector<16x1xf32> to vector<16x32xf32>
    %26 = arith.subf %13, %25 : vector<16x32xf32>
    %cst_15 = arith.constant 9.99999974E-6 : f32
    %27 = vector.broadcast %cst_15 : f32 to vector<16x1xf32>
    %28 = arith.addf %24, %27 : vector<16x1xf32>
    %29 = math.rsqrt %28 : vector<16x1xf32>
    %30 = vector.broadcast %29 : vector<16x1xf32> to vector<16x32xf32>
    %31 = arith.mulf %26, %30 : vector<16x32xf32>
    %c0_16 = arith.constant 0 : index
    %c0_17 = arith.constant 0 : index
    %32 = vector.load %arg6[%c0_16, %c0_17] : memref<1x32xf32, #tpu.memory_space<vmem>>, vector<1x32xf32>
    %33 = vector.broadcast %32 : vector<1x32xf32> to vector<16x32xf32>
    %34 = arith.mulf %31, %33 : vector<16x32xf32>
    %c0_18 = arith.constant 0 : index
    %c0_19 = arith.constant 0 : index
    %35 = vector.load %arg7[%c0_18, %c0_19] : memref<1x32xf32, #tpu.memory_space<vmem>>, vector<1x32xf32>
    %36 = vector.broadcast %35 : vector<1x32xf32> to vector<16x32xf32>
    %37 = arith.addf %34, %36 : vector<16x32xf32>
    %c0_20 = arith.constant 0 : index
    %c0_21 = arith.constant 0 : index
    %38 = vector.load %arg8[%c0_20, %c0_21] : memref<16x32xf32, #tpu.memory_space<vmem>>, vector<16x32xf32>
    tpu.vector_store %arg8[%c0_20, %c0_21], %37 {strides = array<i32>} : memref<16x32xf32, #tpu.memory_space<vmem>>, vector<16x32xf32>,
    return
  }
  func.func @transform_0(%arg0: i32) -> (i32, i32) {
    %c0_i32 = arith.constant 0 : i32
    %c0_i32_0 = arith.constant 0 : i32
    return %arg0, %c0_i32 : i32, i32
  }
  func.func @transform_1(%arg0: i32) -> (i32, i32) {
    %c0_i32 = arith.constant 0 : i32
    %c0_i32_0 = arith.constant 0 : i32
    %c0_i32_1 = arith.constant 0 : i32
    return %c0_i32, %c0_i32_0 : i32, i32
  }
  func.func @transform_2(%arg0: i32) -> (i32, i32) {
    %c0_i32 = arith.constant 0 : i32
    %c0_i32_0 = arith.constant 0 : i32
    %c0_i32_1 = arith.constant 0 : i32
    return %c0_i32, %c0_i32_0 : i32, i32
  }
  func.func @transform_3(%arg0: i32) -> (i32, i32) {
    %c0_i32 = arith.constant 0 : i32
    %c0_i32_0 = arith.constant 0 : i32
    %c0_i32_1 = arith.constant 0 : i32
    return %c0_i32, %c0_i32_0 : i32, i32
  }
  func.func @transform_4(%arg0: i32) -> (i32, i32) {
    %c0_i32 = arith.constant 0 : i32
    %c0_i32_0 = arith.constant 0 : i32
    %c0_i32_1 = arith.constant 0 : i32
    return %c0_i32, %c0_i32_0 : i32, i32
  }
  func.func @transform_5(%arg0: i32) -> (i32, i32) {
    %c0_i32 = arith.constant 0 : i32
    %c0_i32_0 = arith.constant 0 : i32
    %c0_i32_1 = arith.constant 0 : i32
    return %c0_i32, %c0_i32_0 : i32, i32
  }
  func.func @transform_6(%arg0: i32) -> (i32, i32) {
    %c0_i32 = arith.constant 0 : i32
    %c0_i32_0 = arith.constant 0 : i32
    %c0_i32_1 = arith.constant 0 : i32
    return %c0_i32, %c0_i32_0 : i32, i32
  }
  func.func @transform_7(%arg0: i32) -> (i32, i32) {
    %c0_i32 = arith.constant 0 : i32
    %c0_i32_0 = arith.constant 0 : i32
    return %arg0, %c0_i32 : i32, i32
  }
}

module attributes {stable_mosaic.version = 11 : i64} {
  func.func @_matmul_kernel(%arg0: i32, %arg1: i32, %arg2: memref<16x32xf32, #tpu.memory_space<vmem>>, %arg3: memref<32x64xf32, #tpu.memory_space<vmem>>, %arg4: memref<1x64xf32, #tpu.memory_space<vmem>>, %arg5: memref<16x64xf32, #tpu.memory_space<vmem>>) attributes {dimension_semantics = [#tpu.dimension_semantics<parallel>, #tpu.dimension_semantics<parallel>], iteration_bounds = array<i64: 1, 1>, scalar_prefetch = 0 : i64, scratch_operands = 0 : i64, tpu.core_type = #tpu.core_type<tc>, window_params = [{transform_indices = @transform_0, window_bounds = array<i64: 16, 32>}, {transform_indices = @transform_1, window_bounds = array<i64: 32, 64>}, {transform_indices = @transform_2, window_bounds = array<i64: 1, 64>}, {transform_indices = @transform_3, window_bounds = array<i64: 16, 64>}]} {
    %c0 = arith.constant 0 : index
    %c0_0 = arith.constant 0 : index
    %0 = vector.load %arg2[%c0, %c0_0] : memref<16x32xf32, #tpu.memory_space<vmem>>, vector<16x32xf32>
    %c0_1 = arith.constant 0 : index
    %c0_2 = arith.constant 0 : index
    %1 = vector.load %arg3[%c0_1, %c0_2] : memref<32x64xf32, #tpu.memory_space<vmem>>, vector<32x64xf32>
    %cst = arith.constant dense<0.000000e+00> : vector<16x64xf32>
    %2 = tpu.matmul %0, %1, %cst {dimension_numbers = #tpu.dot_dimension_numbers<[1], [0], [0], [1], [0, 0, 1, 1], [], []>} : vector<16x32xf32>, vector<32x64xf32>, vector<16x64xf32> -> vector<16x64xf32>
    %c0_3 = arith.constant 0 : index
    %c0_4 = arith.constant 0 : index
    %3 = vector.load %arg4[%c0_3, %c0_4] : memref<1x64xf32, #tpu.memory_space<vmem>>, vector<1x64xf32>
    %4 = vector.broadcast %3 : vector<1x64xf32> to vector<16x64xf32>
    %5 = arith.addf %2, %4 : vector<16x64xf32>
    %c0_5 = arith.constant 0 : index
    %c0_6 = arith.constant 0 : index
    %6 = vector.load %arg5[%c0_5, %c0_6] : memref<16x64xf32, #tpu.memory_space<vmem>>, vector<16x64xf32>
    tpu.vector_store %arg5[%c0_5, %c0_6], %5 {strides = array<i32>} : memref<16x64xf32, #tpu.memory_space<vmem>>, vector<16x64xf32>,
    return
  }
  func.func @transform_0(%arg0: i32, %arg1: i32) -> (i32, i32) {
    %c0_i32 = arith.constant 0 : i32
    %c0_i32_0 = arith.constant 0 : i32
    return %arg0, %c0_i32 : i32, i32
  }
  func.func @transform_1(%arg0: i32, %arg1: i32) -> (i32, i32) {
    %c0_i32 = arith.constant 0 : i32
    %c0_i32_0 = arith.constant 0 : i32
    return %c0_i32, %arg1 : i32, i32
  }
  func.func @transform_2(%arg0: i32, %arg1: i32) -> (i32, i32) {
    %c0_i32 = arith.constant 0 : i32
    %c0_i32_0 = arith.constant 0 : i32
    return %c0_i32, %arg1 : i32, i32
  }
  func.func @transform_3(%arg0: i32, %arg1: i32) -> (i32, i32) {
    %c0_i32 = arith.constant 0 : i32
    return %arg0, %arg1 : i32, i32
  }
}

module attributes {stable_mosaic.version = 11 : i64} {
  func.func @_mha_kernel(%arg0: i32, %arg1: memref<2xi32, #tpu.memory_space<smem>>, %arg2: memref<1x4x8x8xf32, #tpu.memory_space<vmem>>, %arg3: memref<1x4x12x8xf32, #tpu.memory_space<vmem>>, %arg4: memref<1x4x12x8xf32, #tpu.memory_space<vmem>>, %arg5: memref<1x4x8x8xf32, #tpu.memory_space<vmem>>) attributes {dimension_semantics = [#tpu.dimension_semantics<parallel>], iteration_bounds = array<i64: 2>, scalar_prefetch = 1 : i64, scratch_operands = 0 : i64, tpu.core_type = #tpu.core_type<tc>, window_params = [{transform_indices = @transform_0, window_bounds = array<i64: 1, 4, 8, 8>}, {transform_indices = @transform_1, window_bounds = array<i64: 1, 4, 12, 8>}, {transform_indices = @transform_2, window_bounds = array<i64: 1, 4, 12, 8>}, {transform_indices = @transform_3, window_bounds = array<i64: 1, 4, 8, 8>}]} {
    %c0 = arith.constant 0 : index
    %c0_0 = arith.constant 0 : index
    %c0_1 = arith.constant 0 : index
    %c0_2 = arith.constant 0 : index
    %0 = vector.load %arg2[%c0, %c0_0, %c0_1, %c0_2] : memref<1x4x8x8xf32, #tpu.memory_space<vmem>>, vector<1x4x8x8xf32>
    %1 = vector.shape_cast %0 : vector<1x4x8x8xf32> to vector<4x8x8xf32>
    %c0_3 = arith.constant 0 : index
    %c0_4 = arith.constant 0 : index
    %c0_5 = arith.constant 0 : index
    %c0_6 = arith.constant 0 : index
    %2 = vector.load %arg3[%c0_3, %c0_4, %c0_5, %c0_6] : memref<1x4x12x8xf32, #tpu.memory_space<vmem>>, vector<1x4x12x8xf32>
    %3 = vector.shape_cast %2 : vector<1x4x12x8xf32> to vector<4x12x8xf32>
    %c0_7 = arith.constant 0 : index
    %c0_8 = arith.constant 0 : index
    %c0_9 = arith.constant 0 : index
    %c0_10 = arith.constant 0 : index
    %4 = vector.load %arg4[%c0_7, %c0_8, %c0_9, %c0_10] : memref<1x4x12x8xf32, #tpu.memory_space<vmem>>, vector<1x4x12x8xf32>
    %5 = vector.shape_cast %4 : vector<1x4x12x8xf32> to vector<4x12x8xf32>
    %cst = arith.constant dense<0.000000e+00> : vector<4x8x12xf32>
    %6 = tpu.matmul %1, %3, %cst {dimension_numbers = #tpu.dot_dimension_numbers<[2], [2], [1], [1], [0, 0, 0, 1, 1, 1], [0], [0]>} : vector<4x8x8xf32>, vector<4x12x8xf32>, vector<4x8x12xf32> -> vector<4x8x12xf32>
    %cst_11 = arith.constant 0.353553385 : f32
    %7 = vector.broadcast %cst_11 : f32 to vector<4x8x12xf32>
    %8 = arith.mulf %6, %7 : vector<4x8x12xf32>
    %9 = tpu.iota {dimensions = array<i32: 2>} : vector<4x8x12xi32>
    %10 = arith.index_cast %arg0 : i32 to index
    %11 = memref.load %arg1[%10] : memref<2xi32, #tpu.memory_space<smem>>
    %12 = vector.broadcast %11 : i32 to vector<4x8x12xi32>
    %13 = arith.cmpi sge, %9, %12 : vector<4x8x12xi32>
    %cst_12 = arith.constant -1.000000e+30 : f32
    %14 = vector.broadcast %cst_12 : f32 to vector<4x8x12xf32>
    %15 = arith.select %13, %14, %8 : vector<4x8x12xi1>, vector<4x8x12xf32>
    %cst_13 = arith.constant dense<0xFF800000> : vector<4x8xf32>
    %16 = vector.multi_reduction <maximumf>, %15, %cst_13 [2] : vector<4x8x12xf32> to vector<4x8xf32>
    %17 = vector.shape_cast %16 : vector<4x8xf32> to vector<4x8x1xf32>
    %18 = vector.broadcast %17 : vector<4x8x1xf32> to vector<4x8x12xf32>
    %19 = arith.subf %15, %18 : vector<4x8x12xf32>
    %20 = math.exp %19 : vector<4x8x12xf32>
    %cst_14 = arith.constant dense<0.000000e+00> : vector<4x8xf32>
    %21 = vector.multi_reduction <add>, %20, %cst_14 [2] : vector<4x8x12xf32> to vector<4x8xf32>
    %22 = vector.shape_cast %21 : vector<4x8xf32> to vector<4x8x1xf32>
    %23 = tpu.reciprocal %22 {approx = true} : vector<4x8x1xf32> -> vector<4x8x1xf32>
    %24 = vector.broadcast %23 : vector<4x8x1xf32> to vector<4x8x12xf32>
    %25 = arith.mulf %20, %24 : vector<4x8x12xf32>
    %cst_15 = arith.constant dense<0.000000e+00> : vector<4x8x8xf32>
    %26 = tpu.matmul %25, %5, %cst_15 {dimension_numbers = #tpu.dot_dimension_numbers<[2], [1], [1], [2], [0, 0, 0, 1, 1, 2], [0], [0]>} : vector<4x8x12xf32>, vector<4x12x8xf32>, vector<4x8x8xf32> -> vector<4x8x8xf32>
    %c0_16 = arith.constant 0 : index
    %c0_17 = arith.constant 0 : index
    %c0_18 = arith.constant 0 : index
    %c0_19 = arith.constant 0 : index
    %27 = vector.load %arg5[%c0_16, %c0_17, %c0_18, %c0_19] : memref<1x4x8x8xf32, #tpu.memory_space<vmem>>, vector<1x4x8x8xf32>
    %28 = vector.shape_cast %27 : vector<1x4x8x8xf32> to vector<4x8x8xf32>
    %29 = vector.shape_cast %26 : vector<4x8x8xf32> to vector<1x4x8x8xf32>
    tpu.vector_store %arg5[%c0_16, %c0_17, %c0_18, %c0_19], %29 {strides = array<i32>} : memref<1x4x8x8xf32, #tpu.memory_space<vmem>>, vector<1x4x8x8xf32>,
    return
  }
  func.func @transform_0(%arg0: i32, %arg1: memref<2xi32, #tpu.memory_space<smem>>) -> (i32, i32, i32, i32) {
    %c0_i32 = arith.constant 0 : i32
    %c0_i32_0 = arith.constant 0 : i32
    %c0_i32_1 = arith.constant 0 : i32
    %c0_i32_2 = arith.constant 0 : i32
    return %arg0, %c0_i32, %c0_i32_0, %c0_i32_1 : i32, i32, i32, i32
  }
  func.func @transform_1(%arg0: i32, %arg1: memref<2xi32, #tpu.memory_space<smem>>) -> (i32, i32, i32, i32) {
    %c0_i32 = arith.constant 0 : i32
    %c0_i32_0 = arith.constant 0 : i32
    %c0_i32_1 = arith.constant 0 : i32
    %c0_i32_2 = arith.constant 0 : i32
    return %arg0, %c0_i32, %c0_i32_0, %c0_i32_1 : i32, i32, i32, i32
  }
  func.func @transform_2(%arg0: i32, %arg1: memref<2xi32, #tpu.memory_space<smem>>) -> (i32, i32, i32, i32) {
    %c0_i32 = arith.constant 0 : i32
    %c0_i32_0 = arith.constant 0 : i32
    %c0_i32_1 = arith.constant 0 : i32
    %c0_i32_2 = arith.constant 0 : i32
    return %arg0, %c0_i32, %c0_i32_0, %c0_i32_1 : i32, i32, i32, i32
  }
  func.func @transform_3(%arg0: i32, %arg1: memref<2xi32, #tpu.memory_space<smem>>) -> (i32, i32, i32, i32) {
    %c0_i32 = arith.constant 0 : i32
    %c0_i32_0 = arith.constant 0 : i32
    %c0_i32_1 = arith.constant 0 : i32
    %c0_i32_2 = arith.constant 0 : i32
    return %arg0, %c0_i32, %c0_i32_0, %c0_i32_1 : i32, i32, i32, i32
  }
}

</mosaic_0001>

<llo_original>
// kernel: decoder_forward.19
$region0: #{decoder_forward.19}
  #allocation0 [shape = 'u32[]', space=smem, size = 0x4, offset = 0x4, fixed_abs, tag = 'smem constant byte address 0x4 - core index']
  #allocation1 [shape = 'u32[144,128]{1,0:T(1,128)}', space=vmem, size = 0x12000, scoped, tag = 'internal scratch']
  %s0 = inlined_call_operand.vmem [shape: f32[16,32], index: 0, kind: input, shape index: {}]
  %s1 = inlined_call_operand.vmem [shape: f32[32,32], index: 1, kind: input, shape index: {}]
  %s2 = inlined_call_operand.vmem [shape: f32[1,32], index: 2, kind: input, shape index: {}]
  %s3 = inlined_call_operand.vmem [shape: f32[16,32], index: 3, kind: input, shape index: {}]
  %s4 = inlined_call_operand.vmem [shape: f32[1,32], index: 4, kind: input, shape index: {}]
  %s5 = inlined_call_operand.vmem [shape: f32[1,32], index: 5, kind: input, shape index: {}]
  %s6 = inlined_call_operand.vmem [shape: f32[16,32], index: 6, kind: output, shape index: {}]
  %s7 = sld [smem:[#allocation0]]
  $region34: #{decoder_forward.19} parent=0
    _
  %s9 = ssub.s32 1, %s7
  %s10 = scalar_select 0, %s9, %s7
  // Predicated region
  $region2: #{decoder_forward.19} parent=0 // pred_check
    _
  $region3: #{decoder_forward.19} parent=0 // pred_check_branch
    %12 = sbr.rel (0) target = $region5
  $region4: #{decoder_forward.19} parent=0 // pred_region
    _
  $region5: #{decoder_forward.19} parent=0 // pred_fallthru
    _
  // Predicated region
  $region6: #{decoder_forward.19} parent=0 // pred_check
    _
  $region7: #{decoder_forward.19} parent=0 // pred_check_branch
    %14 = sbr.rel (0) target = $region9
  $region8: #{decoder_forward.19} parent=0 // pred_region
    _
  $region9: #{decoder_forward.19} parent=0 // pred_fallthru
    _
  // Predicated region
  $region10: #{decoder_forward.19} parent=0 // pred_check
    _
  $region11: #{decoder_forward.19} parent=0 // pred_check_branch
    %16 = sbr.rel (0) target = $region13
  $region12: #{decoder_forward.19} parent=0 // pred_region
    _
  $region13: #{decoder_forward.19} parent=0 // pred_fallthru
    _
  // Predicated region
  $region14: #{decoder_forward.19} parent=0 // pred_check
    _
  $region15: #{decoder_forward.19} parent=0 // pred_check_branch
    %18 = sbr.rel (0) target = $region17
  $region16: #{decoder_forward.19} parent=0 // pred_region
    _
  $region17: #{decoder_forward.19} parent=0 // pred_fallthru
    _
  // Predicated region
  $region18: #{decoder_forward.19} parent=0 // pred_check
    _
  $region19: #{decoder_forward.19} parent=0 // pred_check_branch
    %20 = sbr.rel (0) target = $region21
  $region20: #{decoder_forward.19} parent=0 // pred_region
    _
  $region21: #{decoder_forward.19} parent=0 // pred_fallthru
    _
  // Predicated region
  $region22: #{decoder_forward.19} parent=0 // pred_check
    _
  $region23: #{decoder_forward.19} parent=0 // pred_check_branch
    %22 = sbr.rel (0) target = $region25
  $region24: #{decoder_forward.19} parent=0 // pred_region
    _
  $region25: #{decoder_forward.19} parent=0 // pred_fallthru
    _
  %v23 = vld [vmem:[%s0] sm:$0xff]
  %v24 = vld [vmem:[%s0 + $0x8] sm:$0xff]
  %v25 = vld [vmem:[%s1] sm:$0xff]
  %v26 = vld [vmem:[%s1 + $0x8] sm:$0xff]
  %v27 = vld [vmem:[%s1 + $0x10] sm:$0xff]
  %v28 = vld [vmem:[%s1 + $0x18] sm:$0xff]
  %v29 = vld [vmem:[%s2] sm:$0x1]
  %v31 = vlaneseq
  %v32 = vshrl.u32 %v31, 7
  %v33 = vsub.s32 0, %v32
  %v34 = vrot.slane %v29, %v33
  %vm36 = vcmask 261120
  %v38 = vsel %vm36, %v23, 0
  %v41 = vsel %vm36, %v24, 0
  %43 = vmatprep.subr.mxu0 0.0
  %44 = vmatpush1.msra.mxu0 %v25
  %45 = vmatprep.subr.mxu0 0.0
  %46 = vmatpush1.msra.mxu0 %v26
  %47 = vmatprep.subr.mxu0 0.0
  %48 = vmatpush1.msra.mxu0 %v27
  %49 = vmatprep.subr.mxu0 0.0
  %50 = vmatpush1.msra.mxu0 %v28
  %51 = vmatprep.subr.mxu0 0.0
  %52 = vmatpush1.msra.mxu0 0.0
  %53 = vmatprep.subr.mxu0 0.0
  %54 = vmatpush1.msra.mxu0 0.0
  %55 = vmatprep.subr.mxu0 0.0
  %56 = vmatpush1.msra.mxu0 0.0
  %57 = vmatprep.subr.mxu0 0.0
  %58 = vmatpush1.msra.mxu0 0.0
  %59 = vmatprep.subr.mxu0 0.0
  %60 = vmatpush1.msra.mxu0 0.0
  %61 = vmatprep.subr.mxu0 0.0
  %62 = vmatpush1.msra.mxu0 0.0
  %63 = vmatprep.subr.mxu0 0.0
  %64 = vmatpush1.msra.mxu0 0.0
  %65 = vmatprep.subr.mxu0 0.0
  %66 = vmatpush1.msra.mxu0 0.0
  %67 = vmatprep.subr.mxu0 0.0
  %68 = vmatpush1.msra.mxu0 0.0
  %69 = vmatprep.subr.mxu0 0.0
  %70 = vmatpush1.msra.mxu0 0.0
  %71 = vmatprep.subr.mxu0 0.0
  %72 = vmatpush1.msra.mxu0 0.0
  %73 = vmatprep.subr.mxu0 0.0
  %74 = vmatpush1.msra.mxu0 0.0
  %75 = vmatprep.subr.mxu0 0.0
  %76 = vmatpush1.msra.mxu0 0.0
  %77 = vmatprep.subr.mxu0 0.0
  %78 = vmatpush1.msra.mxu0 0.0
  %79 = vmatprep.subr.mxu0 0.0
  %80 = vmatpush1.msra.mxu0 0.0
  %81 = vmatprep.subr.mxu0 0.0
  %82 = vmatpush1.msra.mxu0 0.0
  %83 = vmatprep.subr.mxu0 0.0
  %84 = vmatpush1.msra.mxu0 0.0
  %85 = vmatprep.subr.mxu0 0.0
  %86 = vmatpush1.msra.mxu0 0.0
  %87 = vmatprep.subr.mxu0 0.0
  %88 = vmatpush1.msra.mxu0 0.0
  %89 = vmatprep.subr.mxu0 0.0
  %90 = vmatpush1.msra.mxu0 0.0
  %91 = vmatprep.subr.mxu0 0.0
  %92 = vmatpush1.msra.mxu0 0.0
  %93 = vmatprep.subr.mxu0 0.0
  %94 = vmatpush1.msra.mxu0 0.0
  %95 = vmatprep.subr.mxu0 0.0
  %96 = vmatpush1.msra.mxu0 0.0
  %97 = vmatprep.subr.mxu0 0.0
  %98 = vmatpush1.msra.mxu0 0.0
  %99 = vmatprep.subr.mxu0 0.0
  %100 = vmatpush1.msra.mxu0 0.0
  %101 = vmatprep.subr.mxu0 0.0
  %102 = vmatpush1.msra.mxu0 0.0
  %103 = vmatprep.subr.mxu0 0.0
  %104 = vmatpush1.msra.mxu0 0.0
  %105 = vmatprep.subr.mxu0 0.0
  %106 = vmatpush1.msra.mxu0 0.0
  %107 = vmatprep.mubr.f32.mxu0 0.0
  %108 = vmatmul.mubr.f32.gmra.mrb[0].mxu0 %v38
  %v109 = vpop.f32.mrb[0].mxu0
  %v110 = vadd.f32 %v34, %v109
  %v111 = vpop.f32.mrb[0].mxu0
  %112 = vmatprep.mubr.f32.mxu0 0.0
  %113 = vmatmul.mubr.f32.gmra.mrb[0].mxu0 %v41
  %v114 = vpop.f32.mrb[0].mxu0
  %v115 = vadd.f32 %v34, %v114
  %v116 = vpop.f32.mrb[0].mxu0
  %117 = vdwg.mxu0
  %v118 = vld [vmem:[%s3] sm:$0xff]
  %v119 = vld [vmem:[%s3 + $0x8] sm:$0xff]
  %v120 = vadd.f32 %v110, %v118
  %v121 = vadd.f32 %v115, %v119
  %v122 = vsel %vm36, %v120, 0.0
  %123 = vadd.xlane.f32.xlu0 %v122
  %v124 = vpop.xlane.xlu0 %123
  %v125 = vsel %vm36, %v121, 0.0
  %126 = vadd.xlane.f32.xlu0 %v125
  %v127 = vpop.xlane.xlu0 %126
  %v128 = vrcp.pop 32.0
  %v129 = vmul.f32 %v124, %v128
  %v130 = vmul.f32 %v127, %v128
  %v131 = vsub.f32 %v120, %v129
  %v132 = vsub.f32 %v121, %v130
  %v133 = vmul.f32 %v131, %v131
  %v134 = vmul.f32 %v132, %v132
  %v135 = vsel %vm36, %v133, 0.0
  %136 = vadd.xlane.f32.xlu0 %v135
  %v137 = vpop.xlane.xlu0 %136
  %v138 = vsel %vm36, %v134, 0.0
  %139 = vadd.xlane.f32.xlu0 %v138
  %v140 = vpop.xlane.xlu0 %139
  %v141 = vmul.f32 %v137, %v128
  %v142 = vmul.f32 %v140, %v128
  %v143 = vadd.f32 %v141, 1e-05
  %v144 = vadd.f32 %v142, 1e-05
  %v145 = vrsqrt.pop %v143
  %v146 = vrsqrt.pop %v144
  %v147 = vmul.f32 %v131, %v145
  %v148 = vmul.f32 %v132, %v146
  %v149 = vld [vmem:[%s4] sm:$0x1]
  %v151 = vlaneseq
  %v152 = vshrl.u32 %v151, 7
  %v153 = vsub.s32 0, %v152
  %v154 = vrot.slane %v149, %v153
  %v156 = vmul.f32 %v147, %v154
  %v157 = vmul.f32 %v148, %v154
  %v158 = vld [vmem:[%s5] sm:$0x1]
  %v160 = vlaneseq
  %v161 = vshrl.u32 %v160, 7
  %v162 = vsub.s32 0, %v161
  %v163 = vrot.slane %v158, %v162
  %v165 = vadd.f32 %v156, %v163
  %v166 = vadd.f32 %v157, %v163
  %167 = vst.msk [vmem:[%s6] sm:$0xff] %vm36, %v165
  %168 = vst.msk [vmem:[%s6 + $0x8] sm:$0xff] %vm36, %v166
  // Predicated region
  $region26: #{decoder_forward.19} parent=0 // pred_check
    _
  $region27: #{decoder_forward.19} parent=0 // pred_check_branch
    %170 = sbr.rel (0) target = $region29
  $region28: #{decoder_forward.19} parent=0 // pred_region
    _
  $region29: #{decoder_forward.19} parent=0 // pred_fallthru
    _
  // Predicated region
  $region30: #{decoder_forward.19} parent=0 // pred_check
    _
  $region31: #{decoder_forward.19} parent=0 // pred_check_branch
    %172 = sbr.rel (0) target = $region33
  $region32: #{decoder_forward.19} parent=0 // pred_region
    _
  $region33: #{decoder_forward.19} parent=0 // pred_fallthru
    _

// kernel: decoder_forward.17
$region0: #{decoder_forward.17}
  #allocation0 [shape = 'u32[]', space=smem, size = 0x4, offset = 0x4, fixed_abs, tag = 'smem constant byte address 0x4 - core index']
  #allocation1 [shape = 'u32[144,128]{1,0:T(1,128)}', space=vmem, size = 0x12000, scoped, tag = 'internal scratch']
  %s0 = inlined_call_operand.vmem [shape: f32[16,32], index: 0, kind: input, shape index: {}]
  %s1 = inlined_call_operand.vmem [shape: f32[32,96], index: 1, kind: input, shape index: {}]
  %s2 = inlined_call_operand.vmem [shape: f32[1,96], index: 2, kind: input, shape index: {}]
  %s3 = inlined_call_operand.vmem [shape: f32[16,96], index: 3, kind: output, shape index: {}]
  %s4 = sld [smem:[#allocation0]]
  $region22: #{decoder_forward.17} parent=0
    _
  %s6 = ssub.s32 1, %s4
  %s7 = scalar_select 0, %s6, %s4
  // Predicated region
  $region2: #{decoder_forward.17} parent=0 // pred_check
    _
  $region3: #{decoder_forward.17} parent=0 // pred_check_branch
    %9 = sbr.rel (0) target = $region5
  $region4: #{decoder_forward.17} parent=0 // pred_region
    _
  $region5: #{decoder_forward.17} parent=0 // pred_fallthru
    _
  // Predicated region
  $region6: #{decoder_forward.17} parent=0 // pred_check
    _
  $region7: #{decoder_forward.17} parent=0 // pred_check_branch
    %11 = sbr.rel (0) target = $region9
  $region8: #{decoder_forward.17} parent=0 // pred_region
    _
  $region9: #{decoder_forward.17} parent=0 // pred_fallthru
    _
  // Predicated region
  $region10: #{decoder_forward.17} parent=0 // pred_check
    _
  $region11: #{decoder_forward.17} parent=0 // pred_check_branch
    %13 = sbr.rel (0) target = $region13
  $region12: #{decoder_forward.17} parent=0 // pred_region
    _
  $region13: #{decoder_forward.17} parent=0 // pred_fallthru
    _
  %v14 = vld [vmem:[%s0] sm:$0xff]
  %v15 = vld [vmem:[%s0 + $0x8] sm:$0xff]
  %v16 = vld [vmem:[%s1] sm:$0xff]
  %v17 = vld [vmem:[%s1 + $0x8] sm:$0xff]
  %v18 = vld [vmem:[%s1 + $0x10] sm:$0xff]
  %v19 = vld [vmem:[%s1 + $0x18] sm:$0xff]
  %v20 = vld [vmem:[%s2] sm:$0x1]
  %v22 = vlaneseq
  %v23 = vshrl.u32 %v22, 7
  %v24 = vsub.s32 0, %v23
  %v25 = vrot.slane %v20, %v24
  %vm27 = vcmask 261120
  %v29 = vsel %vm27, %v14, 0
  %v32 = vsel %vm27, %v15, 0
  %34 = vmatprep.subr.mxu0 0.0
  %35 = vmatpush1.msra.mxu0 %v16
  %36 = vmatprep.subr.mxu0 0.0
  %37 = vmatpush1.msra.mxu0 %v17
  %38 = vmatprep.subr.mxu0 0.0
  %39 = vmatpush1.msra.mxu0 %v18
  %40 = vmatprep.subr.mxu0 0.0
  %41 = vmatpush1.msra.mxu0 %v19
  %42 = vmatprep.subr.mxu0 0.0
  %43 = vmatpush1.msra.mxu0 0.0
  %44 = vmatprep.subr.mxu0 0.0
  %45 = vmatpush1.msra.mxu0 0.0
  %46 = vmatprep.subr.mxu0 0.0
  %47 = vmatpush1.msra.mxu0 0.0
  %48 = vmatprep.subr.mxu0 0.0
  %49 = vmatpush1.msra.mxu0 0.0
  %50 = vmatprep.subr.mxu0 0.0
  %51 = vmatpush1.msra.mxu0 0.0
  %52 = vmatprep.subr.mxu0 0.0
  %53 = vmatpush1.msra.mxu0 0.0
  %54 = vmatprep.subr.mxu0 0.0
  %55 = vmatpush1.msra.mxu0 0.0
  %56 = vmatprep.subr.mxu0 0.0
  %57 = vmatpush1.msra.mxu0 0.0
  %58 = vmatprep.subr.mxu0 0.0
  %59 = vmatpush1.msra.mxu0 0.0
  %60 = vmatprep.subr.mxu0 0.0
  %61 = vmatpush1.msra.mxu0 0.0
  %62 = vmatprep.subr.mxu0 0.0
  %63 = vmatpush1.msra.mxu0 0.0
  %64 = vmatprep.subr.mxu0 0.0
  %65 = vmatpush1.msra.mxu0 0.0
  %66 = vmatprep.subr.mxu0 0.0
  %67 = vmatpush1.msra.mxu0 0.0
  %68 = vmatprep.subr.mxu0 0.0
  %69 = vmatpush1.msra.mxu0 0.0
  %70 = vmatprep.subr.mxu0 0.0
  %71 = vmatpush1.msra.mxu0 0.0
  %72 = vmatprep.subr.mxu0 0.0
  %73 = vmatpush1.msra.mxu0 0.0
  %74 = vmatprep.subr.mxu0 0.0
  %75 = vmatpush1.msra.mxu0 0.0
  %76 = vmatprep.subr.mxu0 0.0
  %77 = vmatpush1.msra.mxu0 0.0
  %78 = vmatprep.subr.mxu0 0.0
  %79 = vmatpush1.msra.mxu0 0.0
  %80 = vmatprep.subr.mxu0 0.0
  %81 = vmatpush1.msra.mxu0 0.0
  %82 = vmatprep.subr.mxu0 0.0
  %83 = vmatpush1.msra.mxu0 0.0
  %84 = vmatprep.subr.mxu0 0.0
  %85 = vmatpush1.msra.mxu0 0.0
  %86 = vmatprep.subr.mxu0 0.0
  %87 = vmatpush1.msra.mxu0 0.0
  %88 = vmatprep.subr.mxu0 0.0
  %89 = vmatpush1.msra.mxu0 0.0
  %90 = vmatprep.subr.mxu0 0.0
  %91 = vmatpush1.msra.mxu0 0.0
  %92 = vmatprep.subr.mxu0 0.0
  %93 = vmatpush1.msra.mxu0 0.0
  %94 = vmatprep.subr.mxu0 0.0
  %95 = vmatpush1.msra.mxu0 0.0
  %96 = vmatprep.subr.mxu0 0.0
  %97 = vmatpush1.msra.mxu0 0.0
  %98 = vmatprep.mubr.f32.mxu0 0.0
  %99 = vmatmul.mubr.f32.gmra.mrb[0].mxu0 %v29
  %v100 = vpop.f32.mrb[0].mxu0
  %v101 = vadd.f32 %v25, %v100
  %v102 = vpop.f32.mrb[0].mxu0
  %103 = vmatprep.mubr.f32.mxu0 0.0
  %104 = vmatmul.mubr.f32.gmra.mrb[0].mxu0 %v32
  %v105 = vpop.f32.mrb[0].mxu0
  %v106 = vadd.f32 %v25, %v105
  %v107 = vpop.f32.mrb[0].mxu0
  %108 = vdwg.mxu0
  %vm109 = vcmask 785408
  %110 = vst.msk [vmem:[%s3] sm:$0xff] %vm109, %v101
  %111 = vst.msk [vmem:[%s3 + $0x8] sm:$0xff] %vm109, %v106
  // Predicated region
  $region14: #{decoder_forward.17} parent=0 // pred_check
    _
  $region15: #{decoder_forward.17} parent=0 // pred_check_branch
    %113 = sbr.rel (0) target = $region17
  $region16: #{decoder_forward.17} parent=0 // pred_region
    _
  $region17: #{decoder_forward.17} parent=0 // pred_fallthru
    _
  // Predicated region
  $region18: #{decoder_forward.17} parent=0 // pred_check
    _
  $region19: #{decoder_forward.17} parent=0 // pred_check_branch
    %115 = sbr.rel (0) target = $region21
  $region20: #{decoder_forward.17} parent=0 // pred_region
    _
  $region21: #{decoder_forward.17} parent=0 // pred_fallthru
    _

// kernel: decoder_forward.20
$region0: #{decoder_forward.20}
  #allocation0 [shape = 'u32[]', space=smem, size = 0x4, offset = 0x4, fixed_abs, tag = 'smem constant byte address 0x4 - core index']
  #allocation1 [shape = 'u32[144,128]{1,0:T(1,128)}', space=vmem, size = 0x12000, scoped, tag = 'internal scratch']
  %s0 = inlined_call_operand.vmem [shape: f32[16,32], index: 0, kind: input, shape index: {}]
  %s1 = inlined_call_operand.vmem [shape: f32[32,32], index: 1, kind: input, shape index: {}]
  %s2 = inlined_call_operand.vmem [shape: f32[1,32], index: 2, kind: input, shape index: {}]
  %s3 = inlined_call_operand.vmem [shape: f32[16,32], index: 3, kind: output, shape index: {}]
  %s4 = sld [smem:[#allocation0]]
  $region22: #{decoder_forward.20} parent=0
    _
  %s6 = ssub.s32 1, %s4
  %s7 = scalar_select 0, %s6, %s4
  // Predicated region
  $region2: #{decoder_forward.20} parent=0 // pred_check
    _
  $region3: #{decoder_forward.20} parent=0 // pred_check_branch
    %9 = sbr.rel (0) target = $region5
  $region4: #{decoder_forward.20} parent=0 // pred_region
    _
  $region5: #{decoder_forward.20} parent=0 // pred_fallthru
    _
  // Predicated region
  $region6: #{decoder_forward.20} parent=0 // pred_check
    _
  $region7: #{decoder_forward.20} parent=0 // pred_check_branch
    %11 = sbr.rel (0) target = $region9
  $region8: #{decoder_forward.20} parent=0 // pred_region
    _
  $region9: #{decoder_forward.20} parent=0 // pred_fallthru
    _
  // Predicated region
  $region10: #{decoder_forward.20} parent=0 // pred_check
    _
  $region11: #{decoder_forward.20} parent=0 // pred_check_branch
    %13 = sbr.rel (0) target = $region13
  $region12: #{decoder_forward.20} parent=0 // pred_region
    _
  $region13: #{decoder_forward.20} parent=0 // pred_fallthru
    _
  %v14 = vld [vmem:[%s0] sm:$0xff]
  %v15 = vld [vmem:[%s0 + $0x8] sm:$0xff]
  %v16 = vld [vmem:[%s1] sm:$0xff]
  %v17 = vld [vmem:[%s1 + $0x8] sm:$0xff]
  %v18 = vld [vmem:[%s1 + $0x10] sm:$0xff]
  %v19 = vld [vmem:[%s1 + $0x18] sm:$0xff]
  %v20 = vld [vmem:[%s2] sm:$0x1]
  %v22 = vlaneseq
  %v23 = vshrl.u32 %v22, 7
  %v24 = vsub.s32 0, %v23
  %v25 = vrot.slane %v20, %v24
  %vm27 = vcmask 261120
  %v29 = vsel %vm27, %v14, 0
  %v32 = vsel %vm27, %v15, 0
  %34 = vmatprep.subr.mxu0 0.0
  %35 = vmatpush1.msra.mxu0 %v16
  %36 = vmatprep.subr.mxu0 0.0
  %37 = vmatpush1.msra.mxu0 %v17
  %38 = vmatprep.subr.mxu0 0.0
  %39 = vmatpush1.msra.mxu0 %v18
  %40 = vmatprep.subr.mxu0 0.0
  %41 = vmatpush1.msra.mxu0 %v19
  %42 = vmatprep.subr.mxu0 0.0
  %43 = vmatpush1.msra.mxu0 0.0
  %44 = vmatprep.subr.mxu0 0.0
  %45 = vmatpush1.msra.mxu0 0.0
  %46 = vmatprep.subr.mxu0 0.0
  %47 = vmatpush1.msra.mxu0 0.0
  %48 = vmatprep.subr.mxu0 0.0
  %49 = vmatpush1.msra.mxu0 0.0
  %50 = vmatprep.subr.mxu0 0.0
  %51 = vmatpush1.msra.mxu0 0.0
  %52 = vmatprep.subr.mxu0 0.0
  %53 = vmatpush1.msra.mxu0 0.0
  %54 = vmatprep.subr.mxu0 0.0
  %55 = vmatpush1.msra.mxu0 0.0
  %56 = vmatprep.subr.mxu0 0.0
  %57 = vmatpush1.msra.mxu0 0.0
  %58 = vmatprep.subr.mxu0 0.0
  %59 = vmatpush1.msra.mxu0 0.0
  %60 = vmatprep.subr.mxu0 0.0
  %61 = vmatpush1.msra.mxu0 0.0
  %62 = vmatprep.subr.mxu0 0.0
  %63 = vmatpush1.msra.mxu0 0.0
  %64 = vmatprep.subr.mxu0 0.0
  %65 = vmatpush1.msra.mxu0 0.0
  %66 = vmatprep.subr.mxu0 0.0
  %67 = vmatpush1.msra.mxu0 0.0
  %68 = vmatprep.subr.mxu0 0.0
  %69 = vmatpush1.msra.mxu0 0.0
  %70 = vmatprep.subr.mxu0 0.0
  %71 = vmatpush1.msra.mxu0 0.0
  %72 = vmatprep.subr.mxu0 0.0
  %73 = vmatpush1.msra.mxu0 0.0
  %74 = vmatprep.subr.mxu0 0.0
  %75 = vmatpush1.msra.mxu0 0.0
  %76 = vmatprep.subr.mxu0 0.0
  %77 = vmatpush1.msra.mxu0 0.0
  %78 = vmatprep.subr.mxu0 0.0
  %79 = vmatpush1.msra.mxu0 0.0
  %80 = vmatprep.subr.mxu0 0.0
  %81 = vmatpush1.msra.mxu0 0.0
  %82 = vmatprep.subr.mxu0 0.0
  %83 = vmatpush1.msra.mxu0 0.0
  %84 = vmatprep.subr.mxu0 0.0
  %85 = vmatpush1.msra.mxu0 0.0
  %86 = vmatprep.subr.mxu0 0.0
  %87 = vmatpush1.msra.mxu0 0.0
  %88 = vmatprep.subr.mxu0 0.0
  %89 = vmatpush1.msra.mxu0 0.0
  %90 = vmatprep.subr.mxu0 0.0
  %91 = vmatpush1.msra.mxu0 0.0
  %92 = vmatprep.subr.mxu0 0.0
  %93 = vmatpush1.msra.mxu0 0.0
  %94 = vmatprep.subr.mxu0 0.0
  %95 = vmatpush1.msra.mxu0 0.0
  %96 = vmatprep.subr.mxu0 0.0
  %97 = vmatpush1.msra.mxu0 0.0
  %98 = vmatprep.mubr.f32.mxu0 0.0
  %99 = vmatmul.mubr.f32.gmra.mrb[0].mxu0 %v29
  %v100 = vpop.f32.mrb[0].mxu0
  %v101 = vadd.f32 %v25, %v100
  %v102 = vpop.f32.mrb[0].mxu0
  %103 = vmatprep.mubr.f32.mxu0 0.0
  %104 = vmatmul.mubr.f32.gmra.mrb[0].mxu0 %v32
  %v105 = vpop.f32.mrb[0].mxu0
  %v106 = vadd.f32 %v25, %v105
  %v107 = vpop.f32.mrb[0].mxu0
  %108 = vdwg.mxu0
  %109 = vst.msk [vmem:[%s3] sm:$0xff] %vm27, %v101
  %110 = vst.msk [vmem:[%s3 + $0x8] sm:$0xff] %vm27, %v106
  // Predicated region
  $region14: #{decoder_forward.20} parent=0 // pred_check
    _
  $region15: #{decoder_forward.20} parent=0 // pred_check_branch
    %112 = sbr.rel (0) target = $region17
  $region16: #{decoder_forward.20} parent=0 // pred_region
    _
  $region17: #{decoder_forward.20} parent=0 // pred_fallthru
    _
  // Predicated region
  $region18: #{decoder_forward.20} parent=0 // pred_check
    _
  $region19: #{decoder_forward.20} parent=0 // pred_check_branch
    %114 = sbr.rel (0) target = $region21
  $region20: #{decoder_forward.20} parent=0 // pred_region
    _
  $region21: #{decoder_forward.20} parent=0 // pred_fallthru
    _

// kernel: decoder_forward.18
$region0: #{decoder_forward.18}
  #allocation0 [shape = 'u32[]', space=smem, size = 0x4, offset = 0x4, fixed_abs, tag = 'smem constant byte address 0x4 - core index']
  #allocation1 [shape = 'u32[144,128]{1,0:T(1,128)}', space=vmem, size = 0x12000, scoped, tag = 'internal scratch']
  #allocation2 [shape = 's32[1]{0}', space=sflag, size = 0x4, scoped, tag = 'scoped memory for decoder_forward.18']
  #allocation3 [shape = 'u8[512]{0}', space=smem, size = 0x200, scoped, tag = 'prefetched SMEM operand 0']
  %s0 = inlined_call_operand.vmem [shape: s32[2], index: 0, kind: input, shape index: {}]
  %s1 = inlined_call_operand.vmem [shape: f32[2,4,8,8], index: 1, kind: input, shape index: {}]
  %s2 = inlined_call_operand.vmem [shape: f32[2,4,8,8], index: 2, kind: input, shape index: {}]
  %s3 = inlined_call_operand.vmem [shape: f32[2,4,8,8], index: 3, kind: input, shape index: {}]
  %s4 = inlined_call_operand.vmem [shape: f32[2,4,8,8], index: 4, kind: output, shape index: {}]
  %s5 = sld [smem:[#allocation0]]
  $region45: #{decoder_forward.18} parent=0
    _
  %s7 = ssub.s32 1, %s5
  %s8 = scalar_select 0, %s7, %s5
  %s9 = sshll.u32 %s0, 4
  %s10 = int_to_ptr.vmem [resolvable:$true] %s9
  %12 = dma.vmem_to_smem %s10, 16, [#allocation3], [#allocation2]
  %13 = dma.done [#allocation2], 16
  %14 = sfence
  loop: start=0, step=1, limit=4
  $region2: #{decoder_forward.18} parent=0 // loop_pre_header
    _
  $region3: #{decoder_forward.18} parent=0 // loop_header
    %s16 = sphi 0, %s20
    %p17 = scmp.ge.s32.totalorder %s16, 4
    %s26 = sphi 0, %s28
    %s29 = sphi 0, %s26
    %s30 = sphi 0, %s29
    %s46 = sphi 0, %s30
    %s52 = sphi 0, %s54
    %s55 = sphi 0, %s52
    %s56 = sphi 0, %s55
    %s72 = sphi 0, %s56
    %s78 = sphi 0, %s80
    %s81 = sphi 0, %s78
    %s82 = sphi 0, %s81
    %s98 = sphi 0, %s82
    %s104 = sphi 0, %s106
    %s107 = sphi 0, %s104
    %s108 = sphi 0, %s107
    %s124 = sphi 0, %s108
  $region4: #{decoder_forward.18} parent=0 // loop_header_branch
    %19 = sbr.rel (%p17) target = $region8
  $region5: #{decoder_forward.18} parent=0 // loop_body
    %s21 = ssub.s32 %s16, 1
    %s22 = ssub.s32 %s16, 2
    %s23 = sadd.s32 %s16, 1
    %s24 = ssub.s32 %s16, %s23
    %p25 = scmp.eq.s32.totalorder %s24, 0
    %s27 = sadd.s32 %s26, 1
    %s28 = scalar_select %p25, %s26, %s27
    %p31 = pneg %p25
    %p32 = scmp.eq.s32.totalorder %s16, 1
    %p33 = por %p31, %p32
    %p34 = scmp.ne.s32.totalorder %s26, %s29
    %p35 = scmp.eq.s32.totalorder %s16, 0
    %p36 = por %p34, %p35
    %p37 = scmp.ne.s32.totalorder %s26, %s29
    %p38 = scmp.eq.s32.totalorder %s21, 1
    %p39 = por %p37, %p38
    %p40 = scmp.ne.s32.totalorder %s29, %s30
    %p41 = scmp.eq.s32.totalorder %s21, 0
    %p42 = por %p40, %p41
    %p43 = scmp.ne.s32.totalorder %s29, %s30
    %p44 = scmp.eq.s32.totalorder %s22, 1
    %p45 = por %p43, %p44
    %p47 = scmp.ne.s32.totalorder %s30, %s46
    %p48 = scmp.eq.s32.totalorder %s22, 0
    %p49 = por %p47, %p48
    %s50 = ssub.s32 %s16, %s23
    %p51 = scmp.eq.s32.totalorder %s50, 0
    %s53 = sadd.s32 %s52, 1
    %s54 = scalar_select %p51, %s52, %s53
    %p57 = pneg %p51
    %p58 = scmp.eq.s32.totalorder %s16, 1
    %p59 = por %p57, %p58
    %p60 = scmp.ne.s32.totalorder %s52, %s55
    %p61 = scmp.eq.s32.totalorder %s16, 0
    %p62 = por %p60, %p61
    %p63 = scmp.ne.s32.totalorder %s52, %s55
    %p64 = scmp.eq.s32.totalorder %s21, 1
    %p65 = por %p63, %p64
    %p66 = scmp.ne.s32.totalorder %s55, %s56
    %p67 = scmp.eq.s32.totalorder %s21, 0
    %p68 = por %p66, %p67
    %p69 = scmp.ne.s32.totalorder %s55, %s56
    %p70 = scmp.eq.s32.totalorder %s22, 1
    %p71 = por %p69, %p70
    %p73 = scmp.ne.s32.totalorder %s56, %s72
    %p74 = scmp.eq.s32.totalorder %s22, 0
    %p75 = por %p73, %p74
    %s76 = ssub.s32 %s16, %s23
    %p77 = scmp.eq.s32.totalorder %s76, 0
    %s79 = sadd.s32 %s78, 1
    %s80 = scalar_select %p77, %s78, %s79
    %p83 = pneg %p77
    %p84 = scmp.eq.s32.totalorder %s16, 1
    %p85 = por %p83, %p84
    %p86 = scmp.ne.s32.totalorder %s78, %s81
    %p87 = scmp.eq.s32.totalorder %s16, 0
    %p88 = por %p86, %p87
    %p89 = scmp.ne.s32.totalorder %s78, %s81
    %p90 = scmp.eq.s32.totalorder %s21, 1
    %p91 = por %p89, %p90
    %p92 = scmp.ne.s32.totalorder %s81, %s82
    %p93 = scmp.eq.s32.totalorder %s21, 0
    %p94 = por %p92, %p93
    %p95 = scmp.ne.s32.totalorder %s81, %s82
    %p96 = scmp.eq.s32.totalorder %s22, 1
    %p97 = por %p95, %p96
    %p99 = scmp.ne.s32.totalorder %s82, %s98
    %p100 = scmp.eq.s32.totalorder %s22, 0
    %p101 = por %p99, %p100
    %s102 = ssub.s32 %s16, %s23
    %p103 = scmp.eq.s32.totalorder %s102, 0
    %s105 = sadd.s32 %s104, 1
    %s106 = scalar_select %p103, %s104, %s105
    %p109 = pneg %p103
    %p110 = scmp.eq.s32.totalorder %s16, 1
    %p111 = por %p109, %p110
    %p112 = scmp.ne.s32.totalorder %s104, %s107
    %p113 = scmp.eq.s32.totalorder %s16, 0
    %p114 = por %p112, %p113
    %p115 = scmp.ne.s32.totalorder %s104, %s107
    %p116 = scmp.eq.s32.totalorder %s21, 1
    %p117 = por %p115, %p116
    %p118 = scmp.ne.s32.totalorder %s107, %s108
    %p119 = scmp.eq.s32.totalorder %s21, 0
    %p120 = por %p118, %p119
    %p121 = scmp.ne.s32.totalorder %s107, %s108
    %p122 = scmp.eq.s32.totalorder %s22, 1
    %p123 = por %p121, %p122
    %p125 = scmp.ne.s32.totalorder %s108, %s124
    %p126 = scmp.eq.s32.totalorder %s22, 0
    %p127 = por %p125, %p126
    %p128 = scmp.le.s32.totalorder 1, %s16
    %p129 = scmp.lt.s32.totalorder %s16, 3
    %p130 = pnand %p128, %p129
    %p131 = pneg %p130
    // Predicated region
    $region9: #{decoder_forward.18} parent=5 // pred_check
      _
    $region10: #{decoder_forward.18} parent=5 // pred_check_branch
      %133 = sbr.rel (%p130) target = $region12
    $region11: #{decoder_forward.18} parent=5 // pred_region
      %s134 = ssub.s32 %s16, 1
    $region12: #{decoder_forward.18} parent=5 // pred_fallthru
      _
    %p135 = scmp.lt.s32.totalorder %s16, 2
    // Predicated region
    $region13: #{decoder_forward.18} parent=5 // pred_check
      %p136 = pneg %p135
    $region14: #{decoder_forward.18} parent=5 // pred_check_branch
      %138 = sbr.rel (%p136) target = $region16
    $region15: #{decoder_forward.18} parent=5 // pred_region
      // Predicated region
      $region17: #{decoder_forward.18} parent=15 // pred_check
        %p139 = pneg %p36
      $region18: #{decoder_forward.18} parent=15 // pred_check_branch
        %141 = sbr.rel (%p139) target = $region20
      $region19: #{decoder_forward.18} parent=15 // pred_region
        %p142 = scmp.lt.s32.totalorder %s16, 1
        %s143 = scalar_select %p142, %s16, 1
        %s144 = smul.addr %s143, 4
        %s145 = smul.addr %s144, 8
        %s146 = scalar_lea.vmem %s1, %s145
      $region20: #{decoder_forward.18} parent=15 // pred_fallthru
        _
      // Predicated region
      $region21: #{decoder_forward.18} parent=15 // pred_check
        %p147 = pneg %p62
      $region22: #{decoder_forward.18} parent=15 // pred_check_branch
        %149 = sbr.rel (%p147) target = $region24
      $region23: #{decoder_forward.18} parent=15 // pred_region
        %p150 = scmp.lt.s32.totalorder %s16, 1
        %s151 = scalar_select %p150, %s16, 1
        %s152 = smul.addr %s151, 4
        %s153 = smul.addr %s152, 8
        %s154 = scalar_lea.vmem %s2, %s153
      $region24: #{decoder_forward.18} parent=15 // pred_fallthru
        _
      // Predicated region
      $region25: #{decoder_forward.18} parent=15 // pred_check
        %p155 = pneg %p88
      $region26: #{decoder_forward.18} parent=15 // pred_check_branch
        %157 = sbr.rel (%p155) target = $region28
      $region27: #{decoder_forward.18} parent=15 // pred_region
        %p158 = scmp.lt.s32.totalorder %s16, 1
        %s159 = scalar_select %p158, %s16, 1
        %s160 = smul.addr %s159, 4
        %s161 = smul.addr %s160, 8
        %s162 = scalar_lea.vmem %s3, %s161
      $region28: #{decoder_forward.18} parent=15 // pred_fallthru
        _
    $region16: #{decoder_forward.18} parent=5 // pred_fallthru
      _
    %p163 = scmp.le.s32.totalorder 1, %s16
    %p164 = scmp.lt.s32.totalorder %s16, 3
    %p165 = pnand %p163, %p164
    %p166 = pneg %p165
    // Predicated region
    $region29: #{decoder_forward.18} parent=5 // pred_check
      _
    $region30: #{decoder_forward.18} parent=5 // pred_check_branch
      %168 = sbr.rel (%p165) target = $region32
    $region31: #{decoder_forward.18} parent=5 // pred_region
      %s169 = ssub.s32 %s16, 1
      %p170 = scmp.lt.s32.totalorder %s21, 1
      %s171 = scalar_select %p170, %s21, 1
      %s172 = smul.addr %s171, 4
      %s173 = smul.addr %s172, 8
      %s174 = scalar_lea.vmem %s1, %s173
      %p175 = pneg %p42
      %p176 = pneg %p39
      %p177 = scmp.lt.s32.totalorder %s21, 1
      %s178 = scalar_select %p177, %s21, 1
      %s179 = smul.addr %s178, 4
      %s180 = smul.addr %s179, 8
      %s181 = scalar_lea.vmem %s2, %s180
      %p182 = pneg %p68
      %p183 = pneg %p65
      %p184 = scmp.lt.s32.totalorder %s21, 1
      %s185 = scalar_select %p184, %s21, 1
      %s186 = smul.addr %s185, 4
      %s187 = smul.addr %s186, 8
      %s188 = scalar_lea.vmem %s3, %s187
      %p189 = pneg %p94
      %p190 = pneg %p91
      %p191 = pneg %p120
      %p192 = pneg %p117
      %p193 = scmp.lt.s32.totalorder %s21, 1
      %s194 = scalar_select %p193, %s21, 1
      %s195 = smul.addr %s194, 4
      %s196 = smul.addr %s195, 8
      %s197 = scalar_lea.vmem %s4, %s196
      %p198 = scmp.lt.s32.totalorder %s21, 1
      %s199 = scalar_select %p198, %s21, 1
      %s200 = smul.addr %s199, 4
      %s201 = smul.addr %s200, 8
      %s202 = scalar_lea.vmem %s1, %s201
      %p203 = scmp.lt.s32.totalorder %s21, 1
      %s204 = scalar_select %p203, %s21, 1
      %s205 = smul.addr %s204, 4
      %s206 = smul.addr %s205, 8
      %s207 = scalar_lea.vmem %s2, %s206
      %p208 = scmp.lt.s32.totalorder %s21, 1
      %s209 = scalar_select %p208, %s21, 1
      %s210 = smul.addr %s209, 4
      %s211 = smul.addr %s210, 8
      %s212 = scalar_lea.vmem %s3, %s211
      %p213 = scmp.lt.s32.totalorder %s21, 1
      %s214 = scalar_select %p213, %s21, 1
      %s215 = smul.addr %s214, 4
      %s216 = smul.addr %s215, 8
      %s217 = scalar_lea.vmem %s4, %s216
      %v218 = vld [vmem:[%s202] sm:$0xff]
      %v219 = vld [vmem:[%s202 + $0x8] sm:$0xff]
      %v220 = vld [vmem:[%s202 + $0x10] sm:$0xff]
      %v221 = vld [vmem:[%s202 + $0x18] sm:$0xff]
      %v222 = vld [vmem:[%s207] sm:$0xff]
      %v223 = vld [vmem:[%s207 + $0x8] sm:$0xff]
      %v224 = vld [vmem:[%s207 + $0x10] sm:$0xff]
      %v225 = vld [vmem:[%s207 + $0x18] sm:$0xff]
      %v226 = vld [vmem:[%s212] sm:$0xff]
      %v227 = vld [vmem:[%s212 + $0x8] sm:$0xff]
      %v228 = vld [vmem:[%s212 + $0x10] sm:$0xff]
      %v229 = vld [vmem:[%s212 + $0x18] sm:$0xff]
      %vm230 = vcmask 64512
      %v232 = vsel %vm230, %v218, 0
      %v235 = vsel %vm230, %v222, 0
      %237 = vmatprep.subr.mxu0 0.0
      %238 = vmatpush1.xpose.msra.mxu0 %v235
      %239 = vmatprep.subr.mxu0 0.0
      %240 = vmatpush1.xpose.msra.mxu0 0.0
      %241 = vmatprep.subr.mxu0 0.0
      %242 = vmatpush1.xpose.msra.mxu0 0.0
      %243 = vmatprep.subr.mxu0 0.0
      %244 = vmatpush1.xpose.msra.mxu0 0.0
      %245 = vmatprep.subr.mxu0 0.0
      %246 = vmatpush1.xpose.msra.mxu0 0.0
      %247 = vmatprep.subr.mxu0 0.0
      %248 = vmatpush1.xpose.msra.mxu0 0.0
      %249 = vmatprep.subr.mxu0 0.0
      %250 = vmatpush1.xpose.msra.mxu0 0.0
      %251 = vmatprep.subr.mxu0 0.0
      %252 = vmatpush1.xpose.msra.mxu0 0.0
      %253 = vmatprep.subr.mxu0 0.0
      %254 = vmatpush1.xpose.msra.mxu0 0.0
      %255 = vmatprep.subr.mxu0 0.0
      %256 = vmatpush1.xpose.msra.mxu0 0.0
      %257 = vmatprep.subr.mxu0 0.0
      %258 = vmatpush1.xpose.msra.mxu0 0.0
      %259 = vmatprep.subr.mxu0 0.0
      %260 = vmatpush1.xpose.msra.mxu0 0.0
      %261 = vmatprep.subr.mxu0 0.0
      %262 = vmatpush1.xpose.msra.mxu0 0.0
      %263 = vmatprep.subr.mxu0 0.0
      %264 = vmatpush1.xpose.msra.mxu0 0.0
      %265 = vmatprep.subr.mxu0 0.0
      %266 = vmatpush1.xpose.msra.mxu0 0.0
      %267 = vmatprep.subr.mxu0 0.0
      %268 = vmatpush1.xpose.msra.mxu0 0.0
      %269 = vmatprep.subr.mxu0 0.0
      %270 = vmatpush1.xpose.msra.mxu0 0.0
      %271 = vmatprep.subr.mxu0 0.0
      %272 = vmatpush1.xpose.msra.mxu0 0.0
      %273 = vmatprep.subr.mxu0 0.0
      %274 = vmatpush1.xpose.msra.mxu0 0.0
      %275 = vmatprep.subr.mxu0 0.0
      %276 = vmatpush1.xpose.msra.mxu0 0.0
      %277 = vmatprep.subr.mxu0 0.0
      %278 = vmatpush1.xpose.msra.mxu0 0.0
      %279 = vmatprep.subr.mxu0 0.0
      %280 = vmatpush1.xpose.msra.mxu0 0.0
      %281 = vmatprep.subr.mxu0 0.0
      %282 = vmatpush1.xpose.msra.mxu0 0.0
      %283 = vmatprep.subr.mxu0 0.0
      %284 = vmatpush1.xpose.msra.mxu0 0.0
      %285 = vmatprep.subr.mxu0 0.0
      %286 = vmatpush1.xpose.msra.mxu0 0.0
      %287 = vmatprep.subr.mxu0 0.0
      %288 = vmatpush1.xpose.msra.mxu0 0.0
      %289 = vmatprep.subr.mxu0 0.0
      %290 = vmatpush1.xpose.msra.mxu0 0.0
      %291 = vmatprep.subr.mxu0 0.0
      %292 = vmatpush1.xpose.msra.mxu0 0.0
      %293 = vmatprep.subr.mxu0 0.0
      %294 = vmatpush1.xpose.msra.mxu0 0.0
      %295 = vmatprep.subr.mxu0 0.0
      %296 = vmatpush1.xpose.msra.mxu0 0.0
      %297 = vmatprep.subr.mxu0 0.0
      %298 = vmatpush1.xpose.msra.mxu0 0.0
      %299 = vmatprep.subr.mxu0 0.0
      %300 = vmatpush1.xpose.msra.mxu0 0.0
      %301 = vmatprep.mubr.f32.mxu0 0.0
      %302 = vmatmul.mubr.f32.gmra.mrb[0].mxu0 %v232
      %v303 = vpop.f32.mrb[0].mxu0
      %v304 = vadd.f32 0.0, %v303
      %v305 = vpop.f32.mrb[0].mxu0
      %306 = vdwg.mxu0
      %v308 = vsel %vm230, %v219, 0
      %v311 = vsel %vm230, %v223, 0
      %313 = vmatprep.subr.mxu0 0.0
      %314 = vmatpush1.xpose.msra.mxu0 %v311
      %315 = vmatprep.subr.mxu0 0.0
      %316 = vmatpush1.xpose.msra.mxu0 0.0
      %317 = vmatprep.subr.mxu0 0.0
      %318 = vmatpush1.xpose.msra.mxu0 0.0
      %319 = vmatprep.subr.mxu0 0.0
      %320 = vmatpush1.xpose.msra.mxu0 0.0
      %321 = vmatprep.subr.mxu0 0.0
      %322 = vmatpush1.xpose.msra.mxu0 0.0
      %323 = vmatprep.subr.mxu0 0.0
      %324 = vmatpush1.xpose.msra.mxu0 0.0
      %325 = vmatprep.subr.mxu0 0.0
      %326 = vmatpush1.xpose.msra.mxu0 0.0
      %327 = vmatprep.subr.mxu0 0.0
      %328 = vmatpush1.xpose.msra.mxu0 0.0
      %329 = vmatprep.subr.mxu0 0.0
      %330 = vmatpush1.xpose.msra.mxu0 0.0
      %331 = vmatprep.subr.mxu0 0.0
      %332 = vmatpush1.xpose.msra.mxu0 0.0
      %333 = vmatprep.subr.mxu0 0.0
      %334 = vmatpush1.xpose.msra.mxu0 0.0
      %335 = vmatprep.subr.mxu0 0.0
      %336 = vmatpush1.xpose.msra.mxu0 0.0
      %337 = vmatprep.subr.mxu0 0.0
      %338 = vmatpush1.xpose.msra.mxu0 0.0
      %339 = vmatprep.subr.mxu0 0.0
      %340 = vmatpush1.xpose.msra.mxu0 0.0
      %341 = vmatprep.subr.mxu0 0.0
      %342 = vmatpush1.xpose.msra.mxu0 0.0
      %343 = vmatprep.subr.mxu0 0.0
      %344 = vmatpush1.xpose.msra.mxu0 0.0
      %345 = vmatprep.subr.mxu0 0.0
      %346 = vmatpush1.xpose.msra.mxu0 0.0
      %347 = vmatprep.subr.mxu0 0.0
      %348 = vmatpush1.xpose.msra.mxu0 0.0
      %349 = vmatprep.subr.mxu0 0.0
      %350 = vmatpush1.xpose.msra.mxu0 0.0
      %351 = vmatprep.subr.mxu0 0.0
      %352 = vmatpush1.xpose.msra.mxu0 0.0
      %353 = vmatprep.subr.mxu0 0.0
      %354 = vmatpush1.xpose.msra.mxu0 0.0
      %355 = vmatprep.subr.mxu0 0.0
      %356 = vmatpush1.xpose.msra.mxu0 0.0
      %357 = vmatprep.subr.mxu0 0.0
      %358 = vmatpush1.xpose.msra.mxu0 0.0
      %359 = vmatprep.subr.mxu0 0.0
      %360 = vmatpush1.xpose.msra.mxu0 0.0
      %361 = vmatprep.subr.mxu0 0.0
      %362 = vmatpush1.xpose.msra.mxu0 0.0
      %363 = vmatprep.subr.mxu0 0.0
      %364 = vmatpush1.xpose.msra.mxu0 0.0
      %365 = vmatprep.subr.mxu0 0.0
      %366 = vmatpush1.xpose.msra.mxu0 0.0
      %367 = vmatprep.subr.mxu0 0.0
      %368 = vmatpush1.xpose.msra.mxu0 0.0
      %369 = vmatprep.subr.mxu0 0.0
      %370 = vmatpush1.xpose.msra.mxu0 0.0
      %371 = vmatprep.subr.mxu0 0.0
      %372 = vmatpush1.xpose.msra.mxu0 0.0
      %373 = vmatprep.subr.mxu0 0.0
      %374 = vmatpush1.xpose.msra.mxu0 0.0
      %375 = vmatprep.subr.mxu0 0.0
      %376 = vmatpush1.xpose.msra.mxu0 0.0
      %377 = vmatprep.mubr.f32.mxu0 0.0
      %378 = vmatmul.mubr.f32.gmra.mrb[0].mxu0 %v308
      %v379 = vpop.f32.mrb[0].mxu0
      %v380 = vadd.f32 0.0, %v379
      %v381 = vpop.f32.mrb[0].mxu0
      %382 = vdwg.mxu0
      %v384 = vsel %vm230, %v220, 0
      %v387 = vsel %vm230, %v224, 0
      %389 = vmatprep.subr.mxu0 0.0
      %390 = vmatpush1.xpose.msra.mxu0 %v387
      %391 = vmatprep.subr.mxu0 0.0
      %392 = vmatpush1.xpose.msra.mxu0 0.0
      %393 = vmatprep.subr.mxu0 0.0
      %394 = vmatpush1.xpose.msra.mxu0 0.0
      %395 = vmatprep.subr.mxu0 0.0
      %396 = vmatpush1.xpose.msra.mxu0 0.0
      %397 = vmatprep.subr.mxu0 0.0
      %398 = vmatpush1.xpose.msra.mxu0 0.0
      %399 = vmatprep.subr.mxu0 0.0
      %400 = vmatpush1.xpose.msra.mxu0 0.0
      %401 = vmatprep.subr.mxu0 0.0
      %402 = vmatpush1.xpose.msra.mxu0 0.0
      %403 = vmatprep.subr.mxu0 0.0
      %404 = vmatpush1.xpose.msra.mxu0 0.0
      %405 = vmatprep.subr.mxu0 0.0
      %406 = vmatpush1.xpose.msra.mxu0 0.0
      %407 = vmatprep.subr.mxu0 0.0
      %408 = vmatpush1.xpose.msra.mxu0 0.0
      %409 = vmatprep.subr.mxu0 0.0
      %410 = vmatpush1.xpose.msra.mxu0 0.0
      %411 = vmatprep.subr.mxu0 0.0
      %412 = vmatpush1.xpose.msra.mxu0 0.0
      %413 = vmatprep.subr.mxu0 0.0
      %414 = vmatpush1.xpose.msra.mxu0 0.0
      %415 = vmatprep.subr.mxu0 0.0
      %416 = vmatpush1.xpose.msra.mxu0 0.0
      %417 = vmatprep.subr.mxu0 0.0
      %418 = vmatpush1.xpose.msra.mxu0 0.0
      %419 = vmatprep.subr.mxu0 0.0
      %420 = vmatpush1.xpose.msra.mxu0 0.0
      %421 = vmatprep.subr.mxu0 0.0
      %422 = vmatpush1.xpose.msra.mxu0 0.0
      %423 = vmatprep.subr.mxu0 0.0
      %424 = vmatpush1.xpose.msra.mxu0 0.0
      %425 = vmatprep.subr.mxu0 0.0
      %426 = vmatpush1.xpose.msra.mxu0 0.0
      %427 = vmatprep.subr.mxu0 0.0
      %428 = vmatpush1.xpose.msra.mxu0 0.0
      %429 = vmatprep.subr.mxu0 0.0
      %430 = vmatpush1.xpose.msra.mxu0 0.0
      %431 = vmatprep.subr.mxu0 0.0
      %432 = vmatpush1.xpose.msra.mxu0 0.0
      %433 = vmatprep.subr.mxu0 0.0
      %434 = vmatpush1.xpose.msra.mxu0 0.0
      %435 = vmatprep.subr.mxu0 0.0
      %436 = vmatpush1.xpose.msra.mxu0 0.0
      %437 = vmatprep.subr.mxu0 0.0
      %438 = vmatpush1.xpose.msra.mxu0 0.0
      %439 = vmatprep.subr.mxu0 0.0
      %440 = vmatpush1.xpose.msra.mxu0 0.0
      %441 = vmatprep.subr.mxu0 0.0
      %442 = vmatpush1.xpose.msra.mxu0 0.0
      %443 = vmatprep.subr.mxu0 0.0
      %444 = vmatpush1.xpose.msra.mxu0 0.0
      %445 = vmatprep.subr.mxu0 0.0
      %446 = vmatpush1.xpose.msra.mxu0 0.0
      %447 = vmatprep.subr.mxu0 0.0
      %448 = vmatpush1.xpose.msra.mxu0 0.0
      %449 = vmatprep.subr.mxu0 0.0
      %450 = vmatpush1.xpose.msra.mxu0 0.0
      %451 = vmatprep.subr.mxu0 0.0
      %452 = vmatpush1.xpose.msra.mxu0 0.0
      %453 = vmatprep.mubr.f32.mxu0 0.0
      %454 = vmatmul.mubr.f32.gmra.mrb[0].mxu0 %v384
      %v455 = vpop.f32.mrb[0].mxu0
      %v456 = vadd.f32 0.0, %v455
      %v457 = vpop.f32.mrb[0].mxu0
      %458 = vdwg.mxu0
      %v460 = vsel %vm230, %v221, 0
      %v463 = vsel %vm230, %v225, 0
      %465 = vmatprep.subr.mxu0 0.0
      %466 = vmatpush1.xpose.msra.mxu0 %v463
      %467 = vmatprep.subr.mxu0 0.0
      %468 = vmatpush1.xpose.msra.mxu0 0.0
      %469 = vmatprep.subr.mxu0 0.0
      %470 = vmatpush1.xpose.msra.mxu0 0.0
      %471 = vmatprep.subr.mxu0 0.0
      %472 = vmatpush1.xpose.msra.mxu0 0.0
      %473 = vmatprep.subr.mxu0 0.0
      %474 = vmatpush1.xpose.msra.mxu0 0.0
      %475 = vmatprep.subr.mxu0 0.0
      %476 = vmatpush1.xpose.msra.mxu0 0.0
      %477 = vmatprep.subr.mxu0 0.0
      %478 = vmatpush1.xpose.msra.mxu0 0.0
      %479 = vmatprep.subr.mxu0 0.0
      %480 = vmatpush1.xpose.msra.mxu0 0.0
      %481 = vmatprep.subr.mxu0 0.0
      %482 = vmatpush1.xpose.msra.mxu0 0.0
      %483 = vmatprep.subr.mxu0 0.0
      %484 = vmatpush1.xpose.msra.mxu0 0.0
      %485 = vmatprep.subr.mxu0 0.0
      %486 = vmatpush1.xpose.msra.mxu0 0.0
      %487 = vmatprep.subr.mxu0 0.0
      %488 = vmatpush1.xpose.msra.mxu0 0.0
      %489 = vmatprep.subr.mxu0 0.0
      %490 = vmatpush1.xpose.msra.mxu0 0.0
      %491 = vmatprep.subr.mxu0 0.0
      %492 = vmatpush1.xpose.msra.mxu0 0.0
      %493 = vmatprep.subr.mxu0 0.0
      %494 = vmatpush1.xpose.msra.mxu0 0.0
      %495 = vmatprep.subr.mxu0 0.0
      %496 = vmatpush1.xpose.msra.mxu0 0.0
      %497 = vmatprep.subr.mxu0 0.0
      %498 = vmatpush1.xpose.msra.mxu0 0.0
      %499 = vmatprep.subr.mxu0 0.0
      %500 = vmatpush1.xpose.msra.mxu0 0.0
      %501 = vmatprep.subr.mxu0 0.0
      %502 = vmatpush1.xpose.msra.mxu0 0.0
      %503 = vmatprep.subr.mxu0 0.0
      %504 = vmatpush1.xpose.msra.mxu0 0.0
      %505 = vmatprep.subr.mxu0 0.0
      %506 = vmatpush1.xpose.msra.mxu0 0.0
      %507 = vmatprep.subr.mxu0 0.0
      %508 = vmatpush1.xpose.msra.mxu0 0.0
      %509 = vmatprep.subr.mxu0 0.0
      %510 = vmatpush1.xpose.msra.mxu0 0.0
      %511 = vmatprep.subr.mxu0 0.0
      %512 = vmatpush1.xpose.msra.mxu0 0.0
      %513 = vmatprep.subr.mxu0 0.0
      %514 = vmatpush1.xpose.msra.mxu0 0.0
      %515 = vmatprep.subr.mxu0 0.0
      %516 = vmatpush1.xpose.msra.mxu0 0.0
      %517 = vmatprep.subr.mxu0 0.0
      %518 = vmatpush1.xpose.msra.mxu0 0.0
      %519 = vmatprep.subr.mxu0 0.0
      %520 = vmatpush1.xpose.msra.mxu0 0.0
      %521 = vmatprep.subr.mxu0 0.0
      %522 = vmatpush1.xpose.msra.mxu0 0.0
      %523 = vmatprep.subr.mxu0 0.0
      %524 = vmatpush1.xpose.msra.mxu0 0.0
      %525 = vmatprep.subr.mxu0 0.0
      %526 = vmatpush1.xpose.msra.mxu0 0.0
      %527 = vmatprep.subr.mxu0 0.0
      %528 = vmatpush1.xpose.msra.mxu0 0.0
      %529 = vmatprep.mubr.f32.mxu0 0.0
      %530 = vmatmul.mubr.f32.gmra.mrb[0].mxu0 %v460
      %v531 = vpop.f32.mrb[0].mxu0
      %v532 = vadd.f32 0.0, %v531
      %v533 = vpop.f32.mrb[0].mxu0
      %534 = vdwg.mxu0
      %v535 = vmul.f32 %v304, 0.35355338
      %v536 = vmul.f32 %v380, 0.35355338
      %v537 = vmul.f32 %v456, 0.35355338
      %v538 = vmul.f32 %v532, 0.35355338
      %v539 = vlaneseq
      %v540 = vand.u32 %v539, 127
      %s541 = sld [smem:[#allocation3 + %s21]]
      %v542 = vstv %s541
      %vm543 = vcmp.ge.s32.totalorder %v540, %v542
      %v544 = vlaneseq
      %v545 = vshrl.u32 %v544, 7
      %vm546 = vcmp.gt.s32.totalorder %v540, %v545
      %vm547 = vmor %vm543, %vm546
      %v548 = vsel %vm547, -1e+30, %v535
      %v549 = vsel %vm547, -1e+30, %v536
      %v550 = vsel %vm547, -1e+30, %v537
      %v551 = vsel %vm547, -1e+30, %v538
      %v552 = vsel %vm230, %v548, -inf
      %553 = vmax.xlane.f32.xlu0 %v552
      %v554 = vpop.xlane.xlu0 %553
      %v555 = vsel %vm230, %v549, -inf
      %556 = vmax.xlane.f32.xlu0 %v555
      %v557 = vpop.xlane.xlu0 %556
      %v558 = vsel %vm230, %v550, -inf
      %559 = vmax.xlane.f32.xlu0 %v558
      %v560 = vpop.xlane.xlu0 %559
      %v561 = vsel %vm230, %v551, -inf
      %562 = vmax.xlane.f32.xlu0 %v561
      %v563 = vpop.xlane.xlu0 %562
      %v564 = vsub.f32 %v548, %v554
      %v565 = vsub.f32 %v549, %v557
      %v566 = vsub.f32 %v550, %v560
      %v567 = vsub.f32 %v551, %v563
      %v568 = vmul.f32 %v564, 1.442695
      %v569 = vpow.pop %v568
      %v570 = vmul.f32 %v565, 1.442695
      %v571 = vpow.pop %v570
      %v572 = vmul.f32 %v566, 1.442695
      %v573 = vpow.pop %v572
      %v574 = vmul.f32 %v567, 1.442695
      %v575 = vpow.pop %v574
      %v576 = vsel %vm230, %v569, 0.0
      %577 = vadd.xlane.f32.xlu0 %v576
      %v578 = vpop.xlane.xlu0 %577
      %v579 = vsel %vm230, %v571, 0.0
      %580 = vadd.xlane.f32.xlu0 %v579
      %v581 = vpop.xlane.xlu0 %580
      %v582 = vsel %vm230, %v573, 0.0
      %583 = vadd.xlane.f32.xlu0 %v582
      %v584 = vpop.xlane.xlu0 %583
      %v585 = vsel %vm230, %v575, 0.0
      %586 = vadd.xlane.f32.xlu0 %v585
      %v587 = vpop.xlane.xlu0 %586
      %v588 = vrcp.pop %v578
      %v589 = vrcp.pop %v581
      %v590 = vrcp.pop %v584
      %v591 = vrcp.pop %v587
      %v592 = vmul.f32 %v569, %v588
      %v593 = vmul.f32 %v571, %v589
      %v594 = vmul.f32 %v573, %v590
      %v595 = vmul.f32 %v575, %v591
      %v597 = vsel %vm230, %v592, 0
      %599 = vmatprep.subr.mxu0 0.0
      %600 = vmatpush1.msra.mxu0 %v226
      %601 = vmatprep.subr.mxu0 0.0
      %602 = vmatpush1.msra.mxu0 0.0
      %603 = vmatprep.subr.mxu0 0.0
      %604 = vmatpush1.msra.mxu0 0.0
      %605 = vmatprep.subr.mxu0 0.0
      %606 = vmatpush1.msra.mxu0 0.0
      %607 = vmatprep.subr.mxu0 0.0
      %608 = vmatpush1.msra.mxu0 0.0
      %609 = vmatprep.subr.mxu0 0.0
      %610 = vmatpush1.msra.mxu0 0.0
      %611 = vmatprep.subr.mxu0 0.0
      %612 = vmatpush1.msra.mxu0 0.0
      %613 = vmatprep.subr.mxu0 0.0
      %614 = vmatpush1.msra.mxu0 0.0
      %615 = vmatprep.subr.mxu0 0.0
      %616 = vmatpush1.msra.mxu0 0.0
      %617 = vmatprep.subr.mxu0 0.0
      %618 = vmatpush1.msra.mxu0 0.0
      %619 = vmatprep.subr.mxu0 0.0
      %620 = vmatpush1.msra.mxu0 0.0
      %621 = vmatprep.subr.mxu0 0.0
      %622 = vmatpush1.msra.mxu0 0.0
      %623 = vmatprep.subr.mxu0 0.0
      %624 = vmatpush1.msra.mxu0 0.0
      %625 = vmatprep.subr.mxu0 0.0
      %626 = vmatpush1.msra.mxu0 0.0
      %627 = vmatprep.subr.mxu0 0.0
      %628 = vmatpush1.msra.mxu0 0.0
      %629 = vmatprep.subr.mxu0 0.0
      %630 = vmatpush1.msra.mxu0 0.0
      %631 = vmatprep.subr.mxu0 0.0
      %632 = vmatpush1.msra.mxu0 0.0
      %633 = vmatprep.subr.mxu0 0.0
      %634 = vmatpush1.msra.mxu0 0.0
      %635 = vmatprep.subr.mxu0 0.0
      %636 = vmatpush1.msra.mxu0 0.0
      %637 = vmatprep.subr.mxu0 0.0
      %638 = vmatpush1.msra.mxu0 0.0
      %639 = vmatprep.subr.mxu0 0.0
      %640 = vmatpush1.msra.mxu0 0.0
      %641 = vmatprep.subr.mxu0 0.0
      %642 = vmatpush1.msra.mxu0 0.0
      %643 = vmatprep.subr.mxu0 0.0
      %644 = vmatpush1.msra.mxu0 0.0
      %645 = vmatprep.subr.mxu0 0.0
      %646 = vmatpush1.msra.mxu0 0.0
      %647 = vmatprep.subr.mxu0 0.0
      %648 = vmatpush1.msra.mxu0 0.0
      %649 = vmatprep.subr.mxu0 0.0
      %650 = vmatpush1.msra.mxu0 0.0
      %651 = vmatprep.subr.mxu0 0.0
      %652 = vmatpush1.msra.mxu0 0.0
      %653 = vmatprep.subr.mxu0 0.0
      %654 = vmatpush1.msra.mxu0 0.0
      %655 = vmatprep.subr.mxu0 0.0
      %656 = vmatpush1.msra.mxu0 0.0
      %657 = vmatprep.subr.mxu0 0.0
      %658 = vmatpush1.msra.mxu0 0.0
      %659 = vmatprep.subr.mxu0 0.0
      %660 = vmatpush1.msra.mxu0 0.0
      %661 = vmatprep.subr.mxu0 0.0
      %662 = vmatpush1.msra.mxu0 0.0
      %663 = vmatprep.mubr.f32.mxu0 0.0
      %664 = vmatmul.mubr.f32.gmra.mrb[0].mxu0 %v597
      %v665 = vpop.f32.mrb[0].mxu0
      %v666 = vadd.f32 0.0, %v665
      %v667 = vpop.f32.mrb[0].mxu0
      %668 = vdwg.mxu0
      %v670 = vsel %vm230, %v593, 0
      %672 = vmatprep.subr.mxu0 0.0
      %673 = vmatpush1.msra.mxu0 %v227
      %674 = vmatprep.subr.mxu0 0.0
      %675 = vmatpush1.msra.mxu0 0.0
      %676 = vmatprep.subr.mxu0 0.0
      %677 = vmatpush1.msra.mxu0 0.0
      %678 = vmatprep.subr.mxu0 0.0
      %679 = vmatpush1.msra.mxu0 0.0
      %680 = vmatprep.subr.mxu0 0.0
      %681 = vmatpush1.msra.mxu0 0.0
      %682 = vmatprep.subr.mxu0 0.0
      %683 = vmatpush1.msra.mxu0 0.0
      %684 = vmatprep.subr.mxu0 0.0
      %685 = vmatpush1.msra.mxu0 0.0
      %686 = vmatprep.subr.mxu0 0.0
      %687 = vmatpush1.msra.mxu0 0.0
      %688 = vmatprep.subr.mxu0 0.0
      %689 = vmatpush1.msra.mxu0 0.0
      %690 = vmatprep.subr.mxu0 0.0
      %691 = vmatpush1.msra.mxu0 0.0
      %692 = vmatprep.subr.mxu0 0.0
      %693 = vmatpush1.msra.mxu0 0.0
      %694 = vmatprep.subr.mxu0 0.0
      %695 = vmatpush1.msra.mxu0 0.0
      %696 = vmatprep.subr.mxu0 0.0
      %697 = vmatpush1.msra.mxu0 0.0
      %698 = vmatprep.subr.mxu0 0.0
      %699 = vmatpush1.msra.mxu0 0.0
      %700 = vmatprep.subr.mxu0 0.0
      %701 = vmatpush1.msra.mxu0 0.0
      %702 = vmatprep.subr.mxu0 0.0
      %703 = vmatpush1.msra.mxu0 0.0
      %704 = vmatprep.subr.mxu0 0.0
      %705 = vmatpush1.msra.mxu0 0.0
      %706 = vmatprep.subr.mxu0 0.0
      %707 = vmatpush1.msra.mxu0 0.0
      %708 = vmatprep.subr.mxu0 0.0
      %709 = vmatpush1.msra.mxu0 0.0
      %710 = vmatprep.subr.mxu0 0.0
      %711 = vmatpush1.msra.mxu0 0.0
      %712 = vmatprep.subr.mxu0 0.0
      %713 = vmatpush1.msra.mxu0 0.0
      %714 = vmatprep.subr.mxu0 0.0
      %715 = vmatpush1.msra.mxu0 0.0
      %716 = vmatprep.subr.mxu0 0.0
      %717 = vmatpush1.msra.mxu0 0.0
      %718 = vmatprep.subr.mxu0 0.0
      %719 = vmatpush1.msra.mxu0 0.0
      %720 = vmatprep.subr.mxu0 0.0
      %721 = vmatpush1.msra.mxu0 0.0
      %722 = vmatprep.subr.mxu0 0.0
      %723 = vmatpush1.msra.mxu0 0.0
      %724 = vmatprep.subr.mxu0 0.0
      %725 = vmatpush1.msra.mxu0 0.0
      %726 = vmatprep.subr.mxu0 0.0
      %727 = vmatpush1.msra.mxu0 0.0
      %728 = vmatprep.subr.mxu0 0.0
      %729 = vmatpush1.msra.mxu0 0.0
      %730 = vmatprep.subr.mxu0 0.0
      %731 = vmatpush1.msra.mxu0 0.0
      %732 = vmatprep.subr.mxu0 0.0
      %733 = vmatpush1.msra.mxu0 0.0
      %734 = vmatprep.subr.mxu0 0.0
      %735 = vmatpush1.msra.mxu0 0.0
      %736 = vmatprep.mubr.f32.mxu0 0.0
      %737 = vmatmul.mubr.f32.gmra.mrb[0].mxu0 %v670
      %v738 = vpop.f32.mrb[0].mxu0
      %v739 = vadd.f32 0.0, %v738
      %v740 = vpop.f32.mrb[0].mxu0
      %741 = vdwg.mxu0
      %v743 = vsel %vm230, %v594, 0
      %745 = vmatprep.subr.mxu0 0.0
      %746 = vmatpush1.msra.mxu0 %v228
      %747 = vmatprep.subr.mxu0 0.0
      %748 = vmatpush1.msra.mxu0 0.0
      %749 = vmatprep.subr.mxu0 0.0
      %750 = vmatpush1.msra.mxu0 0.0
      %751 = vmatprep.subr.mxu0 0.0
      %752 = vmatpush1.msra.mxu0 0.0
      %753 = vmatprep.subr.mxu0 0.0
      %754 = vmatpush1.msra.mxu0 0.0
      %755 = vmatprep.subr.mxu0 0.0
      %756 = vmatpush1.msra.mxu0 0.0
      %757 = vmatprep.subr.mxu0 0.0
      %758 = vmatpush1.msra.mxu0 0.0
      %759 = vmatprep.subr.mxu0 0.0
      %760 = vmatpush1.msra.mxu0 0.0
      %761 = vmatprep.subr.mxu0 0.0
      %762 = vmatpush1.msra.mxu0 0.0
      %763 = vmatprep.subr.mxu0 0.0
      %764 = vmatpush1.msra.mxu0 0.0
      %765 = vmatprep.subr.mxu0 0.0
      %766 = vmatpush1.msra.mxu0 0.0
      %767 = vmatprep.subr.mxu0 0.0
      %768 = vmatpush1.msra.mxu0 0.0
      %769 = vmatprep.subr.mxu0 0.0
      %770 = vmatpush1.msra.mxu0 0.0
      %771 = vmatprep.subr.mxu0 0.0
      %772 = vmatpush1.msra.mxu0 0.0
      %773 = vmatprep.subr.mxu0 0.0
      %774 = vmatpush1.msra.mxu0 0.0
      %775 = vmatprep.subr.mxu0 0.0
      %776 = vmatpush1.msra.mxu0 0.0
      %777 = vmatprep.subr.mxu0 0.0
      %778 = vmatpush1.msra.mxu0 0.0
      %779 = vmatprep.subr.mxu0 0.0
      %780 = vmatpush1.msra.mxu0 0.0
      %781 = vmatprep.subr.mxu0 0.0
      %782 = vmatpush1.msra.mxu0 0.0
      %783 = vmatprep.subr.mxu0 0.0
      %784 = vmatpush1.msra.mxu0 0.0
      %785 = vmatprep.subr.mxu0 0.0
      %786 = vmatpush1.msra.mxu0 0.0
      %787 = vmatprep.subr.mxu0 0.0
      %788 = vmatpush1.msra.mxu0 0.0
      %789 = vmatprep.subr.mxu0 0.0
      %790 = vmatpush1.msra.mxu0 0.0
      %791 = vmatprep.subr.mxu0 0.0
      %792 = vmatpush1.msra.mxu0 0.0
      %793 = vmatprep.subr.mxu0 0.0
      %794 = vmatpush1.msra.mxu0 0.0
      %795 = vmatprep.subr.mxu0 0.0
      %796 = vmatpush1.msra.mxu0 0.0
      %797 = vmatprep.subr.mxu0 0.0
      %798 = vmatpush1.msra.mxu0 0.0
      %799 = vmatprep.subr.mxu0 0.0
      %800 = vmatpush1.msra.mxu0 0.0
      %801 = vmatprep.subr.mxu0 0.0
      %802 = vmatpush1.msra.mxu0 0.0
      %803 = vmatprep.subr.mxu0 0.0
      %804 = vmatpush1.msra.mxu0 0.0
      %805 = vmatprep.subr.mxu0 0.0
      %806 = vmatpush1.msra.mxu0 0.0
      %807 = vmatprep.subr.mxu0 0.0
      %808 = vmatpush1.msra.mxu0 0.0
      %809 = vmatprep.mubr.f32.mxu0 0.0
      %810 = vmatmul.mubr.f32.gmra.mrb[0].mxu0 %v743
      %v811 = vpop.f32.mrb[0].mxu0
      %v812 = vadd.f32 0.0, %v811
      %v813 = vpop.f32.mrb[0].mxu0
      %814 = vdwg.mxu0
      %v816 = vsel %vm230, %v595, 0
      %818 = vmatprep.subr.mxu0 0.0
      %819 = vmatpush1.msra.mxu0 %v229
      %820 = vmatprep.subr.mxu0 0.0
      %821 = vmatpush1.msra.mxu0 0.0
      %822 = vmatprep.subr.mxu0 0.0
      %823 = vmatpush1.msra.mxu0 0.0
      %824 = vmatprep.subr.mxu0 0.0
      %825 = vmatpush1.msra.mxu0 0.0
      %826 = vmatprep.subr.mxu0 0.0
      %827 = vmatpush1.msra.mxu0 0.0
      %828 = vmatprep.subr.mxu0 0.0
      %829 = vmatpush1.msra.mxu0 0.0
      %830 = vmatprep.subr.mxu0 0.0
      %831 = vmatpush1.msra.mxu0 0.0
      %832 = vmatprep.subr.mxu0 0.0
      %833 = vmatpush1.msra.mxu0 0.0
      %834 = vmatprep.subr.mxu0 0.0
      %835 = vmatpush1.msra.mxu0 0.0
      %836 = vmatprep.subr.mxu0 0.0
      %837 = vmatpush1.msra.mxu0 0.0
      %838 = vmatprep.subr.mxu0 0.0
      %839 = vmatpush1.msra.mxu0 0.0
      %840 = vmatprep.subr.mxu0 0.0
      %841 = vmatpush1.msra.mxu0 0.0
      %842 = vmatprep.subr.mxu0 0.0
      %843 = vmatpush1.msra.mxu0 0.0
      %844 = vmatprep.subr.mxu0 0.0
      %845 = vmatpush1.msra.mxu0 0.0
      %846 = vmatprep.subr.mxu0 0.0
      %847 = vmatpush1.msra.mxu0 0.0
      %848 = vmatprep.subr.mxu0 0.0
      %849 = vmatpush1.msra.mxu0 0.0
      %850 = vmatprep.subr.mxu0 0.0
      %851 = vmatpush1.msra.mxu0 0.0
      %852 = vmatprep.subr.mxu0 0.0
      %853 = vmatpush1.msra.mxu0 0.0
      %854 = vmatprep.subr.mxu0 0.0
      %855 = vmatpush1.msra.mxu0 0.0
      %856 = vmatprep.subr.mxu0 0.0
      %857 = vmatpush1.msra.mxu0 0.0
      %858 = vmatprep.subr.mxu0 0.0
      %859 = vmatpush1.msra.mxu0 0.0
      %860 = vmatprep.subr.mxu0 0.0
      %861 = vmatpush1.msra.mxu0 0.0
      %862 = vmatprep.subr.mxu0 0.0
      %863 = vmatpush1.msra.mxu0 0.0
      %864 = vmatprep.subr.mxu0 0.0
      %865 = vmatpush1.msra.mxu0 0.0
      %866 = vmatprep.subr.mxu0 0.0
      %867 = vmatpush1.msra.mxu0 0.0
      %868 = vmatprep.subr.mxu0 0.0
      %869 = vmatpush1.msra.mxu0 0.0
      %870 = vmatprep.subr.mxu0 0.0
      %871 = vmatpush1.msra.mxu0 0.0
      %872 = vmatprep.subr.mxu0 0.0
      %873 = vmatpush1.msra.mxu0 0.0
      %874 = vmatprep.subr.mxu0 0.0
      %875 = vmatpush1.msra.mxu0 0.0
      %876 = vmatprep.subr.mxu0 0.0
      %877 = vmatpush1.msra.mxu0 0.0
      %878 = vmatprep.subr.mxu0 0.0
      %879 = vmatpush1.msra.mxu0 0.0
      %880 = vmatprep.subr.mxu0 0.0
      %881 = vmatpush1.msra.mxu0 0.0
      %882 = vmatprep.mubr.f32.mxu0 0.0
      %883 = vmatmul.mubr.f32.gmra.mrb[0].mxu0 %v816
      %v884 = vpop.f32.mrb[0].mxu0
      %v885 = vadd.f32 0.0, %v884
      %v886 = vpop.f32.mrb[0].mxu0
      %887 = vdwg.mxu0
      %888 = vst.msk [vmem:[%s217] sm:$0xff] %vm230, %v666
      %889 = vst.msk [vmem:[%s217 + $0x8] sm:$0xff] %vm230, %v739
      %890 = vst.msk [vmem:[%s217 + $0x10] sm:$0xff] %vm230, %v812
      %891 = vst.msk [vmem:[%s217 + $0x18] sm:$0xff] %vm230, %v885
      %p892 = scmp.lt.s32.totalorder %s21, 1
      %s893 = scalar_select %p892, %s21, 1
      %s894 = smul.addr %s893, 4
      %s895 = smul.addr %s894, 8
      %s896 = scalar_lea.vmem %s4, %s895
      // Predicated region
      $region33: #{decoder_forward.18} parent=31 // pred_check
        %p897 = pneg %p117
      $region34: #{decoder_forward.18} parent=31 // pred_check_branch
        %899 = sbr.rel (%p897) target = $region36
      $region35: #{decoder_forward.18} parent=31 // pred_region
        _
      $region36: #{decoder_forward.18} parent=31 // pred_fallthru
        _
    $region32: #{decoder_forward.18} parent=5 // pred_fallthru
      _
    %p900 = scmp.le.s32.totalorder 2, %s16
    // Predicated region
    $region37: #{decoder_forward.18} parent=5 // pred_check
      %p901 = pneg %p900
    $region38: #{decoder_forward.18} parent=5 // pred_check_branch
      %903 = sbr.rel (%p901) target = $region40
    $region39: #{decoder_forward.18} parent=5 // pred_region
      %s904 = ssub.s32 %s16, 2
      // Predicated region
      $region41: #{decoder_forward.18} parent=39 // pred_check
        %p905 = pneg %p123
      $region42: #{decoder_forward.18} parent=39 // pred_check_branch
        %907 = sbr.rel (%p905) target = $region44
      $region43: #{decoder_forward.18} parent=39 // pred_region
        %p908 = scmp.lt.s32.totalorder %s22, 1
        %s909 = scalar_select %p908, %s22, 1
        %s910 = smul.addr %s909, 4
        %s911 = smul.addr %s910, 8
        %s912 = scalar_lea.vmem %s4, %s911
      $region44: #{decoder_forward.18} parent=39 // pred_fallthru
        _
    $region40: #{decoder_forward.18} parent=5 // pred_fallthru
      _
  $region6: #{decoder_forward.18} parent=0 // loop_footer
    %s20 = sadd.s32 1, %s16
  $region7: #{decoder_forward.18} parent=0 // loop_footer_branch
    %15 = sbr.rel target = $region3
  $region8: #{decoder_forward.18} parent=0 // loop_exit
    _

// kernel: decoder_forward.21
$region0: #{decoder_forward.21}
  #allocation0 [shape = 'u32[]', space=smem, size = 0x4, offset = 0x4, fixed_abs, tag = 'smem constant byte address 0x4 - core index']
  #allocation1 [shape = 'u32[144,128]{1,0:T(1,128)}', space=vmem, size = 0x12000, scoped, tag = 'internal scratch']
  %s0 = inlined_call_operand.vmem [shape: f32[24,32], index: 0, kind: input, shape index: {}]
  %s1 = inlined_call_operand.vmem [shape: f32[32,64], index: 1, kind: input, shape index: {}]
  %s2 = inlined_call_operand.vmem [shape: f32[1,64], index: 2, kind: input, shape index: {}]
  %s3 = inlined_call_operand.vmem [shape: f32[24,64], index: 3, kind: output, shape index: {}]
  %s4 = sld [smem:[#allocation0]]
  $region22: #{decoder_forward.21} parent=0
    _
  %s6 = ssub.s32 1, %s4
  %s7 = scalar_select 0, %s6, %s4
  // Predicated region
  $region2: #{decoder_forward.21} parent=0 // pred_check
    _
  $region3: #{decoder_forward.21} parent=0 // pred_check_branch
    %9 = sbr.rel (0) target = $region5
  $region4: #{decoder_forward.21} parent=0 // pred_region
    _
  $region5: #{decoder_forward.21} parent=0 // pred_fallthru
    _
  // Predicated region
  $region6: #{decoder_forward.21} parent=0 // pred_check
    _
  $region7: #{decoder_forward.21} parent=0 // pred_check_branch
    %11 = sbr.rel (0) target = $region9
  $region8: #{decoder_forward.21} parent=0 // pred_region
    _
  $region9: #{decoder_forward.21} parent=0 // pred_fallthru
    _
  // Predicated region
  $region10: #{decoder_forward.21} parent=0 // pred_check
    _
  $region11: #{decoder_forward.21} parent=0 // pred_check_branch
    %13 = sbr.rel (0) target = $region13
  $region12: #{decoder_forward.21} parent=0 // pred_region
    _
  $region13: #{decoder_forward.21} parent=0 // pred_fallthru
    _
  %v14 = vld [vmem:[%s0] sm:$0xff]
  %v15 = vld [vmem:[%s0 + $0x8] sm:$0xff]
  %v16 = vld [vmem:[%s0 + $0x10] sm:$0xff]
  %v17 = vld [vmem:[%s1] sm:$0xff]
  %v18 = vld [vmem:[%s1 + $0x8] sm:$0xff]
  %v19 = vld [vmem:[%s1 + $0x10] sm:$0xff]
  %v20 = vld [vmem:[%s1 + $0x18] sm:$0xff]
  %v21 = vld [vmem:[%s2] sm:$0x1]
  %v23 = vlaneseq
  %v24 = vshrl.u32 %v23, 7
  %v25 = vsub.s32 0, %v24
  %v26 = vrot.slane %v21, %v25
  %vm28 = vcmask 261120
  %v30 = vsel %vm28, %v14, 0
  %v33 = vsel %vm28, %v15, 0
  %v36 = vsel %vm28, %v16, 0
  %38 = vmatprep.subr.mxu0 0.0
  %39 = vmatpush1.msra.mxu0 %v17
  %40 = vmatprep.subr.mxu0 0.0
  %41 = vmatpush1.msra.mxu0 %v18
  %42 = vmatprep.subr.mxu0 0.0
  %43 = vmatpush1.msra.mxu0 %v19
  %44 = vmatprep.subr.mxu0 0.0
  %45 = vmatpush1.msra.mxu0 %v20
  %46 = vmatprep.subr.mxu0 0.0
  %47 = vmatpush1.msra.mxu0 0.0
  %48 = vmatprep.subr.mxu0 0.0
  %49 = vmatpush1.msra.mxu0 0.0
  %50 = vmatprep.subr.mxu0 0.0
  %51 = vmatpush1.msra.mxu0 0.0
  %52 = vmatprep.subr.mxu0 0.0
  %53 = vmatpush1.msra.mxu0 0.0
  %54 = vmatprep.subr.mxu0 0.0
  %55 = vmatpush1.msra.mxu0 0.0
  %56 = vmatprep.subr.mxu0 0.0
  %57 = vmatpush1.msra.mxu0 0.0
  %58 = vmatprep.subr.mxu0 0.0
  %59 = vmatpush1.msra.mxu0 0.0
  %60 = vmatprep.subr.mxu0 0.0
  %61 = vmatpush1.msra.mxu0 0.0
  %62 = vmatprep.subr.mxu0 0.0
  %63 = vmatpush1.msra.mxu0 0.0
  %64 = vmatprep.subr.mxu0 0.0
  %65 = vmatpush1.msra.mxu0 0.0
  %66 = vmatprep.subr.mxu0 0.0
  %67 = vmatpush1.msra.mxu0 0.0
  %68 = vmatprep.subr.mxu0 0.0
  %69 = vmatpush1.msra.mxu0 0.0
  %70 = vmatprep.subr.mxu0 0.0
  %71 = vmatpush1.msra.mxu0 0.0
  %72 = vmatprep.subr.mxu0 0.0
  %73 = vmatpush1.msra.mxu0 0.0
  %74 = vmatprep.subr.mxu0 0.0
  %75 = vmatpush1.msra.mxu0 0.0
  %76 = vmatprep.subr.mxu0 0.0
  %77 = vmatpush1.msra.mxu0 0.0
  %78 = vmatprep.subr.mxu0 0.0
  %79 = vmatpush1.msra.mxu0 0.0
  %80 = vmatprep.subr.mxu0 0.0
  %81 = vmatpush1.msra.mxu0 0.0
  %82 = vmatprep.subr.mxu0 0.0
  %83 = vmatpush1.msra.mxu0 0.0
  %84 = vmatprep.subr.mxu0 0.0
  %85 = vmatpush1.msra.mxu0 0.0
  %86 = vmatprep.subr.mxu0 0.0
  %87 = vmatpush1.msra.mxu0 0.0
  %88 = vmatprep.subr.mxu0 0.0
  %89 = vmatpush1.msra.mxu0 0.0
  %90 = vmatprep.subr.mxu0 0.0
  %91 = vmatpush1.msra.mxu0 0.0
  %92 = vmatprep.subr.mxu0 0.0
  %93 = vmatpush1.msra.mxu0 0.0
  %94 = vmatprep.subr.mxu0 0.0
  %95 = vmatpush1.msra.mxu0 0.0
  %96 = vmatprep.subr.mxu0 0.0
  %97 = vmatpush1.msra.mxu0 0.0
  %98 = vmatprep.subr.mxu0 0.0
  %99 = vmatpush1.msra.mxu0 0.0
  %100 = vmatprep.subr.mxu0 0.0
  %101 = vmatpush1.msra.mxu0 0.0
  %102 = vmatprep.mubr.f32.mxu0 0.0
  %103 = vmatmul.mubr.f32.gmra.mrb[0].mxu0 %v30
  %v104 = vpop.f32.mrb[0].mxu0
  %v105 = vadd.f32 %v26, %v104
  %v106 = vpop.f32.mrb[0].mxu0
  %107 = vmatprep.mubr.f32.mxu0 0.0
  %108 = vmatmul.mubr.f32.gmra.mrb[0].mxu0 %v33
  %v109 = vpop.f32.mrb[0].mxu0
  %v110 = vadd.f32 %v26, %v109
  %v111 = vpop.f32.mrb[0].mxu0
  %112 = vmatprep.mubr.f32.mxu0 0.0
  %113 = vmatmul.mubr.f32.gmra.mrb[0].mxu0 %v36
  %v114 = vpop.f32.mrb[0].mxu0
  %v115 = vadd.f32 %v26, %v114
  %v116 = vpop.f32.mrb[0].mxu0
  %117 = vdwg.mxu0
  %vm118 = vcmask 523264
  %119 = vst.msk [vmem:[%s3] sm:$0xff] %vm118, %v105
  %120 = vst.msk [vmem:[%s3 + $0x8] sm:$0xff] %vm118, %v110
  %121 = vst.msk [vmem:[%s3 + $0x10] sm:$0xff] %vm118, %v115
  // Predicated region
  $region14: #{decoder_forward.21} parent=0 // pred_check
    _
  $region15: #{decoder_forward.21} parent=0 // pred_check_branch
    %123 = sbr.rel (0) target = $region17
  $region16: #{decoder_forward.21} parent=0 // pred_region
    _
  $region17: #{decoder_forward.21} parent=0 // pred_fallthru
    _
  // Predicated region
  $region18: #{decoder_forward.21} parent=0 // pred_check
    _
  $region19: #{decoder_forward.21} parent=0 // pred_check_branch
    %125 = sbr.rel (0) target = $region21
  $region20: #{decoder_forward.21} parent=0 // pred_region
    _
  $region21: #{decoder_forward.21} parent=0 // pred_fallthru
    _

// kernel: decoder_forward.24
$region0: #{decoder_forward.24}
  #allocation0 [shape = 'u32[]', space=smem, size = 0x4, offset = 0x4, fixed_abs, tag = 'smem constant byte address 0x4 - core index']
  #allocation1 [shape = 'u32[144,128]{1,0:T(1,128)}', space=vmem, size = 0x12000, scoped, tag = 'internal scratch']
  %s0 = inlined_call_operand.vmem [shape: f32[16,32], index: 0, kind: input, shape index: {}]
  %s1 = inlined_call_operand.vmem [shape: f32[32,64], index: 1, kind: input, shape index: {}]
  %s2 = inlined_call_operand.vmem [shape: f32[1,64], index: 2, kind: input, shape index: {}]
  %s3 = inlined_call_operand.vmem [shape: f32[64,32], index: 3, kind: input, shape index: {}]
  %s4 = inlined_call_operand.vmem [shape: f32[1,32], index: 4, kind: input, shape index: {}]
  %s5 = inlined_call_operand.vmem [shape: f32[1,32], index: 5, kind: input, shape index: {}]
  %s6 = inlined_call_operand.vmem [shape: f32[1,32], index: 6, kind: input, shape index: {}]
  %s7 = inlined_call_operand.vmem [shape: f32[16,32], index: 7, kind: output, shape index: {}]
  %s8 = sld [smem:[#allocation0]]
  $region38: #{decoder_forward.24} parent=0
    _
  %s10 = ssub.s32 1, %s8
  %s11 = scalar_select 0, %s10, %s8
  // Predicated region
  $region2: #{decoder_forward.24} parent=0 // pred_check
    _
  $region3: #{decoder_forward.24} parent=0 // pred_check_branch
    %13 = sbr.rel (0) target = $region5
  $region4: #{decoder_forward.24} parent=0 // pred_region
    _
  $region5: #{decoder_forward.24} parent=0 // pred_fallthru
    _
  // Predicated region
  $region6: #{decoder_forward.24} parent=0 // pred_check
    _
  $region7: #{decoder_forward.24} parent=0 // pred_check_branch
    %15 = sbr.rel (0) target = $region9
  $region8: #{decoder_forward.24} parent=0 // pred_region
    _
  $region9: #{decoder_forward.24} parent=0 // pred_fallthru
    _
  // Predicated region
  $region10: #{decoder_forward.24} parent=0 // pred_check
    _
  $region11: #{decoder_forward.24} parent=0 // pred_check_branch
    %17 = sbr.rel (0) target = $region13
  $region12: #{decoder_forward.24} parent=0 // pred_region
    _
  $region13: #{decoder_forward.24} parent=0 // pred_fallthru
    _
  // Predicated region
  $region14: #{decoder_forward.24} parent=0 // pred_check
    _
  $region15: #{decoder_forward.24} parent=0 // pred_check_branch
    %19 = sbr.rel (0) target = $region17
  $region16: #{decoder_forward.24} parent=0 // pred_region
    _
  $region17: #{decoder_forward.24} parent=0 // pred_fallthru
    _
  // Predicated region
  $region18: #{decoder_forward.24} parent=0 // pred_check
    _
  $region19: #{decoder_forward.24} parent=0 // pred_check_branch
    %21 = sbr.rel (0) target = $region21
  $region20: #{decoder_forward.24} parent=0 // pred_region
    _
  $region21: #{decoder_forward.24} parent=0 // pred_fallthru
    _
  // Predicated region
  $region22: #{decoder_forward.24} parent=0 // pred_check
    _
  $region23: #{decoder_forward.24} parent=0 // pred_check_branch
    %23 = sbr.rel (0) target = $region25
  $region24: #{decoder_forward.24} parent=0 // pred_region
    _
  $region25: #{decoder_forward.24} parent=0 // pred_fallthru
    _
  // Predicated region
  $region26: #{decoder_forward.24} parent=0 // pred_check
    _
  $region27: #{decoder_forward.24} parent=0 // pred_check_branch
    %25 = sbr.rel (0) target = $region29
  $region28: #{decoder_forward.24} parent=0 // pred_region
    _
  $region29: #{decoder_forward.24} parent=0 // pred_fallthru
    _
  %v26 = vld [vmem:[%s0] sm:$0xff]
  %v27 = vld [vmem:[%s0 + $0x8] sm:$0xff]
  %v28 = vld [vmem:[%s1] sm:$0xff]
  %v29 = vld [vmem:[%s1 + $0x8] sm:$0xff]
  %v30 = vld [vmem:[%s1 + $0x10] sm:$0xff]
  %v31 = vld [vmem:[%s1 + $0x18] sm:$0xff]
  %v32 = vld [vmem:[%s2] sm:$0x1]
  %v34 = vlaneseq
  %v35 = vshrl.u32 %v34, 7
  %v36 = vsub.s32 0, %v35
  %v37 = vrot.slane %v32, %v36
  %vm39 = vcmask 261120
  %v41 = vsel %vm39, %v26, 0
  %v44 = vsel %vm39, %v27, 0
  %46 = vmatprep.subr.mxu0 0.0
  %47 = vmatpush1.msra.mxu0 %v28
  %48 = vmatprep.subr.mxu0 0.0
  %49 = vmatpush1.msra.mxu0 %v29
  %50 = vmatprep.subr.mxu0 0.0
  %51 = vmatpush1.msra.mxu0 %v30
  %52 = vmatprep.subr.mxu0 0.0
  %53 = vmatpush1.msra.mxu0 %v31
  %54 = vmatprep.subr.mxu0 0.0
  %55 = vmatpush1.msra.mxu0 0.0
  %56 = vmatprep.subr.mxu0 0.0
  %57 = vmatpush1.msra.mxu0 0.0
  %58 = vmatprep.subr.mxu0 0.0
  %59 = vmatpush1.msra.mxu0 0.0
  %60 = vmatprep.subr.mxu0 0.0
  %61 = vmatpush1.msra.mxu0 0.0
  %62 = vmatprep.subr.mxu0 0.0
  %63 = vmatpush1.msra.mxu0 0.0
  %64 = vmatprep.subr.mxu0 0.0
  %65 = vmatpush1.msra.mxu0 0.0
  %66 = vmatprep.subr.mxu0 0.0
  %67 = vmatpush1.msra.mxu0 0.0
  %68 = vmatprep.subr.mxu0 0.0
  %69 = vmatpush1.msra.mxu0 0.0
  %70 = vmatprep.subr.mxu0 0.0
  %71 = vmatpush1.msra.mxu0 0.0
  %72 = vmatprep.subr.mxu0 0.0
  %73 = vmatpush1.msra.mxu0 0.0
  %74 = vmatprep.subr.mxu0 0.0
  %75 = vmatpush1.msra.mxu0 0.0
  %76 = vmatprep.subr.mxu0 0.0
  %77 = vmatpush1.msra.mxu0 0.0
  %78 = vmatprep.subr.mxu0 0.0
  %79 = vmatpush1.msra.mxu0 0.0
  %80 = vmatprep.subr.mxu0 0.0
  %81 = vmatpush1.msra.mxu0 0.0
  %82 = vmatprep.subr.mxu0 0.0
  %83 = vmatpush1.msra.mxu0 0.0
  %84 = vmatprep.subr.mxu0 0.0
  %85 = vmatpush1.msra.mxu0 0.0
  %86 = vmatprep.subr.mxu0 0.0
  %87 = vmatpush1.msra.mxu0 0.0
  %88 = vmatprep.subr.mxu0 0.0
  %89 = vmatpush1.msra.mxu0 0.0
  %90 = vmatprep.subr.mxu0 0.0
  %91 = vmatpush1.msra.mxu0 0.0
  %92 = vmatprep.subr.mxu0 0.0
  %93 = vmatpush1.msra.mxu0 0.0
  %94 = vmatprep.subr.mxu0 0.0
  %95 = vmatpush1.msra.mxu0 0.0
  %96 = vmatprep.subr.mxu0 0.0
  %97 = vmatpush1.msra.mxu0 0.0
  %98 = vmatprep.subr.mxu0 0.0
  %99 = vmatpush1.msra.mxu0 0.0
  %100 = vmatprep.subr.mxu0 0.0
  %101 = vmatpush1.msra.mxu0 0.0
  %102 = vmatprep.subr.mxu0 0.0
  %103 = vmatpush1.msra.mxu0 0.0
  %104 = vmatprep.subr.mxu0 0.0
  %105 = vmatpush1.msra.mxu0 0.0
  %106 = vmatprep.subr.mxu0 0.0
  %107 = vmatpush1.msra.mxu0 0.0
  %108 = vmatprep.subr.mxu0 0.0
  %109 = vmatpush1.msra.mxu0 0.0
  %110 = vmatprep.mubr.f32.mxu0 0.0
  %111 = vmatmul.mubr.f32.gmra.mrb[0].mxu0 %v41
  %v112 = vpop.f32.mrb[0].mxu0
  %v113 = vadd.f32 %v37, %v112
  %v114 = vpop.f32.mrb[0].mxu0
  %115 = vmatprep.mubr.f32.mxu0 0.0
  %116 = vmatmul.mubr.f32.gmra.mrb[0].mxu0 %v44
  %v117 = vpop.f32.mrb[0].mxu0
  %v118 = vadd.f32 %v37, %v117
  %v119 = vpop.f32.mrb[0].mxu0
  %120 = vdwg.mxu0
  %v121 = vmax.f32 %v113, 0.0
  %v122 = vmax.f32 %v118, 0.0
  %v123 = vld [vmem:[%s3] sm:$0xff]
  %v124 = vld [vmem:[%s3 + $0x8] sm:$0xff]
  %v125 = vld [vmem:[%s3 + $0x10] sm:$0xff]
  %v126 = vld [vmem:[%s3 + $0x18] sm:$0xff]
  %v127 = vld [vmem:[%s3 + $0x20] sm:$0xff]
  %v128 = vld [vmem:[%s3 + $0x28] sm:$0xff]
  %v129 = vld [vmem:[%s3 + $0x30] sm:$0xff]
  %v130 = vld [vmem:[%s3 + $0x38] sm:$0xff]
  %v131 = vld [vmem:[%s4] sm:$0x1]
  %v133 = vlaneseq
  %v134 = vshrl.u32 %v133, 7
  %v135 = vsub.s32 0, %v134
  %v136 = vrot.slane %v131, %v135
  %vm138 = vcmask 523264
  %v140 = vsel %vm138, %v121, 0
  %v143 = vsel %vm138, %v122, 0
  %145 = vmatprep.subr.mxu0 0.0
  %146 = vmatpush1.msra.mxu0 %v123
  %147 = vmatprep.subr.mxu0 0.0
  %148 = vmatpush1.msra.mxu0 %v124
  %149 = vmatprep.subr.mxu0 0.0
  %150 = vmatpush1.msra.mxu0 %v125
  %151 = vmatprep.subr.mxu0 0.0
  %152 = vmatpush1.msra.mxu0 %v126
  %153 = vmatprep.subr.mxu0 0.0
  %154 = vmatpush1.msra.mxu0 %v127
  %155 = vmatprep.subr.mxu0 0.0
  %156 = vmatpush1.msra.mxu0 %v128
  %157 = vmatprep.subr.mxu0 0.0
  %158 = vmatpush1.msra.mxu0 %v129
  %159 = vmatprep.subr.mxu0 0.0
  %160 = vmatpush1.msra.mxu0 %v130
  %161 = vmatprep.subr.mxu0 0.0
  %162 = vmatpush1.msra.mxu0 0.0
  %163 = vmatprep.subr.mxu0 0.0
  %164 = vmatpush1.msra.mxu0 0.0
  %165 = vmatprep.subr.mxu0 0.0
  %166 = vmatpush1.msra.mxu0 0.0
  %167 = vmatprep.subr.mxu0 0.0
  %168 = vmatpush1.msra.mxu0 0.0
  %169 = vmatprep.subr.mxu0 0.0
  %170 = vmatpush1.msra.mxu0 0.0
  %171 = vmatprep.subr.mxu0 0.0
  %172 = vmatpush1.msra.mxu0 0.0
  %173 = vmatprep.subr.mxu0 0.0
  %174 = vmatpush1.msra.mxu0 0.0
  %175 = vmatprep.subr.mxu0 0.0
  %176 = vmatpush1.msra.mxu0 0.0
  %177 = vmatprep.subr.mxu0 0.0
  %178 = vmatpush1.msra.mxu0 0.0
  %179 = vmatprep.subr.mxu0 0.0
  %180 = vmatpush1.msra.mxu0 0.0
  %181 = vmatprep.subr.mxu0 0.0
  %182 = vmatpush1.msra.mxu0 0.0
  %183 = vmatprep.subr.mxu0 0.0
  %184 = vmatpush1.msra.mxu0 0.0
  %185 = vmatprep.subr.mxu0 0.0
  %186 = vmatpush1.msra.mxu0 0.0
  %187 = vmatprep.subr.mxu0 0.0
  %188 = vmatpush1.msra.mxu0 0.0
  %189 = vmatprep.subr.mxu0 0.0
  %190 = vmatpush1.msra.mxu0 0.0
  %191 = vmatprep.subr.mxu0 0.0
  %192 = vmatpush1.msra.mxu0 0.0
  %193 = vmatprep.subr.mxu0 0.0
  %194 = vmatpush1.msra.mxu0 0.0
  %195 = vmatprep.subr.mxu0 0.0
  %196 = vmatpush1.msra.mxu0 0.0
  %197 = vmatprep.subr.mxu0 0.0
  %198 = vmatpush1.msra.mxu0 0.0
  %199 = vmatprep.subr.mxu0 0.0
  %200 = vmatpush1.msra.mxu0 0.0
  %201 = vmatprep.subr.mxu0 0.0
  %202 = vmatpush1.msra.mxu0 0.0
  %203 = vmatprep.subr.mxu0 0.0
  %204 = vmatpush1.msra.mxu0 0.0
  %205 = vmatprep.subr.mxu0 0.0
  %206 = vmatpush1.msra.mxu0 0.0
  %207 = vmatprep.subr.mxu0 0.0
  %208 = vmatpush1.msra.mxu0 0.0
  %209 = vmatprep.mubr.f32.mxu0 0.0
  %210 = vmatmul.mubr.f32.gmra.mrb[0].mxu0 %v140
  %v211 = vpop.f32.mrb[0].mxu0
  %v212 = vadd.f32 %v136, %v211
  %v213 = vpop.f32.mrb[0].mxu0
  %214 = vmatprep.mubr.f32.mxu0 0.0
  %215 = vmatmul.mubr.f32.gmra.mrb[0].mxu0 %v143
  %v216 = vpop.f32.mrb[0].mxu0
  %v217 = vadd.f32 %v136, %v216
  %v218 = vpop.f32.mrb[0].mxu0
  %219 = vdwg.mxu0
  %v220 = vadd.f32 %v212, %v26
  %v221 = vadd.f32 %v217, %v27
  %v222 = vsel %vm39, %v220, 0.0
  %223 = vadd.xlane.f32.xlu0 %v222
  %v224 = vpop.xlane.xlu0 %223
  %v225 = vsel %vm39, %v221, 0.0
  %226 = vadd.xlane.f32.xlu0 %v225
  %v227 = vpop.xlane.xlu0 %226
  %v228 = vrcp.pop 32.0
  %v229 = vmul.f32 %v224, %v228
  %v230 = vmul.f32 %v227, %v228
  %v231 = vsub.f32 %v220, %v229
  %v232 = vsub.f32 %v221, %v230
  %v233 = vmul.f32 %v231, %v231
  %v234 = vmul.f32 %v232, %v232
  %v235 = vsel %vm39, %v233, 0.0
  %236 = vadd.xlane.f32.xlu0 %v235
  %v237 = vpop.xlane.xlu0 %236
  %v238 = vsel %vm39, %v234, 0.0
  %239 = vadd.xlane.f32.xlu0 %v238
  %v240 = vpop.xlane.xlu0 %239
  %v241 = vmul.f32 %v237, %v228
  %v242 = vmul.f32 %v240, %v228
  %v243 = vadd.f32 %v241, 1e-05
  %v244 = vadd.f32 %v242, 1e-05
  %v245 = vrsqrt.pop %v243
  %v246 = vrsqrt.pop %v244
  %v247 = vmul.f32 %v231, %v245
  %v248 = vmul.f32 %v232, %v246
  %v249 = vld [vmem:[%s5] sm:$0x1]
  %v251 = vlaneseq
  %v252 = vshrl.u32 %v251, 7
  %v253 = vsub.s32 0, %v252
  %v254 = vrot.slane %v249, %v253
  %v256 = vmul.f32 %v247, %v254
  %v257 = vmul.f32 %v248, %v254
  %v258 = vld [vmem:[%s6] sm:$0x1]
  %v260 = vlaneseq
  %v261 = vshrl.u32 %v260, 7
  %v262 = vsub.s32 0, %v261
  %v263 = vrot.slane %v258, %v262
  %v265 = vadd.f32 %v256, %v263
  %v266 = vadd.f32 %v257, %v263
  %267 = vst.msk [vmem:[%s7] sm:$0xff] %vm39, %v265
  %268 = vst.msk [vmem:[%s7 + $0x8] sm:$0xff] %vm39, %v266
  // Predicated region
  $region30: #{decoder_forward.24} parent=0 // pred_check
    _
  $region31: #{decoder_forward.24} parent=0 // pred_check_branch
    %270 = sbr.rel (0) target = $region33
  $region32: #{decoder_forward.24} parent=0 // pred_region
    _
  $region33: #{decoder_forward.24} parent=0 // pred_fallthru
    _
  // Predicated region
  $region34: #{decoder_forward.24} parent=0 // pred_check
    _
  $region35: #{decoder_forward.24} parent=0 // pred_check_branch
    %272 = sbr.rel (0) target = $region37
  $region36: #{decoder_forward.24} parent=0 // pred_region
    _
  $region37: #{decoder_forward.24} parent=0 // pred_fallthru
    _

// kernel: decoder_forward.33
$region0: #{decoder_forward.33}
  #allocation0 [shape = 'u32[]', space=smem, size = 0x4, offset = 0x4, fixed_abs, tag = 'smem constant byte address 0x4 - core index']
  #allocation1 [shape = 'u32[144,128]{1,0:T(1,128)}', space=vmem, size = 0x12000, scoped, tag = 'internal scratch']
  %s0 = inlined_call_operand.vmem [shape: f32[16,32], index: 0, kind: input, shape index: {}]
  %s1 = inlined_call_operand.vmem [shape: f32[32,64], index: 1, kind: input, shape index: {}]
  %s2 = inlined_call_operand.vmem [shape: f32[1,64], index: 2, kind: input, shape index: {}]
  %s3 = inlined_call_operand.hbm [shape: f32[16,64], index: 3, kind: output, shape index: {}]
  %s4 = sld [smem:[#allocation0]]
  $region22: #{decoder_forward.33} parent=0
    _
  %s6 = ssub.s32 1, %s4
  %s7 = scalar_select 0, %s6, %s4
  $region1: #{decoder_forward.33} parent=0
    #allocation2 [shape = 'u8[8192]{0}', space=vmem, size = 0x2000, scoped, tag = 'output window, operand 0, single buffered']
    #allocation3 [shape = 's32[1]{0}', space=sflag, size = 0x4, scoped, tag = 'scoped memory for decoder_forward.33']
    %8 = vsyncpa [#allocation3], 0
    // Predicated region
    $region2: #{decoder_forward.33} parent=1 // pred_check
      _
    $region3: #{decoder_forward.33} parent=1 // pred_check_branch
      %10 = sbr.rel (0) target = $region5
    $region4: #{decoder_forward.33} parent=1 // pred_region
      _
    $region5: #{decoder_forward.33} parent=1 // pred_fallthru
      _
    // Predicated region
    $region6: #{decoder_forward.33} parent=1 // pred_check
      _
    $region7: #{decoder_forward.33} parent=1 // pred_check_branch
      %12 = sbr.rel (0) target = $region9
    $region8: #{decoder_forward.33} parent=1 // pred_region
      _
    $region9: #{decoder_forward.33} parent=1 // pred_fallthru
      _
    // Predicated region
    $region10: #{decoder_forward.33} parent=1 // pred_check
      _
    $region11: #{decoder_forward.33} parent=1 // pred_check_branch
      %14 = sbr.rel (0) target = $region13
    $region12: #{decoder_forward.33} parent=1 // pred_region
      _
    $region13: #{decoder_forward.33} parent=1 // pred_fallthru
      _
    %v15 = vld [vmem:[%s0] sm:$0xff]
    %v16 = vld [vmem:[%s0 + $0x8] sm:$0xff]
    %v17 = vld [vmem:[%s1] sm:$0xff]
    %v18 = vld [vmem:[%s1 + $0x8] sm:$0xff]
    %v19 = vld [vmem:[%s1 + $0x10] sm:$0xff]
    %v20 = vld [vmem:[%s1 + $0x18] sm:$0xff]
    %v21 = vld [vmem:[%s2] sm:$0x1]
    %v23 = vlaneseq
    %v24 = vshrl.u32 %v23, 7
    %v25 = vsub.s32 0, %v24
    %v26 = vrot.slane %v21, %v25
    %vm28 = vcmask 261120
    %v30 = vsel %vm28, %v15, 0
    %v33 = vsel %vm28, %v16, 0
    %35 = vmatprep.subr.mxu0 0.0
    %36 = vmatpush1.msra.mxu0 %v17
    %37 = vmatprep.subr.mxu0 0.0
    %38 = vmatpush1.msra.mxu0 %v18
    %39 = vmatprep.subr.mxu0 0.0
    %40 = vmatpush1.msra.mxu0 %v19
    %41 = vmatprep.subr.mxu0 0.0
    %42 = vmatpush1.msra.mxu0 %v20
    %43 = vmatprep.subr.mxu0 0.0
    %44 = vmatpush1.msra.mxu0 0.0
    %45 = vmatprep.subr.mxu0 0.0
    %46 = vmatpush1.msra.mxu0 0.0
    %47 = vmatprep.subr.mxu0 0.0
    %48 = vmatpush1.msra.mxu0 0.0
    %49 = vmatprep.subr.mxu0 0.0
    %50 = vmatpush1.msra.mxu0 0.0
    %51 = vmatprep.subr.mxu0 0.0
    %52 = vmatpush1.msra.mxu0 0.0
    %53 = vmatprep.subr.mxu0 0.0
    %54 = vmatpush1.msra.mxu0 0.0
    %55 = vmatprep.subr.mxu0 0.0
    %56 = vmatpush1.msra.mxu0 0.0
    %57 = vmatprep.subr.mxu0 0.0
    %58 = vmatpush1.msra.mxu0 0.0
    %59 = vmatprep.subr.mxu0 0.0
    %60 = vmatpush1.msra.mxu0 0.0
    %61 = vmatprep.subr.mxu0 0.0
    %62 = vmatpush1.msra.mxu0 0.0
    %63 = vmatprep.subr.mxu0 0.0
    %64 = vmatpush1.msra.mxu0 0.0
    %65 = vmatprep.subr.mxu0 0.0
    %66 = vmatpush1.msra.mxu0 0.0
    %67 = vmatprep.subr.mxu0 0.0
    %68 = vmatpush1.msra.mxu0 0.0
    %69 = vmatprep.subr.mxu0 0.0
    %70 = vmatpush1.msra.mxu0 0.0
    %71 = vmatprep.subr.mxu0 0.0
    %72 = vmatpush1.msra.mxu0 0.0
    %73 = vmatprep.subr.mxu0 0.0
    %74 = vmatpush1.msra.mxu0 0.0
    %75 = vmatprep.subr.mxu0 0.0
    %76 = vmatpush1.msra.mxu0 0.0
    %77 = vmatprep.subr.mxu0 0.0
    %78 = vmatpush1.msra.mxu0 0.0
    %79 = vmatprep.subr.mxu0 0.0
    %80 = vmatpush1.msra.mxu0 0.0
    %81 = vmatprep.subr.mxu0 0.0
    %82 = vmatpush1.msra.mxu0 0.0
    %83 = vmatprep.subr.mxu0 0.0
    %84 = vmatpush1.msra.mxu0 0.0
    %85 = vmatprep.subr.mxu0 0.0
    %86 = vmatpush1.msra.mxu0 0.0
    %87 = vmatprep.subr.mxu0 0.0
    %88 = vmatpush1.msra.mxu0 0.0
    %89 = vmatprep.subr.mxu0 0.0
    %90 = vmatpush1.msra.mxu0 0.0
    %91 = vmatprep.subr.mxu0 0.0
    %92 = vmatpush1.msra.mxu0 0.0
    %93 = vmatprep.subr.mxu0 0.0
    %94 = vmatpush1.msra.mxu0 0.0
    %95 = vmatprep.subr.mxu0 0.0
    %96 = vmatpush1.msra.mxu0 0.0
    %97 = vmatprep.subr.mxu0 0.0
    %98 = vmatpush1.msra.mxu0 0.0
    %99 = vmatprep.mubr.f32.mxu0 0.0
    %100 = vmatmul.mubr.f32.gmra.mrb[0].mxu0 %v30
    %v101 = vpop.f32.mrb[0].mxu0
    %v102 = vadd.f32 %v26, %v101
    %v103 = vpop.f32.mrb[0].mxu0
    %104 = vmatprep.mubr.f32.mxu0 0.0
    %105 = vmatmul.mubr.f32.gmra.mrb[0].mxu0 %v33
    %v106 = vpop.f32.mrb[0].mxu0
    %v107 = vadd.f32 %v26, %v106
    %v108 = vpop.f32.mrb[0].mxu0
    %109 = vdwg.mxu0
    %vm110 = vcmask 523264
    %111 = vst.msk [vmem:[#allocation2] sm:$0xff] %vm110, %v102
    %112 = vst.msk [vmem:[#allocation2 + $0x8] sm:$0xff] %vm110, %v107
    // Predicated region
    $region14: #{decoder_forward.33} parent=1 // pred_check
      _
    $region15: #{decoder_forward.33} parent=1 // pred_check_branch
      %114 = sbr.rel (0) target = $region17
    $region16: #{decoder_forward.33} parent=1 // pred_region
      %s116 = ssub.s32 256, 256
      %117 = vsyncadd [#allocation3], %s116
      %s118 = sshll.u32 [#allocation2], 4
      %s119 = int_to_ptr.vmem [resolvable:$true] %s118
      %124 = dma.vmem_to_hbm [thread:$0]  %s119, 256, %s3, [#allocation3], 128, 128, 8
    $region17: #{decoder_forward.33} parent=1 // pred_fallthru
      _
    // Predicated region
    $region18: #{decoder_forward.33} parent=1 // pred_check
      _
    $region19: #{decoder_forward.33} parent=1 // pred_check_branch
      %126 = sbr.rel (0) target = $region21
    $region20: #{decoder_forward.33} parent=1 // pred_region
      %127 = dma.done [#allocation3], 256
    $region21: #{decoder_forward.33} parent=1 // pred_fallthru
      _
    %128 = vsyncpa [#allocation3], 1

// kernel: decoder_forward.22
$region0: #{decoder_forward.22}
  #allocation0 [shape = 'u32[]', space=smem, size = 0x4, offset = 0x4, fixed_abs, tag = 'smem constant byte address 0x4 - core index']
  #allocation1 [shape = 'u32[144,128]{1,0:T(1,128)}', space=vmem, size = 0x12000, scoped, tag = 'internal scratch']
  #allocation2 [shape = 's32[1]{0}', space=sflag, size = 0x4, scoped, tag = 'scoped memory for decoder_forward.22']
  #allocation3 [shape = 'u8[512]{0}', space=smem, size = 0x200, scoped, tag = 'prefetched SMEM operand 0']
  %s0 = inlined_call_operand.vmem [shape: s32[2], index: 0, kind: input, shape index: {}]
  %s1 = inlined_call_operand.vmem [shape: f32[2,4,8,8], index: 1, kind: input, shape index: {}]
  %s2 = inlined_call_operand.vmem [shape: f32[2,4,12,8], index: 2, kind: input, shape index: {}]
  %s3 = inlined_call_operand.vmem [shape: f32[2,4,12,8], index: 3, kind: input, shape index: {}]
  %s4 = inlined_call_operand.vmem [shape: f32[2,4,8,8], index: 4, kind: output, shape index: {}]
  %s5 = sld [smem:[#allocation0]]
  $region45: #{decoder_forward.22} parent=0
    _
  %s7 = ssub.s32 1, %s5
  %s8 = scalar_select 0, %s7, %s5
  %s9 = sshll.u32 %s0, 4
  %s10 = int_to_ptr.vmem [resolvable:$true] %s9
  %12 = dma.vmem_to_smem %s10, 16, [#allocation3], [#allocation2]
  %13 = dma.done [#allocation2], 16
  %14 = sfence
  loop: start=0, step=1, limit=4
  $region2: #{decoder_forward.22} parent=0 // loop_pre_header
    _
  $region3: #{decoder_forward.22} parent=0 // loop_header
    %s16 = sphi 0, %s20
    %p17 = scmp.ge.s32.totalorder %s16, 4
    %s26 = sphi 0, %s28
    %s29 = sphi 0, %s26
    %s30 = sphi 0, %s29
    %s46 = sphi 0, %s30
    %s52 = sphi 0, %s54
    %s55 = sphi 0, %s52
    %s56 = sphi 0, %s55
    %s72 = sphi 0, %s56
    %s78 = sphi 0, %s80
    %s81 = sphi 0, %s78
    %s82 = sphi 0, %s81
    %s98 = sphi 0, %s82
    %s104 = sphi 0, %s106
    %s107 = sphi 0, %s104
    %s108 = sphi 0, %s107
    %s124 = sphi 0, %s108
  $region4: #{decoder_forward.22} parent=0 // loop_header_branch
    %19 = sbr.rel (%p17) target = $region8
  $region5: #{decoder_forward.22} parent=0 // loop_body
    %s21 = ssub.s32 %s16, 1
    %s22 = ssub.s32 %s16, 2
    %s23 = sadd.s32 %s16, 1
    %s24 = ssub.s32 %s16, %s23
    %p25 = scmp.eq.s32.totalorder %s24, 0
    %s27 = sadd.s32 %s26, 1
    %s28 = scalar_select %p25, %s26, %s27
    %p31 = pneg %p25
    %p32 = scmp.eq.s32.totalorder %s16, 1
    %p33 = por %p31, %p32
    %p34 = scmp.ne.s32.totalorder %s26, %s29
    %p35 = scmp.eq.s32.totalorder %s16, 0
    %p36 = por %p34, %p35
    %p37 = scmp.ne.s32.totalorder %s26, %s29
    %p38 = scmp.eq.s32.totalorder %s21, 1
    %p39 = por %p37, %p38
    %p40 = scmp.ne.s32.totalorder %s29, %s30
    %p41 = scmp.eq.s32.totalorder %s21, 0
    %p42 = por %p40, %p41
    %p43 = scmp.ne.s32.totalorder %s29, %s30
    %p44 = scmp.eq.s32.totalorder %s22, 1
    %p45 = por %p43, %p44
    %p47 = scmp.ne.s32.totalorder %s30, %s46
    %p48 = scmp.eq.s32.totalorder %s22, 0
    %p49 = por %p47, %p48
    %s50 = ssub.s32 %s16, %s23
    %p51 = scmp.eq.s32.totalorder %s50, 0
    %s53 = sadd.s32 %s52, 1
    %s54 = scalar_select %p51, %s52, %s53
    %p57 = pneg %p51
    %p58 = scmp.eq.s32.totalorder %s16, 1
    %p59 = por %p57, %p58
    %p60 = scmp.ne.s32.totalorder %s52, %s55
    %p61 = scmp.eq.s32.totalorder %s16, 0
    %p62 = por %p60, %p61
    %p63 = scmp.ne.s32.totalorder %s52, %s55
    %p64 = scmp.eq.s32.totalorder %s21, 1
    %p65 = por %p63, %p64
    %p66 = scmp.ne.s32.totalorder %s55, %s56
    %p67 = scmp.eq.s32.totalorder %s21, 0
    %p68 = por %p66, %p67
    %p69 = scmp.ne.s32.totalorder %s55, %s56
    %p70 = scmp.eq.s32.totalorder %s22, 1
    %p71 = por %p69, %p70
    %p73 = scmp.ne.s32.totalorder %s56, %s72
    %p74 = scmp.eq.s32.totalorder %s22, 0
    %p75 = por %p73, %p74
    %s76 = ssub.s32 %s16, %s23
    %p77 = scmp.eq.s32.totalorder %s76, 0
    %s79 = sadd.s32 %s78, 1
    %s80 = scalar_select %p77, %s78, %s79
    %p83 = pneg %p77
    %p84 = scmp.eq.s32.totalorder %s16, 1
    %p85 = por %p83, %p84
    %p86 = scmp.ne.s32.totalorder %s78, %s81
    %p87 = scmp.eq.s32.totalorder %s16, 0
    %p88 = por %p86, %p87
    %p89 = scmp.ne.s32.totalorder %s78, %s81
    %p90 = scmp.eq.s32.totalorder %s21, 1
    %p91 = por %p89, %p90
    %p92 = scmp.ne.s32.totalorder %s81, %s82
    %p93 = scmp.eq.s32.totalorder %s21, 0
    %p94 = por %p92, %p93
    %p95 = scmp.ne.s32.totalorder %s81, %s82
    %p96 = scmp.eq.s32.totalorder %s22, 1
    %p97 = por %p95, %p96
    %p99 = scmp.ne.s32.totalorder %s82, %s98
    %p100 = scmp.eq.s32.totalorder %s22, 0
    %p101 = por %p99, %p100
    %s102 = ssub.s32 %s16, %s23
    %p103 = scmp.eq.s32.totalorder %s102, 0
    %s105 = sadd.s32 %s104, 1
    %s106 = scalar_select %p103, %s104, %s105
    %p109 = pneg %p103
    %p110 = scmp.eq.s32.totalorder %s16, 1
    %p111 = por %p109, %p110
    %p112 = scmp.ne.s32.totalorder %s104, %s107
    %p113 = scmp.eq.s32.totalorder %s16, 0
    %p114 = por %p112, %p113
    %p115 = scmp.ne.s32.totalorder %s104, %s107
    %p116 = scmp.eq.s32.totalorder %s21, 1
    %p117 = por %p115, %p116
    %p118 = scmp.ne.s32.totalorder %s107, %s108
    %p119 = scmp.eq.s32.totalorder %s21, 0
    %p120 = por %p118, %p119
    %p121 = scmp.ne.s32.totalorder %s107, %s108
    %p122 = scmp.eq.s32.totalorder %s22, 1
    %p123 = por %p121, %p122
    %p125 = scmp.ne.s32.totalorder %s108, %s124
    %p126 = scmp.eq.s32.totalorder %s22, 0
    %p127 = por %p125, %p126
    %p128 = scmp.le.s32.totalorder 1, %s16
    %p129 = scmp.lt.s32.totalorder %s16, 3
    %p130 = pnand %p128, %p129
    %p131 = pneg %p130
    // Predicated region
    $region9: #{decoder_forward.22} parent=5 // pred_check
      _
    $region10: #{decoder_forward.22} parent=5 // pred_check_branch
      %133 = sbr.rel (%p130) target = $region12
    $region11: #{decoder_forward.22} parent=5 // pred_region
      %s134 = ssub.s32 %s16, 1
    $region12: #{decoder_forward.22} parent=5 // pred_fallthru
      _
    %p135 = scmp.lt.s32.totalorder %s16, 2
    // Predicated region
    $region13: #{decoder_forward.22} parent=5 // pred_check
      %p136 = pneg %p135
    $region14: #{decoder_forward.22} parent=5 // pred_check_branch
      %138 = sbr.rel (%p136) target = $region16
    $region15: #{decoder_forward.22} parent=5 // pred_region
      // Predicated region
      $region17: #{decoder_forward.22} parent=15 // pred_check
        %p139 = pneg %p36
      $region18: #{decoder_forward.22} parent=15 // pred_check_branch
        %141 = sbr.rel (%p139) target = $region20
      $region19: #{decoder_forward.22} parent=15 // pred_region
        %p142 = scmp.lt.s32.totalorder %s16, 1
        %s143 = scalar_select %p142, %s16, 1
        %s144 = smul.addr %s143, 4
        %s145 = smul.addr %s144, 8
        %s146 = scalar_lea.vmem %s1, %s145
      $region20: #{decoder_forward.22} parent=15 // pred_fallthru
        _
      // Predicated region
      $region21: #{decoder_forward.22} parent=15 // pred_check
        %p147 = pneg %p62
      $region22: #{decoder_forward.22} parent=15 // pred_check_branch
        %149 = sbr.rel (%p147) target = $region24
      $region23: #{decoder_forward.22} parent=15 // pred_region
        %p150 = scmp.lt.s32.totalorder %s16, 1
        %s151 = scalar_select %p150, %s16, 1
        %s152 = smul.addr %s151, 8
        %s153 = smul.addr %s152, 8
        %s154 = scalar_lea.vmem %s2, %s153
      $region24: #{decoder_forward.22} parent=15 // pred_fallthru
        _
      // Predicated region
      $region25: #{decoder_forward.22} parent=15 // pred_check
        %p155 = pneg %p88
      $region26: #{decoder_forward.22} parent=15 // pred_check_branch
        %157 = sbr.rel (%p155) target = $region28
      $region27: #{decoder_forward.22} parent=15 // pred_region
        %p158 = scmp.lt.s32.totalorder %s16, 1
        %s159 = scalar_select %p158, %s16, 1
        %s160 = smul.addr %s159, 8
        %s161 = smul.addr %s160, 8
        %s162 = scalar_lea.vmem %s3, %s161
      $region28: #{decoder_forward.22} parent=15 // pred_fallthru
        _
    $region16: #{decoder_forward.22} parent=5 // pred_fallthru
      _
    %p163 = scmp.le.s32.totalorder 1, %s16
    %p164 = scmp.lt.s32.totalorder %s16, 3
    %p165 = pnand %p163, %p164
    %p166 = pneg %p165
    // Predicated region
    $region29: #{decoder_forward.22} parent=5 // pred_check
      _
    $region30: #{decoder_forward.22} parent=5 // pred_check_branch
      %168 = sbr.rel (%p165) target = $region32
    $region31: #{decoder_forward.22} parent=5 // pred_region
      %s169 = ssub.s32 %s16, 1
      %p170 = scmp.lt.s32.totalorder %s21, 1
      %s171 = scalar_select %p170, %s21, 1
      %s172 = smul.addr %s171, 4
      %s173 = smul.addr %s172, 8
      %s174 = scalar_lea.vmem %s1, %s173
      %p175 = pneg %p42
      %p176 = pneg %p39
      %p177 = scmp.lt.s32.totalorder %s21, 1
      %s178 = scalar_select %p177, %s21, 1
      %s179 = smul.addr %s178, 8
      %s180 = smul.addr %s179, 8
      %s181 = scalar_lea.vmem %s2, %s180
      %p182 = pneg %p68
      %p183 = pneg %p65
      %p184 = scmp.lt.s32.totalorder %s21, 1
      %s185 = scalar_select %p184, %s21, 1
      %s186 = smul.addr %s185, 8
      %s187 = smul.addr %s186, 8
      %s188 = scalar_lea.vmem %s3, %s187
      %p189 = pneg %p94
      %p190 = pneg %p91
      %p191 = pneg %p120
      %p192 = pneg %p117
      %p193 = scmp.lt.s32.totalorder %s21, 1
      %s194 = scalar_select %p193, %s21, 1
      %s195 = smul.addr %s194, 4
      %s196 = smul.addr %s195, 8
      %s197 = scalar_lea.vmem %s4, %s196
      %p198 = scmp.lt.s32.totalorder %s21, 1
      %s199 = scalar_select %p198, %s21, 1
      %s200 = smul.addr %s199, 4
      %s201 = smul.addr %s200, 8
      %s202 = scalar_lea.vmem %s1, %s201
      %p203 = scmp.lt.s32.totalorder %s21, 1
      %s204 = scalar_select %p203, %s21, 1
      %s205 = smul.addr %s204, 8
      %s206 = smul.addr %s205, 8
      %s207 = scalar_lea.vmem %s2, %s206
      %p208 = scmp.lt.s32.totalorder %s21, 1
      %s209 = scalar_select %p208, %s21, 1
      %s210 = smul.addr %s209, 8
      %s211 = smul.addr %s210, 8
      %s212 = scalar_lea.vmem %s3, %s211
      %p213 = scmp.lt.s32.totalorder %s21, 1
      %s214 = scalar_select %p213, %s21, 1
      %s215 = smul.addr %s214, 4
      %s216 = smul.addr %s215, 8
      %s217 = scalar_lea.vmem %s4, %s216
      %v218 = vld [vmem:[%s202] sm:$0xff]
      %v219 = vld [vmem:[%s202 + $0x8] sm:$0xff]
      %v220 = vld [vmem:[%s202 + $0x10] sm:$0xff]
      %v221 = vld [vmem:[%s202 + $0x18] sm:$0xff]
      %v222 = vld [vmem:[%s207] sm:$0xff]
      %v223 = vld [vmem:[%s207 + $0x8] sm:$0xf]
      %v224 = vld [vmem:[%s207 + $0x10] sm:$0xff]
      %v225 = vld [vmem:[%s207 + $0x18] sm:$0xf]
      %v226 = vld [vmem:[%s207 + $0x20] sm:$0xff]
      %v227 = vld [vmem:[%s207 + $0x28] sm:$0xf]
      %v228 = vld [vmem:[%s207 + $0x30] sm:$0xff]
      %v229 = vld [vmem:[%s207 + $0x38] sm:$0xf]
      %v230 = vld [vmem:[%s212] sm:$0xff]
      %v231 = vld [vmem:[%s212 + $0x8] sm:$0xf]
      %v232 = vld [vmem:[%s212 + $0x10] sm:$0xff]
      %v233 = vld [vmem:[%s212 + $0x18] sm:$0xf]
      %v234 = vld [vmem:[%s212 + $0x20] sm:$0xff]
      %v235 = vld [vmem:[%s212 + $0x28] sm:$0xf]
      %v236 = vld [vmem:[%s212 + $0x30] sm:$0xff]
      %v237 = vld [vmem:[%s212 + $0x38] sm:$0xf]
      %vm238 = vcmask 64512
      %v240 = vsel %vm238, %v218, 0
      %v243 = vsel %vm238, %v222, 0
      %v246 = vsel %vm238, %v223, 0
      %248 = vmatprep.subr.mxu0 0.0
      %249 = vmatpush1.xpose.msra.mxu0 %v243
      %250 = vmatprep.subr.mxu0 0.0
      %251 = vmatpush1.xpose.msra.mxu0 %v246
      %252 = vmatprep.subr.mxu0 0.0
      %253 = vmatpush1.xpose.msra.mxu0 0.0
      %254 = vmatprep.subr.mxu0 0.0
      %255 = vmatpush1.xpose.msra.mxu0 0.0
      %256 = vmatprep.subr.mxu0 0.0
      %257 = vmatpush1.xpose.msra.mxu0 0.0
      %258 = vmatprep.subr.mxu0 0.0
      %259 = vmatpush1.xpose.msra.mxu0 0.0
      %260 = vmatprep.subr.mxu0 0.0
      %261 = vmatpush1.xpose.msra.mxu0 0.0
      %262 = vmatprep.subr.mxu0 0.0
      %263 = vmatpush1.xpose.msra.mxu0 0.0
      %264 = vmatprep.subr.mxu0 0.0
      %265 = vmatpush1.xpose.msra.mxu0 0.0
      %266 = vmatprep.subr.mxu0 0.0
      %267 = vmatpush1.xpose.msra.mxu0 0.0
      %268 = vmatprep.subr.mxu0 0.0
      %269 = vmatpush1.xpose.msra.mxu0 0.0
      %270 = vmatprep.subr.mxu0 0.0
      %271 = vmatpush1.xpose.msra.mxu0 0.0
      %272 = vmatprep.subr.mxu0 0.0
      %273 = vmatpush1.xpose.msra.mxu0 0.0
      %274 = vmatprep.subr.mxu0 0.0
      %275 = vmatpush1.xpose.msra.mxu0 0.0
      %276 = vmatprep.subr.mxu0 0.0
      %277 = vmatpush1.xpose.msra.mxu0 0.0
      %278 = vmatprep.subr.mxu0 0.0
      %279 = vmatpush1.xpose.msra.mxu0 0.0
      %280 = vmatprep.subr.mxu0 0.0
      %281 = vmatpush1.xpose.msra.mxu0 0.0
      %282 = vmatprep.subr.mxu0 0.0
      %283 = vmatpush1.xpose.msra.mxu0 0.0
      %284 = vmatprep.subr.mxu0 0.0
      %285 = vmatpush1.xpose.msra.mxu0 0.0
      %286 = vmatprep.subr.mxu0 0.0
      %287 = vmatpush1.xpose.msra.mxu0 0.0
      %288 = vmatprep.subr.mxu0 0.0
      %289 = vmatpush1.xpose.msra.mxu0 0.0
      %290 = vmatprep.subr.mxu0 0.0
      %291 = vmatpush1.xpose.msra.mxu0 0.0
      %292 = vmatprep.subr.mxu0 0.0
      %293 = vmatpush1.xpose.msra.mxu0 0.0
      %294 = vmatprep.subr.mxu0 0.0
      %295 = vmatpush1.xpose.msra.mxu0 0.0
      %296 = vmatprep.subr.mxu0 0.0
      %297 = vmatpush1.xpose.msra.mxu0 0.0
      %298 = vmatprep.subr.mxu0 0.0
      %299 = vmatpush1.xpose.msra.mxu0 0.0
      %300 = vmatprep.subr.mxu0 0.0
      %301 = vmatpush1.xpose.msra.mxu0 0.0
      %302 = vmatprep.subr.mxu0 0.0
      %303 = vmatpush1.xpose.msra.mxu0 0.0
      %304 = vmatprep.subr.mxu0 0.0
      %305 = vmatpush1.xpose.msra.mxu0 0.0
      %306 = vmatprep.subr.mxu0 0.0
      %307 = vmatpush1.xpose.msra.mxu0 0.0
      %308 = vmatprep.subr.mxu0 0.0
      %309 = vmatpush1.xpose.msra.mxu0 0.0
      %310 = vmatprep.subr.mxu0 0.0
      %311 = vmatpush1.xpose.msra.mxu0 0.0
      %312 = vmatprep.mubr.f32.mxu0 0.0
      %313 = vmatmul.mubr.f32.gmra.mrb[0].mxu0 %v240
      %v314 = vpop.f32.mrb[0].mxu0
      %v315 = vadd.f32 0.0, %v314
      %v316 = vpop.f32.mrb[0].mxu0
      %317 = vdwg.mxu0
      %v319 = vsel %vm238, %v219, 0
      %v322 = vsel %vm238, %v224, 0
      %v325 = vsel %vm238, %v225, 0
      %327 = vmatprep.subr.mxu0 0.0
      %328 = vmatpush1.xpose.msra.mxu0 %v322
      %329 = vmatprep.subr.mxu0 0.0
      %330 = vmatpush1.xpose.msra.mxu0 %v325
      %331 = vmatprep.subr.mxu0 0.0
      %332 = vmatpush1.xpose.msra.mxu0 0.0
      %333 = vmatprep.subr.mxu0 0.0
      %334 = vmatpush1.xpose.msra.mxu0 0.0
      %335 = vmatprep.subr.mxu0 0.0
      %336 = vmatpush1.xpose.msra.mxu0 0.0
      %337 = vmatprep.subr.mxu0 0.0
      %338 = vmatpush1.xpose.msra.mxu0 0.0
      %339 = vmatprep.subr.mxu0 0.0
      %340 = vmatpush1.xpose.msra.mxu0 0.0
      %341 = vmatprep.subr.mxu0 0.0
      %342 = vmatpush1.xpose.msra.mxu0 0.0
      %343 = vmatprep.subr.mxu0 0.0
      %344 = vmatpush1.xpose.msra.mxu0 0.0
      %345 = vmatprep.subr.mxu0 0.0
      %346 = vmatpush1.xpose.msra.mxu0 0.0
      %347 = vmatprep.subr.mxu0 0.0
      %348 = vmatpush1.xpose.msra.mxu0 0.0
      %349 = vmatprep.subr.mxu0 0.0
      %350 = vmatpush1.xpose.msra.mxu0 0.0
      %351 = vmatprep.subr.mxu0 0.0
      %352 = vmatpush1.xpose.msra.mxu0 0.0
      %353 = vmatprep.subr.mxu0 0.0
      %354 = vmatpush1.xpose.msra.mxu0 0.0
      %355 = vmatprep.subr.mxu0 0.0
      %356 = vmatpush1.xpose.msra.mxu0 0.0
      %357 = vmatprep.subr.mxu0 0.0
      %358 = vmatpush1.xpose.msra.mxu0 0.0
      %359 = vmatprep.subr.mxu0 0.0
      %360 = vmatpush1.xpose.msra.mxu0 0.0
      %361 = vmatprep.subr.mxu0 0.0
      %362 = vmatpush1.xpose.msra.mxu0 0.0
      %363 = vmatprep.subr.mxu0 0.0
      %364 = vmatpush1.xpose.msra.mxu0 0.0
      %365 = vmatprep.subr.mxu0 0.0
      %366 = vmatpush1.xpose.msra.mxu0 0.0
      %367 = vmatprep.subr.mxu0 0.0
      %368 = vmatpush1.xpose.msra.mxu0 0.0
      %369 = vmatprep.subr.mxu0 0.0
      %370 = vmatpush1.xpose.msra.mxu0 0.0
      %371 = vmatprep.subr.mxu0 0.0
      %372 = vmatpush1.xpose.msra.mxu0 0.0
      %373 = vmatprep.subr.mxu0 0.0
      %374 = vmatpush1.xpose.msra.mxu0 0.0
      %375 = vmatprep.subr.mxu0 0.0
      %376 = vmatpush1.xpose.msra.mxu0 0.0
      %377 = vmatprep.subr.mxu0 0.0
      %378 = vmatpush1.xpose.msra.mxu0 0.0
      %379 = vmatprep.subr.mxu0 0.0
      %380 = vmatpush1.xpose.msra.mxu0 0.0
      %381 = vmatprep.subr.mxu0 0.0
      %382 = vmatpush1.xpose.msra.mxu0 0.0
      %383 = vmatprep.subr.mxu0 0.0
      %384 = vmatpush1.xpose.msra.mxu0 0.0
      %385 = vmatprep.subr.mxu0 0.0
      %386 = vmatpush1.xpose.msra.mxu0 0.0
      %387 = vmatprep.subr.mxu0 0.0
      %388 = vmatpush1.xpose.msra.mxu0 0.0
      %389 = vmatprep.subr.mxu0 0.0
      %390 = vmatpush1.xpose.msra.mxu0 0.0
      %391 = vmatprep.mubr.f32.mxu0 0.0
      %392 = vmatmul.mubr.f32.gmra.mrb[0].mxu0 %v319
      %v393 = vpop.f32.mrb[0].mxu0
      %v394 = vadd.f32 0.0, %v393
      %v395 = vpop.f32.mrb[0].mxu0
      %396 = vdwg.mxu0
      %v398 = vsel %vm238, %v220, 0
      %v401 = vsel %vm238, %v226, 0
      %v404 = vsel %vm238, %v227, 0
      %406 = vmatprep.subr.mxu0 0.0
      %407 = vmatpush1.xpose.msra.mxu0 %v401
      %408 = vmatprep.subr.mxu0 0.0
      %409 = vmatpush1.xpose.msra.mxu0 %v404
      %410 = vmatprep.subr.mxu0 0.0
      %411 = vmatpush1.xpose.msra.mxu0 0.0
      %412 = vmatprep.subr.mxu0 0.0
      %413 = vmatpush1.xpose.msra.mxu0 0.0
      %414 = vmatprep.subr.mxu0 0.0
      %415 = vmatpush1.xpose.msra.mxu0 0.0
      %416 = vmatprep.subr.mxu0 0.0
      %417 = vmatpush1.xpose.msra.mxu0 0.0
      %418 = vmatprep.subr.mxu0 0.0
      %419 = vmatpush1.xpose.msra.mxu0 0.0
      %420 = vmatprep.subr.mxu0 0.0
      %421 = vmatpush1.xpose.msra.mxu0 0.0
      %422 = vmatprep.subr.mxu0 0.0
      %423 = vmatpush1.xpose.msra.mxu0 0.0
      %424 = vmatprep.subr.mxu0 0.0
      %425 = vmatpush1.xpose.msra.mxu0 0.0
      %426 = vmatprep.subr.mxu0 0.0
      %427 = vmatpush1.xpose.msra.mxu0 0.0
      %428 = vmatprep.subr.mxu0 0.0
      %429 = vmatpush1.xpose.msra.mxu0 0.0
      %430 = vmatprep.subr.mxu0 0.0
      %431 = vmatpush1.xpose.msra.mxu0 0.0
      %432 = vmatprep.subr.mxu0 0.0
      %433 = vmatpush1.xpose.msra.mxu0 0.0
      %434 = vmatprep.subr.mxu0 0.0
      %435 = vmatpush1.xpose.msra.mxu0 0.0
      %436 = vmatprep.subr.mxu0 0.0
      %437 = vmatpush1.xpose.msra.mxu0 0.0
      %438 = vmatprep.subr.mxu0 0.0
      %439 = vmatpush1.xpose.msra.mxu0 0.0
      %440 = vmatprep.subr.mxu0 0.0
      %441 = vmatpush1.xpose.msra.mxu0 0.0
      %442 = vmatprep.subr.mxu0 0.0
      %443 = vmatpush1.xpose.msra.mxu0 0.0
      %444 = vmatprep.subr.mxu0 0.0
      %445 = vmatpush1.xpose.msra.mxu0 0.0
      %446 = vmatprep.subr.mxu0 0.0
      %447 = vmatpush1.xpose.msra.mxu0 0.0
      %448 = vmatprep.subr.mxu0 0.0
      %449 = vmatpush1.xpose.msra.mxu0 0.0
      %450 = vmatprep.subr.mxu0 0.0
      %451 = vmatpush1.xpose.msra.mxu0 0.0
      %452 = vmatprep.subr.mxu0 0.0
      %453 = vmatpush1.xpose.msra.mxu0 0.0
      %454 = vmatprep.subr.mxu0 0.0
      %455 = vmatpush1.xpose.msra.mxu0 0.0
      %456 = vmatprep.subr.mxu0 0.0
      %457 = vmatpush1.xpose.msra.mxu0 0.0
      %458 = vmatprep.subr.mxu0 0.0
      %459 = vmatpush1.xpose.msra.mxu0 0.0
      %460 = vmatprep.subr.mxu0 0.0
      %461 = vmatpush1.xpose.msra.mxu0 0.0
      %462 = vmatprep.subr.mxu0 0.0
      %463 = vmatpush1.xpose.msra.mxu0 0.0
      %464 = vmatprep.subr.mxu0 0.0
      %465 = vmatpush1.xpose.msra.mxu0 0.0
      %466 = vmatprep.subr.mxu0 0.0
      %467 = vmatpush1.xpose.msra.mxu0 0.0
      %468 = vmatprep.subr.mxu0 0.0
      %469 = vmatpush1.xpose.msra.mxu0 0.0
      %470 = vmatprep.mubr.f32.mxu0 0.0
      %471 = vmatmul.mubr.f32.gmra.mrb[0].mxu0 %v398
      %v472 = vpop.f32.mrb[0].mxu0
      %v473 = vadd.f32 0.0, %v472
      %v474 = vpop.f32.mrb[0].mxu0
      %475 = vdwg.mxu0
      %v477 = vsel %vm238, %v221, 0
      %v480 = vsel %vm238, %v228, 0
      %v483 = vsel %vm238, %v229, 0
      %485 = vmatprep.subr.mxu0 0.0
      %486 = vmatpush1.xpose.msra.mxu0 %v480
      %487 = vmatprep.subr.mxu0 0.0
      %488 = vmatpush1.xpose.msra.mxu0 %v483
      %489 = vmatprep.subr.mxu0 0.0
      %490 = vmatpush1.xpose.msra.mxu0 0.0
      %491 = vmatprep.subr.mxu0 0.0
      %492 = vmatpush1.xpose.msra.mxu0 0.0
      %493 = vmatprep.subr.mxu0 0.0
      %494 = vmatpush1.xpose.msra.mxu0 0.0
      %495 = vmatprep.subr.mxu0 0.0
      %496 = vmatpush1.xpose.msra.mxu0 0.0
      %497 = vmatprep.subr.mxu0 0.0
      %498 = vmatpush1.xpose.msra.mxu0 0.0
      %499 = vmatprep.subr.mxu0 0.0
      %500 = vmatpush1.xpose.msra.mxu0 0.0
      %501 = vmatprep.subr.mxu0 0.0
      %502 = vmatpush1.xpose.msra.mxu0 0.0
      %503 = vmatprep.subr.mxu0 0.0
      %504 = vmatpush1.xpose.msra.mxu0 0.0
      %505 = vmatprep.subr.mxu0 0.0
      %506 = vmatpush1.xpose.msra.mxu0 0.0
      %507 = vmatprep.subr.mxu0 0.0
      %508 = vmatpush1.xpose.msra.mxu0 0.0
      %509 = vmatprep.subr.mxu0 0.0
      %510 = vmatpush1.xpose.msra.mxu0 0.0
      %511 = vmatprep.subr.mxu0 0.0
      %512 = vmatpush1.xpose.msra.mxu0 0.0
      %513 = vmatprep.subr.mxu0 0.0
      %514 = vmatpush1.xpose.msra.mxu0 0.0
      %515 = vmatprep.subr.mxu0 0.0
      %516 = vmatpush1.xpose.msra.mxu0 0.0
      %517 = vmatprep.subr.mxu0 0.0
      %518 = vmatpush1.xpose.msra.mxu0 0.0
      %519 = vmatprep.subr.mxu0 0.0
      %520 = vmatpush1.xpose.msra.mxu0 0.0
      %521 = vmatprep.subr.mxu0 0.0
      %522 = vmatpush1.xpose.msra.mxu0 0.0
      %523 = vmatprep.subr.mxu0 0.0
      %524 = vmatpush1.xpose.msra.mxu0 0.0
      %525 = vmatprep.subr.mxu0 0.0
      %526 = vmatpush1.xpose.msra.mxu0 0.0
      %527 = vmatprep.subr.mxu0 0.0
      %528 = vmatpush1.xpose.msra.mxu0 0.0
      %529 = vmatprep.subr.mxu0 0.0
      %530 = vmatpush1.xpose.msra.mxu0 0.0
      %531 = vmatprep.subr.mxu0 0.0
      %532 = vmatpush1.xpose.msra.mxu0 0.0
      %533 = vmatprep.subr.mxu0 0.0
      %534 = vmatpush1.xpose.msra.mxu0 0.0
      %535 = vmatprep.subr.mxu0 0.0
      %536 = vmatpush1.xpose.msra.mxu0 0.0
      %537 = vmatprep.subr.mxu0 0.0
      %538 = vmatpush1.xpose.msra.mxu0 0.0
      %539 = vmatprep.subr.mxu0 0.0
      %540 = vmatpush1.xpose.msra.mxu0 0.0
      %541 = vmatprep.subr.mxu0 0.0
      %542 = vmatpush1.xpose.msra.mxu0 0.0
      %543 = vmatprep.subr.mxu0 0.0
      %544 = vmatpush1.xpose.msra.mxu0 0.0
      %545 = vmatprep.subr.mxu0 0.0
      %546 = vmatpush1.xpose.msra.mxu0 0.0
      %547 = vmatprep.subr.mxu0 0.0
      %548 = vmatpush1.xpose.msra.mxu0 0.0
      %549 = vmatprep.mubr.f32.mxu0 0.0
      %550 = vmatmul.mubr.f32.gmra.mrb[0].mxu0 %v477
      %v551 = vpop.f32.mrb[0].mxu0
      %v552 = vadd.f32 0.0, %v551
      %v553 = vpop.f32.mrb[0].mxu0
      %554 = vdwg.mxu0
      %v555 = vmul.f32 %v315, 0.35355338
      %v556 = vmul.f32 %v394, 0.35355338
      %v557 = vmul.f32 %v473, 0.35355338
      %v558 = vmul.f32 %v552, 0.35355338
      %v559 = vlaneseq
      %v560 = vand.u32 %v559, 127
      %s561 = sld [smem:[#allocation3 + %s21]]
      %v562 = vstv %s561
      %vm563 = vcmp.ge.s32.totalorder %v560, %v562
      %v564 = vsel %vm563, -1e+30, %v555
      %v565 = vsel %vm563, -1e+30, %v556
      %v566 = vsel %vm563, -1e+30, %v557
      %v567 = vsel %vm563, -1e+30, %v558
      %vm568 = vcmask 97280
      %v569 = vsel %vm568, %v564, -inf
      %570 = vmax.xlane.f32.xlu0 %v569
      %v571 = vpop.xlane.xlu0 %570
      %v572 = vsel %vm568, %v565, -inf
      %573 = vmax.xlane.f32.xlu0 %v572
      %v574 = vpop.xlane.xlu0 %573
      %v575 = vsel %vm568, %v566, -inf
      %576 = vmax.xlane.f32.xlu0 %v575
      %v577 = vpop.xlane.xlu0 %576
      %v578 = vsel %vm568, %v567, -inf
      %579 = vmax.xlane.f32.xlu0 %v578
      %v580 = vpop.xlane.xlu0 %579
      %v581 = vsub.f32 %v564, %v571
      %v582 = vsub.f32 %v565, %v574
      %v583 = vsub.f32 %v566, %v577
      %v584 = vsub.f32 %v567, %v580
      %v585 = vmul.f32 %v581, 1.442695
      %v586 = vpow.pop %v585
      %v587 = vmul.f32 %v582, 1.442695
      %v588 = vpow.pop %v587
      %v589 = vmul.f32 %v583, 1.442695
      %v590 = vpow.pop %v589
      %v591 = vmul.f32 %v584, 1.442695
      %v592 = vpow.pop %v591
      %v593 = vsel %vm568, %v586, 0.0
      %594 = vadd.xlane.f32.xlu0 %v593
      %v595 = vpop.xlane.xlu0 %594
      %v596 = vsel %vm568, %v588, 0.0
      %597 = vadd.xlane.f32.xlu0 %v596
      %v598 = vpop.xlane.xlu0 %597
      %v599 = vsel %vm568, %v590, 0.0
      %600 = vadd.xlane.f32.xlu0 %v599
      %v601 = vpop.xlane.xlu0 %600
      %v602 = vsel %vm568, %v592, 0.0
      %603 = vadd.xlane.f32.xlu0 %v602
      %v604 = vpop.xlane.xlu0 %603
      %v605 = vrcp.pop %v595
      %v606 = vrcp.pop %v598
      %v607 = vrcp.pop %v601
      %v608 = vrcp.pop %v604
      %v609 = vmul.f32 %v586, %v605
      %v610 = vmul.f32 %v588, %v606
      %v611 = vmul.f32 %v590, %v607
      %v612 = vmul.f32 %v592, %v608
      %v614 = vsel %vm568, %v609, 0
      %vm616 = vcmask 1043456
      %v618 = vsel %vm616, %v231, 0
      %620 = vmatprep.subr.mxu0 0.0
      %621 = vmatpush1.msra.mxu0 %v230
      %622 = vmatprep.subr.mxu0 0.0
      %623 = vmatpush1.msra.mxu0 %v618
      %624 = vmatprep.subr.mxu0 0.0
      %625 = vmatpush1.msra.mxu0 0.0
      %626 = vmatprep.subr.mxu0 0.0
      %627 = vmatpush1.msra.mxu0 0.0
      %628 = vmatprep.subr.mxu0 0.0
      %629 = vmatpush1.msra.mxu0 0.0
      %630 = vmatprep.subr.mxu0 0.0
      %631 = vmatpush1.msra.mxu0 0.0
      %632 = vmatprep.subr.mxu0 0.0
      %633 = vmatpush1.msra.mxu0 0.0
      %634 = vmatprep.subr.mxu0 0.0
      %635 = vmatpush1.msra.mxu0 0.0
      %636 = vmatprep.subr.mxu0 0.0
      %637 = vmatpush1.msra.mxu0 0.0
      %638 = vmatprep.subr.mxu0 0.0
      %639 = vmatpush1.msra.mxu0 0.0
      %640 = vmatprep.subr.mxu0 0.0
      %641 = vmatpush1.msra.mxu0 0.0
      %642 = vmatprep.subr.mxu0 0.0
      %643 = vmatpush1.msra.mxu0 0.0
      %644 = vmatprep.subr.mxu0 0.0
      %645 = vmatpush1.msra.mxu0 0.0
      %646 = vmatprep.subr.mxu0 0.0
      %647 = vmatpush1.msra.mxu0 0.0
      %648 = vmatprep.subr.mxu0 0.0
      %649 = vmatpush1.msra.mxu0 0.0
      %650 = vmatprep.subr.mxu0 0.0
      %651 = vmatpush1.msra.mxu0 0.0
      %652 = vmatprep.subr.mxu0 0.0
      %653 = vmatpush1.msra.mxu0 0.0
      %654 = vmatprep.subr.mxu0 0.0
      %655 = vmatpush1.msra.mxu0 0.0
      %656 = vmatprep.subr.mxu0 0.0
      %657 = vmatpush1.msra.mxu0 0.0
      %658 = vmatprep.subr.mxu0 0.0
      %659 = vmatpush1.msra.mxu0 0.0
      %660 = vmatprep.subr.mxu0 0.0
      %661 = vmatpush1.msra.mxu0 0.0
      %662 = vmatprep.subr.mxu0 0.0
      %663 = vmatpush1.msra.mxu0 0.0
      %664 = vmatprep.subr.mxu0 0.0
      %665 = vmatpush1.msra.mxu0 0.0
      %666 = vmatprep.subr.mxu0 0.0
      %667 = vmatpush1.msra.mxu0 0.0
      %668 = vmatprep.subr.mxu0 0.0
      %669 = vmatpush1.msra.mxu0 0.0
      %670 = vmatprep.subr.mxu0 0.0
      %671 = vmatpush1.msra.mxu0 0.0
      %672 = vmatprep.subr.mxu0 0.0
      %673 = vmatpush1.msra.mxu0 0.0
      %674 = vmatprep.subr.mxu0 0.0
      %675 = vmatpush1.msra.mxu0 0.0
      %676 = vmatprep.subr.mxu0 0.0
      %677 = vmatpush1.msra.mxu0 0.0
      %678 = vmatprep.subr.mxu0 0.0
      %679 = vmatpush1.msra.mxu0 0.0
      %680 = vmatprep.subr.mxu0 0.0
      %681 = vmatpush1.msra.mxu0 0.0
      %682 = vmatprep.subr.mxu0 0.0
      %683 = vmatpush1.msra.mxu0 0.0
      %684 = vmatprep.mubr.f32.mxu0 0.0
      %685 = vmatmul.mubr.f32.gmra.mrb[0].mxu0 %v614
      %v686 = vpop.f32.mrb[0].mxu0
      %v687 = vadd.f32 0.0, %v686
      %v688 = vpop.f32.mrb[0].mxu0
      %689 = vdwg.mxu0
      %v691 = vsel %vm568, %v610, 0
      %v694 = vsel %vm616, %v233, 0
      %696 = vmatprep.subr.mxu0 0.0
      %697 = vmatpush1.msra.mxu0 %v232
      %698 = vmatprep.subr.mxu0 0.0
      %699 = vmatpush1.msra.mxu0 %v694
      %700 = vmatprep.subr.mxu0 0.0
      %701 = vmatpush1.msra.mxu0 0.0
      %702 = vmatprep.subr.mxu0 0.0
      %703 = vmatpush1.msra.mxu0 0.0
      %704 = vmatprep.subr.mxu0 0.0
      %705 = vmatpush1.msra.mxu0 0.0
      %706 = vmatprep.subr.mxu0 0.0
      %707 = vmatpush1.msra.mxu0 0.0
      %708 = vmatprep.subr.mxu0 0.0
      %709 = vmatpush1.msra.mxu0 0.0
      %710 = vmatprep.subr.mxu0 0.0
      %711 = vmatpush1.msra.mxu0 0.0
      %712 = vmatprep.subr.mxu0 0.0
      %713 = vmatpush1.msra.mxu0 0.0
      %714 = vmatprep.subr.mxu0 0.0
      %715 = vmatpush1.msra.mxu0 0.0
      %716 = vmatprep.subr.mxu0 0.0
      %717 = vmatpush1.msra.mxu0 0.0
      %718 = vmatprep.subr.mxu0 0.0
      %719 = vmatpush1.msra.mxu0 0.0
      %720 = vmatprep.subr.mxu0 0.0
      %721 = vmatpush1.msra.mxu0 0.0
      %722 = vmatprep.subr.mxu0 0.0
      %723 = vmatpush1.msra.mxu0 0.0
      %724 = vmatprep.subr.mxu0 0.0
      %725 = vmatpush1.msra.mxu0 0.0
      %726 = vmatprep.subr.mxu0 0.0
      %727 = vmatpush1.msra.mxu0 0.0
      %728 = vmatprep.subr.mxu0 0.0
      %729 = vmatpush1.msra.mxu0 0.0
      %730 = vmatprep.subr.mxu0 0.0
      %731 = vmatpush1.msra.mxu0 0.0
      %732 = vmatprep.subr.mxu0 0.0
      %733 = vmatpush1.msra.mxu0 0.0
      %734 = vmatprep.subr.mxu0 0.0
      %735 = vmatpush1.msra.mxu0 0.0
      %736 = vmatprep.subr.mxu0 0.0
      %737 = vmatpush1.msra.mxu0 0.0
      %738 = vmatprep.subr.mxu0 0.0
      %739 = vmatpush1.msra.mxu0 0.0
      %740 = vmatprep.subr.mxu0 0.0
      %741 = vmatpush1.msra.mxu0 0.0
      %742 = vmatprep.subr.mxu0 0.0
      %743 = vmatpush1.msra.mxu0 0.0
      %744 = vmatprep.subr.mxu0 0.0
      %745 = vmatpush1.msra.mxu0 0.0
      %746 = vmatprep.subr.mxu0 0.0
      %747 = vmatpush1.msra.mxu0 0.0
      %748 = vmatprep.subr.mxu0 0.0
      %749 = vmatpush1.msra.mxu0 0.0
      %750 = vmatprep.subr.mxu0 0.0
      %751 = vmatpush1.msra.mxu0 0.0
      %752 = vmatprep.subr.mxu0 0.0
      %753 = vmatpush1.msra.mxu0 0.0
      %754 = vmatprep.subr.mxu0 0.0
      %755 = vmatpush1.msra.mxu0 0.0
      %756 = vmatprep.subr.mxu0 0.0
      %757 = vmatpush1.msra.mxu0 0.0
      %758 = vmatprep.subr.mxu0 0.0
      %759 = vmatpush1.msra.mxu0 0.0
      %760 = vmatprep.mubr.f32.mxu0 0.0
      %761 = vmatmul.mubr.f32.gmra.mrb[0].mxu0 %v691
      %v762 = vpop.f32.mrb[0].mxu0
      %v763 = vadd.f32 0.0, %v762
      %v764 = vpop.f32.mrb[0].mxu0
      %765 = vdwg.mxu0
      %v767 = vsel %vm568, %v611, 0
      %v770 = vsel %vm616, %v235, 0
      %772 = vmatprep.subr.mxu0 0.0
      %773 = vmatpush1.msra.mxu0 %v234
      %774 = vmatprep.subr.mxu0 0.0
      %775 = vmatpush1.msra.mxu0 %v770
      %776 = vmatprep.subr.mxu0 0.0
      %777 = vmatpush1.msra.mxu0 0.0
      %778 = vmatprep.subr.mxu0 0.0
      %779 = vmatpush1.msra.mxu0 0.0
      %780 = vmatprep.subr.mxu0 0.0
      %781 = vmatpush1.msra.mxu0 0.0
      %782 = vmatprep.subr.mxu0 0.0
      %783 = vmatpush1.msra.mxu0 0.0
      %784 = vmatprep.subr.mxu0 0.0
      %785 = vmatpush1.msra.mxu0 0.0
      %786 = vmatprep.subr.mxu0 0.0
      %787 = vmatpush1.msra.mxu0 0.0
      %788 = vmatprep.subr.mxu0 0.0
      %789 = vmatpush1.msra.mxu0 0.0
      %790 = vmatprep.subr.mxu0 0.0
      %791 = vmatpush1.msra.mxu0 0.0
      %792 = vmatprep.subr.mxu0 0.0
      %793 = vmatpush1.msra.mxu0 0.0
      %794 = vmatprep.subr.mxu0 0.0
      %795 = vmatpush1.msra.mxu0 0.0
      %796 = vmatprep.subr.mxu0 0.0
      %797 = vmatpush1.msra.mxu0 0.0
      %798 = vmatprep.subr.mxu0 0.0
      %799 = vmatpush1.msra.mxu0 0.0
      %800 = vmatprep.subr.mxu0 0.0
      %801 = vmatpush1.msra.mxu0 0.0
      %802 = vmatprep.subr.mxu0 0.0
      %803 = vmatpush1.msra.mxu0 0.0
      %804 = vmatprep.subr.mxu0 0.0
      %805 = vmatpush1.msra.mxu0 0.0
      %806 = vmatprep.subr.mxu0 0.0
      %807 = vmatpush1.msra.mxu0 0.0
      %808 = vmatprep.subr.mxu0 0.0
      %809 = vmatpush1.msra.mxu0 0.0
      %810 = vmatprep.subr.mxu0 0.0
      %811 = vmatpush1.msra.mxu0 0.0
      %812 = vmatprep.subr.mxu0 0.0
      %813 = vmatpush1.msra.mxu0 0.0
      %814 = vmatprep.subr.mxu0 0.0
      %815 = vmatpush1.msra.mxu0 0.0
      %816 = vmatprep.subr.mxu0 0.0
      %817 = vmatpush1.msra.mxu0 0.0
      %818 = vmatprep.subr.mxu0 0.0
      %819 = vmatpush1.msra.mxu0 0.0
      %820 = vmatprep.subr.mxu0 0.0
      %821 = vmatpush1.msra.mxu0 0.0
      %822 = vmatprep.subr.mxu0 0.0
      %823 = vmatpush1.msra.mxu0 0.0
      %824 = vmatprep.subr.mxu0 0.0
      %825 = vmatpush1.msra.mxu0 0.0
      %826 = vmatprep.subr.mxu0 0.0
      %827 = vmatpush1.msra.mxu0 0.0
      %828 = vmatprep.subr.mxu0 0.0
      %829 = vmatpush1.msra.mxu0 0.0
      %830 = vmatprep.subr.mxu0 0.0
      %831 = vmatpush1.msra.mxu0 0.0
      %832 = vmatprep.subr.mxu0 0.0
      %833 = vmatpush1.msra.mxu0 0.0
      %834 = vmatprep.subr.mxu0 0.0
      %835 = vmatpush1.msra.mxu0 0.0
      %836 = vmatprep.mubr.f32.mxu0 0.0
      %837 = vmatmul.mubr.f32.gmra.mrb[0].mxu0 %v767
      %v838 = vpop.f32.mrb[0].mxu0
      %v839 = vadd.f32 0.0, %v838
      %v840 = vpop.f32.mrb[0].mxu0
      %841 = vdwg.mxu0
      %v843 = vsel %vm568, %v612, 0
      %v846 = vsel %vm616, %v237, 0
      %848 = vmatprep.subr.mxu0 0.0
      %849 = vmatpush1.msra.mxu0 %v236
      %850 = vmatprep.subr.mxu0 0.0
      %851 = vmatpush1.msra.mxu0 %v846
      %852 = vmatprep.subr.mxu0 0.0
      %853 = vmatpush1.msra.mxu0 0.0
      %854 = vmatprep.subr.mxu0 0.0
      %855 = vmatpush1.msra.mxu0 0.0
      %856 = vmatprep.subr.mxu0 0.0
      %857 = vmatpush1.msra.mxu0 0.0
      %858 = vmatprep.subr.mxu0 0.0
      %859 = vmatpush1.msra.mxu0 0.0
      %860 = vmatprep.subr.mxu0 0.0
      %861 = vmatpush1.msra.mxu0 0.0
      %862 = vmatprep.subr.mxu0 0.0
      %863 = vmatpush1.msra.mxu0 0.0
      %864 = vmatprep.subr.mxu0 0.0
      %865 = vmatpush1.msra.mxu0 0.0
      %866 = vmatprep.subr.mxu0 0.0
      %867 = vmatpush1.msra.mxu0 0.0
      %868 = vmatprep.subr.mxu0 0.0
      %869 = vmatpush1.msra.mxu0 0.0
      %870 = vmatprep.subr.mxu0 0.0
      %871 = vmatpush1.msra.mxu0 0.0
      %872 = vmatprep.subr.mxu0 0.0
      %873 = vmatpush1.msra.mxu0 0.0
      %874 = vmatprep.subr.mxu0 0.0
      %875 = vmatpush1.msra.mxu0 0.0
      %876 = vmatprep.subr.mxu0 0.0
      %877 = vmatpush1.msra.mxu0 0.0
      %878 = vmatprep.subr.mxu0 0.0
      %879 = vmatpush1.msra.mxu0 0.0
      %880 = vmatprep.subr.mxu0 0.0
      %881 = vmatpush1.msra.mxu0 0.0
      %882 = vmatprep.subr.mxu0 0.0
      %883 = vmatpush1.msra.mxu0 0.0
      %884 = vmatprep.subr.mxu0 0.0
      %885 = vmatpush1.msra.mxu0 0.0
      %886 = vmatprep.subr.mxu0 0.0
      %887 = vmatpush1.msra.mxu0 0.0
      %888 = vmatprep.subr.mxu0 0.0
      %889 = vmatpush1.msra.mxu0 0.0
      %890 = vmatprep.subr.mxu0 0.0
      %891 = vmatpush1.msra.mxu0 0.0
      %892 = vmatprep.subr.mxu0 0.0
      %893 = vmatpush1.msra.mxu0 0.0
      %894 = vmatprep.subr.mxu0 0.0
      %895 = vmatpush1.msra.mxu0 0.0
      %896 = vmatprep.subr.mxu0 0.0
      %897 = vmatpush1.msra.mxu0 0.0
      %898 = vmatprep.subr.mxu0 0.0
      %899 = vmatpush1.msra.mxu0 0.0
      %900 = vmatprep.subr.mxu0 0.0
      %901 = vmatpush1.msra.mxu0 0.0
      %902 = vmatprep.subr.mxu0 0.0
      %903 = vmatpush1.msra.mxu0 0.0
      %904 = vmatprep.subr.mxu0 0.0
      %905 = vmatpush1.msra.mxu0 0.0
      %906 = vmatprep.subr.mxu0 0.0
      %907 = vmatpush1.msra.mxu0 0.0
      %908 = vmatprep.subr.mxu0 0.0
      %909 = vmatpush1.msra.mxu0 0.0
      %910 = vmatprep.subr.mxu0 0.0
      %911 = vmatpush1.msra.mxu0 0.0
      %912 = vmatprep.mubr.f32.mxu0 0.0
      %913 = vmatmul.mubr.f32.gmra.mrb[0].mxu0 %v843
      %v914 = vpop.f32.mrb[0].mxu0
      %v915 = vadd.f32 0.0, %v914
      %v916 = vpop.f32.mrb[0].mxu0
      %917 = vdwg.mxu0
      %918 = vst.msk [vmem:[%s217] sm:$0xff] %vm238, %v687
      %919 = vst.msk [vmem:[%s217 + $0x8] sm:$0xff] %vm238, %v763
      %920 = vst.msk [vmem:[%s217 + $0x10] sm:$0xff] %vm238, %v839
      %921 = vst.msk [vmem:[%s217 + $0x18] sm:$0xff] %vm238, %v915
      %p922 = scmp.lt.s32.totalorder %s21, 1
      %s923 = scalar_select %p922, %s21, 1
      %s924 = smul.addr %s923, 4
      %s925 = smul.addr %s924, 8
      %s926 = scalar_lea.vmem %s4, %s925
      // Predicated region
      $region33: #{decoder_forward.22} parent=31 // pred_check
        %p927 = pneg %p117
      $region34: #{decoder_forward.22} parent=31 // pred_check_branch
        %929 = sbr.rel (%p927) target = $region36
      $region35: #{decoder_forward.22} parent=31 // pred_region
        _
      $region36: #{decoder_forward.22} parent=31 // pred_fallthru
        _
    $region32: #{decoder_forward.22} parent=5 // pred_fallthru
      _
    %p930 = scmp.le.s32.totalorder 2, %s16
    // Predicated region
    $region37: #{decoder_forward.22} parent=5 // pred_check
      %p931 = pneg %p930
    $region38: #{decoder_forward.22} parent=5 // pred_check_branch
      %933 = sbr.rel (%p931) target = $region40
    $region39: #{decoder_forward.22} parent=5 // pred_region
      %s934 = ssub.s32 %s16, 2
      // Predicated region
      $region41: #{decoder_forward.22} parent=39 // pred_check
        %p935 = pneg %p123
      $region42: #{decoder_forward.22} parent=39 // pred_check_branch
        %937 = sbr.rel (%p935) target = $region44
      $region43: #{decoder_forward.22} parent=39 // pred_region
        %p938 = scmp.lt.s32.totalorder %s22, 1
        %s939 = scalar_select %p938, %s22, 1
        %s940 = smul.addr %s939, 4
        %s941 = smul.addr %s940, 8
        %s942 = scalar_lea.vmem %s4, %s941
      $region44: #{decoder_forward.22} parent=39 // pred_fallthru
        _
    $region40: #{decoder_forward.22} parent=5 // pred_fallthru
      _
  $region6: #{decoder_forward.22} parent=0 // loop_footer
    %s20 = sadd.s32 1, %s16
  $region7: #{decoder_forward.22} parent=0 // loop_footer_branch
    %15 = sbr.rel target = $region3
  $region8: #{decoder_forward.22} parent=0 // loop_exit
    _

</llo_original>
